<compile_context>
chip_gen: v7x
topology: tpu7x:2x2x1
jax: 0.10.0
libtpu: 0.0.40
codegen_flags: <defaults>
</compile_context>

<pallas_src>
import functools

import jax
import jax.numpy as jnp
from jax.experimental import pallas as pl
from jax.experimental.pallas import tpu as pltpu  # noqa: F401  (kept for TPU-specific extensions)


def _encoder_kernel(T, B, H, L, *refs):
    """Fused multi-layer LSTM encoder.

    refs = (x_ref, [wih_ref, whh_ref, b_ref] * L, out_ref)
      x_ref:   (T*B, F0)   time-major input, flattened over (t, b)
      wih_ref: (F_in, 4H)  = W_ih^T  for layer l
      whh_ref: (H, 4H)     = W_hh^T  for layer l
      b_ref:   (1, 4H)     = b_ih + b_hh for layer l
      out_ref: (2*L, B, H) rows [0:L] = h_n, rows [L:2L] = c_n
    """
    out_ref = refs[-1]

    seq = refs[0][...]                       # (T*B, F_in) current layer's input sequence
    h_fin, c_fin = [], []

    for l in range(L):                       # layers: static Python loop
        wih = refs[1 + 3 * l][...]           # (F_in, 4H)
        whh = refs[2 + 3 * l][...]           # (H, 4H)
        b = refs[3 + 3 * l][...]             # (1, 4H)

        # Prologue: input projection + bias for every timestep in ONE MXU matmul.
        xp = jnp.dot(seq, wih, preferred_element_type=jnp.float32) + b   # (T*B, 4H)

        h = jnp.zeros((B, H), jnp.float32)
        c = jnp.zeros((B, H), jnp.float32)
        hs = []
        for t in range(T):                   # time: static, fully unrolled
            gates = xp[t * B:(t + 1) * B, :] + jnp.dot(
                h, whh, preferred_element_type=jnp.float32)              # (B, 4H)
            # One sigmoid and one tanh over the full 4H-lane gate block, then slice.
            sg = jax.nn.sigmoid(gates)
            th = jnp.tanh(gates)
            i_g = sg[:, 0 * H:1 * H]
            f_g = sg[:, 1 * H:2 * H]
            g_g = th[:, 2 * H:3 * H]
            o_g = sg[:, 3 * H:4 * H]
            c = f_g * c + i_g * g_g
            h = o_g * jnp.tanh(c)
            hs.append(h)

        h_fin.append(h)
        c_fin.append(c)
        if l + 1 < L:
            # Hidden sequence stays on-chip as the next layer's input (time-major rows).
            seq = jnp.concatenate(hs, axis=0)            # (T*B, H)

    # Single final store of all layer states: rows [0:L] = h_n, [L:2L] = c_n.
    out_ref[...] = jnp.stack(h_fin + c_fin, axis=0)


@jax.jit
def encoder_forward(emb, params):
    """emb: (B, T, input_size) batch_first.  Returns (h_n, c_n), each (num_layers, B, H)."""
    B, T, F = emb.shape
    L = len(params)
    H = params[0]["w_hh"].shape[1]

    # Time-major, flattened over (t, b) so each layer's input projection is one matmul.
    x = jnp.transpose(emb, (1, 0, 2)).reshape(T * B, F).astype(jnp.float32)

    args = [x]
    for p in params:
        args.append(jnp.transpose(p["w_ih"]).astype(jnp.float32))               # (F_in, 4H)
        args.append(jnp.transpose(p["w_hh"]).astype(jnp.float32))               # (H, 4H)
        args.append((p["b_ih"] + p["b_hh"]).reshape(1, 4 * H).astype(jnp.float32))

    out = pl.pallas_call(
        functools.partial(_encoder_kernel, T, B, H, L),
        out_shape=jax.ShapeDtypeStruct((2 * L, B, H), jnp.float32),
    )(*args)
    return out[:L], out[L:]


def init_encoder_params(key, input_size=6, hidden_size=32, num_layers=3):
    """Deterministic init matching PyTorch nn.LSTM param shapes:
       per layer l: weight_ih (4H, F_l), weight_hh (4H, H), bias_ih (4H,), bias_hh (4H,)."""
    params = []
    stdv = 1.0 / jnp.sqrt(jnp.float32(hidden_size))
    for layer in range(num_layers):
        f_in = input_size if layer == 0 else hidden_size
        key, k1, k2, k3, k4 = jax.random.split(key, 5)
        params.append({
            "w_ih": jax.random.uniform(k1, (4 * hidden_size, f_in), jnp.float32, -stdv, stdv),
            "w_hh": jax.random.uniform(k2, (4 * hidden_size, hidden_size), jnp.float32, -stdv, stdv),
            "b_ih": jax.random.uniform(k3, (4 * hidden_size,), jnp.float32, -stdv, stdv),
            "b_hh": jax.random.uniform(k4, (4 * hidden_size,), jnp.float32, -stdv, stdv),
        })
    return params


def _reference_forward(emb, params):
    """Pure-JAX reference LSTM (eval mode) for the correctness check."""
    x = jnp.transpose(emb, (1, 0, 2))
    T, B, _ = x.shape
    H = params[0]["w_hh"].shape[1]
    h_out, c_out = [], []
    for p in params:
        h = jnp.zeros((B, H), jnp.float32)
        c = jnp.zeros((B, H), jnp.float32)
        outs = []
        for t in range(T):
            g = x[t] @ p["w_ih"].T + h @ p["w_hh"].T + p["b_ih"] + p["b_hh"]
            i = jax.nn.sigmoid(g[:, 0 * H:1 * H])
            f = jax.nn.sigmoid(g[:, 1 * H:2 * H])
            gg = jnp.tanh(g[:, 2 * H:3 * H])
            o = jax.nn.sigmoid(g[:, 3 * H:4 * H])
            c = f * c + i * gg
            h = o * jnp.tanh(c)
            outs.append(h)
        x = jnp.stack(outs, axis=0)
        h_out.append(h)
        c_out.append(c)
    return jnp.stack(h_out, 0), jnp.stack(c_out, 0)


if __name__ == "__main__":
    B, T, INPUT, HIDDEN, LAYERS = 2, 8, 6, 32, 3

    key = jax.random.PRNGKey(0)
    k_emb, k_params = jax.random.split(key)
    emb = jax.random.normal(k_emb, (B, T, INPUT), jnp.float32)
    params = init_encoder_params(k_params, INPUT, HIDDEN, LAYERS)

    h_n, c_n = encoder_forward(emb, params)
    jax.block_until_ready((h_n, c_n))

    h_ref, c_ref = _reference_forward(emb, params)
    assert h_n.shape == (LAYERS, B, HIDDEN) and c_n.shape == (LAYERS, B, HIDDEN)
    assert jnp.allclose(h_n, h_ref, atol=1e-5, rtol=1e-5)
    assert jnp.allclose(c_n, c_ref, atol=1e-5, rtol=1e-5)

    print("KERNEL_OK")
</pallas_src>

<mosaic_0001>
module attributes {stable_mosaic.version = 11 : i64} {
  func.func @_encoder_kernel(%arg0: memref<16x6xf32, #tpu.memory_space<vmem>>, %arg1: memref<6x128xf32, #tpu.memory_space<vmem>>, %arg2: memref<32x128xf32, #tpu.memory_space<vmem>>, %arg3: memref<1x128xf32, #tpu.memory_space<vmem>>, %arg4: memref<32x128xf32, #tpu.memory_space<vmem>>, %arg5: memref<32x128xf32, #tpu.memory_space<vmem>>, %arg6: memref<1x128xf32, #tpu.memory_space<vmem>>, %arg7: memref<32x128xf32, #tpu.memory_space<vmem>>, %arg8: memref<32x128xf32, #tpu.memory_space<vmem>>, %arg9: memref<1x128xf32, #tpu.memory_space<vmem>>, %arg10: memref<6x2x32xf32, #tpu.memory_space<vmem>>) attributes {dimension_semantics = [], scalar_prefetch = 0 : i64, scratch_operands = 0 : i64, tpu.core_type = #tpu.core_type<tc>} {
    %c0 = arith.constant 0 : index
    %c0_0 = arith.constant 0 : index
    %0 = vector.load %arg0[%c0, %c0_0] : memref<16x6xf32, #tpu.memory_space<vmem>>, vector<16x6xf32>
    %c0_1 = arith.constant 0 : index
    %c0_2 = arith.constant 0 : index
    %1 = vector.load %arg1[%c0_1, %c0_2] : memref<6x128xf32, #tpu.memory_space<vmem>>, vector<6x128xf32>
    %c0_3 = arith.constant 0 : index
    %c0_4 = arith.constant 0 : index
    %2 = vector.load %arg2[%c0_3, %c0_4] : memref<32x128xf32, #tpu.memory_space<vmem>>, vector<32x128xf32>
    %c0_5 = arith.constant 0 : index
    %c0_6 = arith.constant 0 : index
    %3 = vector.load %arg3[%c0_5, %c0_6] : memref<1x128xf32, #tpu.memory_space<vmem>>, vector<1x128xf32>
    %cst = arith.constant dense<0.000000e+00> : vector<16x128xf32>
    %4 = tpu.matmul %0, %1, %cst {dimension_numbers = #tpu.dot_dimension_numbers<[1], [0], [0], [1], [0, 0, 1, 1], [], []>} : vector<16x6xf32>, vector<6x128xf32>, vector<16x128xf32> -> vector<16x128xf32>
    %5 = vector.broadcast %3 : vector<1x128xf32> to vector<16x128xf32>
    %6 = arith.addf %4, %5 : vector<16x128xf32>
    %cst_7 = arith.constant 0.000000e+00 : f32
    %7 = vector.broadcast %cst_7 : f32 to vector<2x32xf32>
    %cst_8 = arith.constant 0.000000e+00 : f32
    %8 = vector.broadcast %cst_8 : f32 to vector<2x32xf32>
    %9 = vector.extract_strided_slice %6 {offsets = [0, 0], sizes = [2, 128], strides = [1, 1]} : vector<16x128xf32> to vector<2x128xf32>
    %cst_9 = arith.constant dense<0.000000e+00> : vector<2x128xf32>
    %10 = tpu.matmul %7, %2, %cst_9 {dimension_numbers = #tpu.dot_dimension_numbers<[1], [0], [0], [1], [0, 0, 1, 1], [], []>} : vector<2x32xf32>, vector<32x128xf32>, vector<2x128xf32> -> vector<2x128xf32>
    %11 = arith.addf %9, %10 : vector<2x128xf32>
    %12 = arith.negf %11 : vector<2x128xf32>
    %13 = math.exp %12 : vector<2x128xf32>
    %cst_10 = arith.constant 1.000000e+00 : f32
    %14 = vector.broadcast %cst_10 : f32 to vector<2x128xf32>
    %15 = arith.addf %14, %13 : vector<2x128xf32>
    %16 = arith.divf %14, %15 : vector<2x128xf32>
    %17 = math.tanh %11 : vector<2x128xf32>
    %18 = vector.extract_strided_slice %16 {offsets = [0, 0], sizes = [2, 32], strides = [1, 1]} : vector<2x128xf32> to vector<2x32xf32>
    %19 = vector.extract_strided_slice %16 {offsets = [0, 32], sizes = [2, 32], strides = [1, 1]} : vector<2x128xf32> to vector<2x32xf32>
    %20 = vector.extract_strided_slice %17 {offsets = [0, 64], sizes = [2, 32], strides = [1, 1]} : vector<2x128xf32> to vector<2x32xf32>
    %21 = vector.extract_strided_slice %16 {offsets = [0, 96], sizes = [2, 32], strides = [1, 1]} : vector<2x128xf32> to vector<2x32xf32>
    %22 = arith.mulf %19, %8 : vector<2x32xf32>
    %23 = arith.mulf %18, %20 : vector<2x32xf32>
    %24 = arith.addf %22, %23 : vector<2x32xf32>
    %25 = math.tanh %24 : vector<2x32xf32>
    %26 = arith.mulf %21, %25 : vector<2x32xf32>
    %27 = vector.extract_strided_slice %6 {offsets = [2, 0], sizes = [2, 128], strides = [1, 1]} : vector<16x128xf32> to vector<2x128xf32>
    %cst_11 = arith.constant dense<0.000000e+00> : vector<2x128xf32>
    %28 = tpu.matmul %26, %2, %cst_11 {dimension_numbers = #tpu.dot_dimension_numbers<[1], [0], [0], [1], [0, 0, 1, 1], [], []>} : vector<2x32xf32>, vector<32x128xf32>, vector<2x128xf32> -> vector<2x128xf32>
    %29 = arith.addf %27, %28 : vector<2x128xf32>
    %30 = arith.negf %29 : vector<2x128xf32>
    %31 = math.exp %30 : vector<2x128xf32>
    %cst_12 = arith.constant 1.000000e+00 : f32
    %32 = vector.broadcast %cst_12 : f32 to vector<2x128xf32>
    %33 = arith.addf %32, %31 : vector<2x128xf32>
    %34 = arith.divf %32, %33 : vector<2x128xf32>
    %35 = math.tanh %29 : vector<2x128xf32>
    %36 = vector.extract_strided_slice %34 {offsets = [0, 0], sizes = [2, 32], strides = [1, 1]} : vector<2x128xf32> to vector<2x32xf32>
    %37 = vector.extract_strided_slice %34 {offsets = [0, 32], sizes = [2, 32], strides = [1, 1]} : vector<2x128xf32> to vector<2x32xf32>
    %38 = vector.extract_strided_slice %35 {offsets = [0, 64], sizes = [2, 32], strides = [1, 1]} : vector<2x128xf32> to vector<2x32xf32>
    %39 = vector.extract_strided_slice %34 {offsets = [0, 96], sizes = [2, 32], strides = [1, 1]} : vector<2x128xf32> to vector<2x32xf32>
    %40 = arith.mulf %37, %24 : vector<2x32xf32>
    %41 = arith.mulf %36, %38 : vector<2x32xf32>
    %42 = arith.addf %40, %41 : vector<2x32xf32>
    %43 = math.tanh %42 : vector<2x32xf32>
    %44 = arith.mulf %39, %43 : vector<2x32xf32>
    %45 = vector.extract_strided_slice %6 {offsets = [4, 0], sizes = [2, 128], strides = [1, 1]} : vector<16x128xf32> to vector<2x128xf32>
    %cst_13 = arith.constant dense<0.000000e+00> : vector<2x128xf32>
    %46 = tpu.matmul %44, %2, %cst_13 {dimension_numbers = #tpu.dot_dimension_numbers<[1], [0], [0], [1], [0, 0, 1, 1], [], []>} : vector<2x32xf32>, vector<32x128xf32>, vector<2x128xf32> -> vector<2x128xf32>
    %47 = arith.addf %45, %46 : vector<2x128xf32>
    %48 = arith.negf %47 : vector<2x128xf32>
    %49 = math.exp %48 : vector<2x128xf32>
    %cst_14 = arith.constant 1.000000e+00 : f32
    %50 = vector.broadcast %cst_14 : f32 to vector<2x128xf32>
    %51 = arith.addf %50, %49 : vector<2x128xf32>
    %52 = arith.divf %50, %51 : vector<2x128xf32>
    %53 = math.tanh %47 : vector<2x128xf32>
    %54 = vector.extract_strided_slice %52 {offsets = [0, 0], sizes = [2, 32], strides = [1, 1]} : vector<2x128xf32> to vector<2x32xf32>
    %55 = vector.extract_strided_slice %52 {offsets = [0, 32], sizes = [2, 32], strides = [1, 1]} : vector<2x128xf32> to vector<2x32xf32>
    %56 = vector.extract_strided_slice %53 {offsets = [0, 64], sizes = [2, 32], strides = [1, 1]} : vector<2x128xf32> to vector<2x32xf32>
    %57 = vector.extract_strided_slice %52 {offsets = [0, 96], sizes = [2, 32], strides = [1, 1]} : vector<2x128xf32> to vector<2x32xf32>
    %58 = arith.mulf %55, %42 : vector<2x32xf32>
    %59 = arith.mulf %54, %56 : vector<2x32xf32>
    %60 = arith.addf %58, %59 : vector<2x32xf32>
    %61 = math.tanh %60 : vector<2x32xf32>
    %62 = arith.mulf %57, %61 : vector<2x32xf32>
    %63 = vector.extract_strided_slice %6 {offsets = [6, 0], sizes = [2, 128], strides = [1, 1]} : vector<16x128xf32> to vector<2x128xf32>
    %cst_15 = arith.constant dense<0.000000e+00> : vector<2x128xf32>
    %64 = tpu.matmul %62, %2, %cst_15 {dimension_numbers = #tpu.dot_dimension_numbers<[1], [0], [0], [1], [0, 0, 1, 1], [], []>} : vector<2x32xf32>, vector<32x128xf32>, vector<2x128xf32> -> vector<2x128xf32>
    %65 = arith.addf %63, %64 : vector<2x128xf32>
    %66 = arith.negf %65 : vector<2x128xf32>
    %67 = math.exp %66 : vector<2x128xf32>
    %cst_16 = arith.constant 1.000000e+00 : f32
    %68 = vector.broadcast %cst_16 : f32 to vector<2x128xf32>
    %69 = arith.addf %68, %67 : vector<2x128xf32>
    %70 = arith.divf %68, %69 : vector<2x128xf32>
    %71 = math.tanh %65 : vector<2x128xf32>
    %72 = vector.extract_strided_slice %70 {offsets = [0, 0], sizes = [2, 32], strides = [1, 1]} : vector<2x128xf32> to vector<2x32xf32>
    %73 = vector.extract_strided_slice %70 {offsets = [0, 32], sizes = [2, 32], strides = [1, 1]} : vector<2x128xf32> to vector<2x32xf32>
    %74 = vector.extract_strided_slice %71 {offsets = [0, 64], sizes = [2, 32], strides = [1, 1]} : vector<2x128xf32> to vector<2x32xf32>
    %75 = vector.extract_strided_slice %70 {offsets = [0, 96], sizes = [2, 32], strides = [1, 1]} : vector<2x128xf32> to vector<2x32xf32>
    %76 = arith.mulf %73, %60 : vector<2x32xf32>
    %77 = arith.mulf %72, %74 : vector<2x32xf32>
    %78 = arith.addf %76, %77 : vector<2x32xf32>
    %79 = math.tanh %78 : vector<2x32xf32>
    %80 = arith.mulf %75, %79 : vector<2x32xf32>
    %81 = vector.extract_strided_slice %6 {offsets = [8, 0], sizes = [2, 128], strides = [1, 1]} : vector<16x128xf32> to vector<2x128xf32>
    %cst_17 = arith.constant dense<0.000000e+00> : vector<2x128xf32>
    %82 = tpu.matmul %80, %2, %cst_17 {dimension_numbers = #tpu.dot_dimension_numbers<[1], [0], [0], [1], [0, 0, 1, 1], [], []>} : vector<2x32xf32>, vector<32x128xf32>, vector<2x128xf32> -> vector<2x128xf32>
    %83 = arith.addf %81, %82 : vector<2x128xf32>
    %84 = arith.negf %83 : vector<2x128xf32>
    %85 = math.exp %84 : vector<2x128xf32>
    %cst_18 = arith.constant 1.000000e+00 : f32
    %86 = vector.broadcast %cst_18 : f32 to vector<2x128xf32>
    %87 = arith.addf %86, %85 : vector<2x128xf32>
    %88 = arith.divf %86, %87 : vector<2x128xf32>
    %89 = math.tanh %83 : vector<2x128xf32>
    %90 = vector.extract_strided_slice %88 {offsets = [0, 0], sizes = [2, 32], strides = [1, 1]} : vector<2x128xf32> to vector<2x32xf32>
    %91 = vector.extract_strided_slice %88 {offsets = [0, 32], sizes = [2, 32], strides = [1, 1]} : vector<2x128xf32> to vector<2x32xf32>
    %92 = vector.extract_strided_slice %89 {offsets = [0, 64], sizes = [2, 32], strides = [1, 1]} : vector<2x128xf32> to vector<2x32xf32>
    %93 = vector.extract_strided_slice %88 {offsets = [0, 96], sizes = [2, 32], strides = [1, 1]} : vector<2x128xf32> to vector<2x32xf32>
    %94 = arith.mulf %91, %78 : vector<2x32xf32>
    %95 = arith.mulf %90, %92 : vector<2x32xf32>
    %96 = arith.addf %94, %95 : vector<2x32xf32>
    %97 = math.tanh %96 : vector<2x32xf32>
    %98 = arith.mulf %93, %97 : vector<2x32xf32>
    %99 = vector.extract_strided_slice %6 {offsets = [10, 0], sizes = [2, 128], strides = [1, 1]} : vector<16x128xf32> to vector<2x128xf32>
    %cst_19 = arith.constant dense<0.000000e+00> : vector<2x128xf32>
    %100 = tpu.matmul %98, %2, %cst_19 {dimension_numbers = #tpu.dot_dimension_numbers<[1], [0], [0], [1], [0, 0, 1, 1], [], []>} : vector<2x32xf32>, vector<32x128xf32>, vector<2x128xf32> -> vector<2x128xf32>
    %101 = arith.addf %99, %100 : vector<2x128xf32>
    %102 = arith.negf %101 : vector<2x128xf32>
    %103 = math.exp %102 : vector<2x128xf32>
    %cst_20 = arith.constant 1.000000e+00 : f32
    %104 = vector.broadcast %cst_20 : f32 to vector<2x128xf32>
    %105 = arith.addf %104, %103 : vector<2x128xf32>
    %106 = arith.divf %104, %105 : vector<2x128xf32>
    %107 = math.tanh %101 : vector<2x128xf32>
    %108 = vector.extract_strided_slice %106 {offsets = [0, 0], sizes = [2, 32], strides = [1, 1]} : vector<2x128xf32> to vector<2x32xf32>
    %109 = vector.extract_strided_slice %106 {offsets = [0, 32], sizes = [2, 32], strides = [1, 1]} : vector<2x128xf32> to vector<2x32xf32>
    %110 = vector.extract_strided_slice %107 {offsets = [0, 64], sizes = [2, 32], strides = [1, 1]} : vector<2x128xf32> to vector<2x32xf32>
    %111 = vector.extract_strided_slice %106 {offsets = [0, 96], sizes = [2, 32], strides = [1, 1]} : vector<2x128xf32> to vector<2x32xf32>
    %112 = arith.mulf %109, %96 : vector<2x32xf32>
    %113 = arith.mulf %108, %110 : vector<2x32xf32>
    %114 = arith.addf %112, %113 : vector<2x32xf32>
    %115 = math.tanh %114 : vector<2x32xf32>
    %116 = arith.mulf %111, %115 : vector<2x32xf32>
    %117 = vector.extract_strided_slice %6 {offsets = [12, 0], sizes = [2, 128], strides = [1, 1]} : vector<16x128xf32> to vector<2x128xf32>
    %cst_21 = arith.constant dense<0.000000e+00> : vector<2x128xf32>
    %118 = tpu.matmul %116, %2, %cst_21 {dimension_numbers = #tpu.dot_dimension_numbers<[1], [0], [0], [1], [0, 0, 1, 1], [], []>} : vector<2x32xf32>, vector<32x128xf32>, vector<2x128xf32> -> vector<2x128xf32>
    %119 = arith.addf %117, %118 : vector<2x128xf32>
    %120 = arith.negf %119 : vector<2x128xf32>
    %121 = math.exp %120 : vector<2x128xf32>
    %cst_22 = arith.constant 1.000000e+00 : f32
    %122 = vector.broadcast %cst_22 : f32 to vector<2x128xf32>
    %123 = arith.addf %122, %121 : vector<2x128xf32>
    %124 = arith.divf %122, %123 : vector<2x128xf32>
    %125 = math.tanh %119 : vector<2x128xf32>
    %126 = vector.extract_strided_slice %124 {offsets = [0, 0], sizes = [2, 32], strides = [1, 1]} : vector<2x128xf32> to vector<2x32xf32>
    %127 = vector.extract_strided_slice %124 {offsets = [0, 32], sizes = [2, 32], strides = [1, 1]} : vector<2x128xf32> to vector<2x32xf32>
    %128 = vector.extract_strided_slice %125 {offsets = [0, 64], sizes = [2, 32], strides = [1, 1]} : vector<2x128xf32> to vector<2x32xf32>
    %129 = vector.extract_strided_slice %124 {offsets = [0, 96], sizes = [2, 32], strides = [1, 1]} : vector<2x128xf32> to vector<2x32xf32>
    %130 = arith.mulf %127, %114 : vector<2x32xf32>
    %131 = arith.mulf %126, %128 : vector<2x32xf32>
    %132 = arith.addf %130, %131 : vector<2x32xf32>
    %133 = math.tanh %132 : vector<2x32xf32>
    %134 = arith.mulf %129, %133 : vector<2x32xf32>
    %135 = vector.extract_strided_slice %6 {offsets = [14, 0], sizes = [2, 128], strides = [1, 1]} : vector<16x128xf32> to vector<2x128xf32>
    %cst_23 = arith.constant dense<0.000000e+00> : vector<2x128xf32>
    %136 = tpu.matmul %134, %2, %cst_23 {dimension_numbers = #tpu.dot_dimension_numbers<[1], [0], [0], [1], [0, 0, 1, 1], [], []>} : vector<2x32xf32>, vector<32x128xf32>, vector<2x128xf32> -> vector<2x128xf32>
    %137 = arith.addf %135, %136 : vector<2x128xf32>
    %138 = arith.negf %137 : vector<2x128xf32>
    %139 = math.exp %138 : vector<2x128xf32>
    %cst_24 = arith.constant 1.000000e+00 : f32
    %140 = vector.broadcast %cst_24 : f32 to vector<2x128xf32>
    %141 = arith.addf %140, %139 : vector<2x128xf32>
    %142 = arith.divf %140, %141 : vector<2x128xf32>
    %143 = math.tanh %137 : vector<2x128xf32>
    %144 = vector.extract_strided_slice %142 {offsets = [0, 0], sizes = [2, 32], strides = [1, 1]} : vector<2x128xf32> to vector<2x32xf32>
    %145 = vector.extract_strided_slice %142 {offsets = [0, 32], sizes = [2, 32], strides = [1, 1]} : vector<2x128xf32> to vector<2x32xf32>
    %146 = vector.extract_strided_slice %143 {offsets = [0, 64], sizes = [2, 32], strides = [1, 1]} : vector<2x128xf32> to vector<2x32xf32>
    %147 = vector.extract_strided_slice %142 {offsets = [0, 96], sizes = [2, 32], strides = [1, 1]} : vector<2x128xf32> to vector<2x32xf32>
    %148 = arith.mulf %145, %132 : vector<2x32xf32>
    %149 = arith.mulf %144, %146 : vector<2x32xf32>
    %150 = arith.addf %148, %149 : vector<2x32xf32>
    %151 = math.tanh %150 : vector<2x32xf32>
    %152 = arith.mulf %147, %151 : vector<2x32xf32>
    %153 = tpu.concatenate %26, %44, %62, %80, %98, %116, %134, %152 in 0 : vector<2x32xf32>, vector<2x32xf32>, vector<2x32xf32>, vector<2x32xf32>, vector<2x32xf32>, vector<2x32xf32>, vector<2x32xf32>, vector<2x32xf32> -> vector<16x32xf32>
    %c0_25 = arith.constant 0 : index
    %c0_26 = arith.constant 0 : index
    %154 = vector.load %arg4[%c0_25, %c0_26] : memref<32x128xf32, #tpu.memory_space<vmem>>, vector<32x128xf32>
    %c0_27 = arith.constant 0 : index
    %c0_28 = arith.constant 0 : index
    %155 = vector.load %arg5[%c0_27, %c0_28] : memref<32x128xf32, #tpu.memory_space<vmem>>, vector<32x128xf32>
    %c0_29 = arith.constant 0 : index
    %c0_30 = arith.constant 0 : index
    %156 = vector.load %arg6[%c0_29, %c0_30] : memref<1x128xf32, #tpu.memory_space<vmem>>, vector<1x128xf32>
    %cst_31 = arith.constant dense<0.000000e+00> : vector<16x128xf32>
    %157 = tpu.matmul %153, %154, %cst_31 {dimension_numbers = #tpu.dot_dimension_numbers<[1], [0], [0], [1], [0, 0, 1, 1], [], []>} : vector<16x32xf32>, vector<32x128xf32>, vector<16x128xf32> -> vector<16x128xf32>
    %158 = vector.broadcast %156 : vector<1x128xf32> to vector<16x128xf32>
    %159 = arith.addf %157, %158 : vector<16x128xf32>
    %cst_32 = arith.constant 0.000000e+00 : f32
    %160 = vector.broadcast %cst_32 : f32 to vector<2x32xf32>
    %cst_33 = arith.constant 0.000000e+00 : f32
    %161 = vector.broadcast %cst_33 : f32 to vector<2x32xf32>
    %162 = vector.extract_strided_slice %159 {offsets = [0, 0], sizes = [2, 128], strides = [1, 1]} : vector<16x128xf32> to vector<2x128xf32>
    %cst_34 = arith.constant dense<0.000000e+00> : vector<2x128xf32>
    %163 = tpu.matmul %160, %155, %cst_34 {dimension_numbers = #tpu.dot_dimension_numbers<[1], [0], [0], [1], [0, 0, 1, 1], [], []>} : vector<2x32xf32>, vector<32x128xf32>, vector<2x128xf32> -> vector<2x128xf32>
    %164 = arith.addf %162, %163 : vector<2x128xf32>
    %165 = arith.negf %164 : vector<2x128xf32>
    %166 = math.exp %165 : vector<2x128xf32>
    %cst_35 = arith.constant 1.000000e+00 : f32
    %167 = vector.broadcast %cst_35 : f32 to vector<2x128xf32>
    %168 = arith.addf %167, %166 : vector<2x128xf32>
    %169 = arith.divf %167, %168 : vector<2x128xf32>
    %170 = math.tanh %164 : vector<2x128xf32>
    %171 = vector.extract_strided_slice %169 {offsets = [0, 0], sizes = [2, 32], strides = [1, 1]} : vector<2x128xf32> to vector<2x32xf32>
    %172 = vector.extract_strided_slice %169 {offsets = [0, 32], sizes = [2, 32], strides = [1, 1]} : vector<2x128xf32> to vector<2x32xf32>
    %173 = vector.extract_strided_slice %170 {offsets = [0, 64], sizes = [2, 32], strides = [1, 1]} : vector<2x128xf32> to vector<2x32xf32>
    %174 = vector.extract_strided_slice %169 {offsets = [0, 96], sizes = [2, 32], strides = [1, 1]} : vector<2x128xf32> to vector<2x32xf32>
    %175 = arith.mulf %172, %161 : vector<2x32xf32>
    %176 = arith.mulf %171, %173 : vector<2x32xf32>
    %177 = arith.addf %175, %176 : vector<2x32xf32>
    %178 = math.tanh %177 : vector<2x32xf32>
    %179 = arith.mulf %174, %178 : vector<2x32xf32>
    %180 = vector.extract_strided_slice %159 {offsets = [2, 0], sizes = [2, 128], strides = [1, 1]} : vector<16x128xf32> to vector<2x128xf32>
    %cst_36 = arith.constant dense<0.000000e+00> : vector<2x128xf32>
    %181 = tpu.matmul %179, %155, %cst_36 {dimension_numbers = #tpu.dot_dimension_numbers<[1], [0], [0], [1], [0, 0, 1, 1], [], []>} : vector<2x32xf32>, vector<32x128xf32>, vector<2x128xf32> -> vector<2x128xf32>
    %182 = arith.addf %180, %181 : vector<2x128xf32>
    %183 = arith.negf %182 : vector<2x128xf32>
    %184 = math.exp %183 : vector<2x128xf32>
    %cst_37 = arith.constant 1.000000e+00 : f32
    %185 = vector.broadcast %cst_37 : f32 to vector<2x128xf32>
    %186 = arith.addf %185, %184 : vector<2x128xf32>
    %187 = arith.divf %185, %186 : vector<2x128xf32>
    %188 = math.tanh %182 : vector<2x128xf32>
    %189 = vector.extract_strided_slice %187 {offsets = [0, 0], sizes = [2, 32], strides = [1, 1]} : vector<2x128xf32> to vector<2x32xf32>
    %190 = vector.extract_strided_slice %187 {offsets = [0, 32], sizes = [2, 32], strides = [1, 1]} : vector<2x128xf32> to vector<2x32xf32>
    %191 = vector.extract_strided_slice %188 {offsets = [0, 64], sizes = [2, 32], strides = [1, 1]} : vector<2x128xf32> to vector<2x32xf32>
    %192 = vector.extract_strided_slice %187 {offsets = [0, 96], sizes = [2, 32], strides = [1, 1]} : vector<2x128xf32> to vector<2x32xf32>
    %193 = arith.mulf %190, %177 : vector<2x32xf32>
    %194 = arith.mulf %189, %191 : vector<2x32xf32>
    %195 = arith.addf %193, %194 : vector<2x32xf32>
    %196 = math.tanh %195 : vector<2x32xf32>
    %197 = arith.mulf %192, %196 : vector<2x32xf32>
    %198 = vector.extract_strided_slice %159 {offsets = [4, 0], sizes = [2, 128], strides = [1, 1]} : vector<16x128xf32> to vector<2x128xf32>
    %cst_38 = arith.constant dense<0.000000e+00> : vector<2x128xf32>
    %199 = tpu.matmul %197, %155, %cst_38 {dimension_numbers = #tpu.dot_dimension_numbers<[1], [0], [0], [1], [0, 0, 1, 1], [], []>} : vector<2x32xf32>, vector<32x128xf32>, vector<2x128xf32> -> vector<2x128xf32>
    %200 = arith.addf %198, %199 : vector<2x128xf32>
    %201 = arith.negf %200 : vector<2x128xf32>
    %202 = math.exp %201 : vector<2x128xf32>
    %cst_39 = arith.constant 1.000000e+00 : f32
    %203 = vector.broadcast %cst_39 : f32 to vector<2x128xf32>
    %204 = arith.addf %203, %202 : vector<2x128xf32>
    %205 = arith.divf %203, %204 : vector<2x128xf32>
    %206 = math.tanh %200 : vector<2x128xf32>
    %207 = vector.extract_strided_slice %205 {offsets = [0, 0], sizes = [2, 32], strides = [1, 1]} : vector<2x128xf32> to vector<2x32xf32>
    %208 = vector.extract_strided_slice %205 {offsets = [0, 32], sizes = [2, 32], strides = [1, 1]} : vector<2x128xf32> to vector<2x32xf32>
    %209 = vector.extract_strided_slice %206 {offsets = [0, 64], sizes = [2, 32], strides = [1, 1]} : vector<2x128xf32> to vector<2x32xf32>
    %210 = vector.extract_strided_slice %205 {offsets = [0, 96], sizes = [2, 32], strides = [1, 1]} : vector<2x128xf32> to vector<2x32xf32>
    %211 = arith.mulf %208, %195 : vector<2x32xf32>
    %212 = arith.mulf %207, %209 : vector<2x32xf32>
    %213 = arith.addf %211, %212 : vector<2x32xf32>
    %214 = math.tanh %213 : vector<2x32xf32>
    %215 = arith.mulf %210, %214 : vector<2x32xf32>
    %216 = vector.extract_strided_slice %159 {offsets = [6, 0], sizes = [2, 128], strides = [1, 1]} : vector<16x128xf32> to vector<2x128xf32>
    %cst_40 = arith.constant dense<0.000000e+00> : vector<2x128xf32>
    %217 = tpu.matmul %215, %155, %cst_40 {dimension_numbers = #tpu.dot_dimension_numbers<[1], [0], [0], [1], [0, 0, 1, 1], [], []>} : vector<2x32xf32>, vector<32x128xf32>, vector<2x128xf32> -> vector<2x128xf32>
    %218 = arith.addf %216, %217 : vector<2x128xf32>
    %219 = arith.negf %218 : vector<2x128xf32>
    %220 = math.exp %219 : vector<2x128xf32>
    %cst_41 = arith.constant 1.000000e+00 : f32
    %221 = vector.broadcast %cst_41 : f32 to vector<2x128xf32>
    %222 = arith.addf %221, %220 : vector<2x128xf32>
    %223 = arith.divf %221, %222 : vector<2x128xf32>
    %224 = math.tanh %218 : vector<2x128xf32>
    %225 = vector.extract_strided_slice %223 {offsets = [0, 0], sizes = [2, 32], strides = [1, 1]} : vector<2x128xf32> to vector<2x32xf32>
    %226 = vector.extract_strided_slice %223 {offsets = [0, 32], sizes = [2, 32], strides = [1, 1]} : vector<2x128xf32> to vector<2x32xf32>
    %227 = vector.extract_strided_slice %224 {offsets = [0, 64], sizes = [2, 32], strides = [1, 1]} : vector<2x128xf32> to vector<2x32xf32>
    %228 = vector.extract_strided_slice %223 {offsets = [0, 96], sizes = [2, 32], strides = [1, 1]} : vector<2x128xf32> to vector<2x32xf32>
    %229 = arith.mulf %226, %213 : vector<2x32xf32>
    %230 = arith.mulf %225, %227 : vector<2x32xf32>
    %231 = arith.addf %229, %230 : vector<2x32xf32>
    %232 = math.tanh %231 : vector<2x32xf32>
    %233 = arith.mulf %228, %232 : vector<2x32xf32>
    %234 = vector.extract_strided_slice %159 {offsets = [8, 0], sizes = [2, 128], strides = [1, 1]} : vector<16x128xf32> to vector<2x128xf32>
    %cst_42 = arith.constant dense<0.000000e+00> : vector<2x128xf32>
    %235 = tpu.matmul %233, %155, %cst_42 {dimension_numbers = #tpu.dot_dimension_numbers<[1], [0], [0], [1], [0, 0, 1, 1], [], []>} : vector<2x32xf32>, vector<32x128xf32>, vector<2x128xf32> -> vector<2x128xf32>
    %236 = arith.addf %234, %235 : vector<2x128xf32>
    %237 = arith.negf %236 : vector<2x128xf32>
    %238 = math.exp %237 : vector<2x128xf32>
    %cst_43 = arith.constant 1.000000e+00 : f32
    %239 = vector.broadcast %cst_43 : f32 to vector<2x128xf32>
    %240 = arith.addf %239, %238 : vector<2x128xf32>
    %241 = arith.divf %239, %240 : vector<2x128xf32>
    %242 = math.tanh %236 : vector<2x128xf32>
    %243 = vector.extract_strided_slice %241 {offsets = [0, 0], sizes = [2, 32], strides = [1, 1]} : vector<2x128xf32> to vector<2x32xf32>
    %244 = vector.extract_strided_slice %241 {offsets = [0, 32], sizes = [2, 32], strides = [1, 1]} : vector<2x128xf32> to vector<2x32xf32>
    %245 = vector.extract_strided_slice %242 {offsets = [0, 64], sizes = [2, 32], strides = [1, 1]} : vector<2x128xf32> to vector<2x32xf32>
    %246 = vector.extract_strided_slice %241 {offsets = [0, 96], sizes = [2, 32], strides = [1, 1]} : vector<2x128xf32> to vector<2x32xf32>
    %247 = arith.mulf %244, %231 : vector<2x32xf32>
    %248 = arith.mulf %243, %245 : vector<2x32xf32>
    %249 = arith.addf %247, %248 : vector<2x32xf32>
    %250 = math.tanh %249 : vector<2x32xf32>
    %251 = arith.mulf %246, %250 : vector<2x32xf32>
    %252 = vector.extract_strided_slice %159 {offsets = [10, 0], sizes = [2, 128], strides = [1, 1]} : vector<16x128xf32> to vector<2x128xf32>
    %cst_44 = arith.constant dense<0.000000e+00> : vector<2x128xf32>
    %253 = tpu.matmul %251, %155, %cst_44 {dimension_numbers = #tpu.dot_dimension_numbers<[1], [0], [0], [1], [0, 0, 1, 1], [], []>} : vector<2x32xf32>, vector<32x128xf32>, vector<2x128xf32> -> vector<2x128xf32>
    %254 = arith.addf %252, %253 : vector<2x128xf32>
    %255 = arith.negf %254 : vector<2x128xf32>
    %256 = math.exp %255 : vector<2x128xf32>
    %cst_45 = arith.constant 1.000000e+00 : f32
    %257 = vector.broadcast %cst_45 : f32 to vector<2x128xf32>
    %258 = arith.addf %257, %256 : vector<2x128xf32>
    %259 = arith.divf %257, %258 : vector<2x128xf32>
    %260 = math.tanh %254 : vector<2x128xf32>
    %261 = vector.extract_strided_slice %259 {offsets = [0, 0], sizes = [2, 32], strides = [1, 1]} : vector<2x128xf32> to vector<2x32xf32>
    %262 = vector.extract_strided_slice %259 {offsets = [0, 32], sizes = [2, 32], strides = [1, 1]} : vector<2x128xf32> to vector<2x32xf32>
    %263 = vector.extract_strided_slice %260 {offsets = [0, 64], sizes = [2, 32], strides = [1, 1]} : vector<2x128xf32> to vector<2x32xf32>
    %264 = vector.extract_strided_slice %259 {offsets = [0, 96], sizes = [2, 32], strides = [1, 1]} : vector<2x128xf32> to vector<2x32xf32>
    %265 = arith.mulf %262, %249 : vector<2x32xf32>
    %266 = arith.mulf %261, %263 : vector<2x32xf32>
    %267 = arith.addf %265, %266 : vector<2x32xf32>
    %268 = math.tanh %267 : vector<2x32xf32>
    %269 = arith.mulf %264, %268 : vector<2x32xf32>
    %270 = vector.extract_strided_slice %159 {offsets = [12, 0], sizes = [2, 128], strides = [1, 1]} : vector<16x128xf32> to vector<2x128xf32>
    %cst_46 = arith.constant dense<0.000000e+00> : vector<2x128xf32>
    %271 = tpu.matmul %269, %155, %cst_46 {dimension_numbers = #tpu.dot_dimension_numbers<[1], [0], [0], [1], [0, 0, 1, 1], [], []>} : vector<2x32xf32>, vector<32x128xf32>, vector<2x128xf32> -> vector<2x128xf32>
    %272 = arith.addf %270, %271 : vector<2x128xf32>
    %273 = arith.negf %272 : vector<2x128xf32>
    %274 = math.exp %273 : vector<2x128xf32>
    %cst_47 = arith.constant 1.000000e+00 : f32
    %275 = vector.broadcast %cst_47 : f32 to vector<2x128xf32>
    %276 = arith.addf %275, %274 : vector<2x128xf32>
    %277 = arith.divf %275, %276 : vector<2x128xf32>
    %278 = math.tanh %272 : vector<2x128xf32>
    %279 = vector.extract_strided_slice %277 {offsets = [0, 0], sizes = [2, 32], strides = [1, 1]} : vector<2x128xf32> to vector<2x32xf32>
    %280 = vector.extract_strided_slice %277 {offsets = [0, 32], sizes = [2, 32], strides = [1, 1]} : vector<2x128xf32> to vector<2x32xf32>
    %281 = vector.extract_strided_slice %278 {offsets = [0, 64], sizes = [2, 32], strides = [1, 1]} : vector<2x128xf32> to vector<2x32xf32>
    %282 = vector.extract_strided_slice %277 {offsets = [0, 96], sizes = [2, 32], strides = [1, 1]} : vector<2x128xf32> to vector<2x32xf32>
    %283 = arith.mulf %280, %267 : vector<2x32xf32>
    %284 = arith.mulf %279, %281 : vector<2x32xf32>
    %285 = arith.addf %283, %284 : vector<2x32xf32>
    %286 = math.tanh %285 : vector<2x32xf32>
    %287 = arith.mulf %282, %286 : vector<2x32xf32>
    %288 = vector.extract_strided_slice %159 {offsets = [14, 0], sizes = [2, 128], strides = [1, 1]} : vector<16x128xf32> to vector<2x128xf32>
    %cst_48 = arith.constant dense<0.000000e+00> : vector<2x128xf32>
    %289 = tpu.matmul %287, %155, %cst_48 {dimension_numbers = #tpu.dot_dimension_numbers<[1], [0], [0], [1], [0, 0, 1, 1], [], []>} : vector<2x32xf32>, vector<32x128xf32>, vector<2x128xf32> -> vector<2x128xf32>
    %290 = arith.addf %288, %289 : vector<2x128xf32>
    %291 = arith.negf %290 : vector<2x128xf32>
    %292 = math.exp %291 : vector<2x128xf32>
    %cst_49 = arith.constant 1.000000e+00 : f32
    %293 = vector.broadcast %cst_49 : f32 to vector<2x128xf32>
    %294 = arith.addf %293, %292 : vector<2x128xf32>
    %295 = arith.divf %293, %294 : vector<2x128xf32>
    %296 = math.tanh %290 : vector<2x128xf32>
    %297 = vector.extract_strided_slice %295 {offsets = [0, 0], sizes = [2, 32], strides = [1, 1]} : vector<2x128xf32> to vector<2x32xf32>
    %298 = vector.extract_strided_slice %295 {offsets = [0, 32], sizes = [2, 32], strides = [1, 1]} : vector<2x128xf32> to vector<2x32xf32>
    %299 = vector.extract_strided_slice %296 {offsets = [0, 64], sizes = [2, 32], strides = [1, 1]} : vector<2x128xf32> to vector<2x32xf32>
    %300 = vector.extract_strided_slice %295 {offsets = [0, 96], sizes = [2, 32], strides = [1, 1]} : vector<2x128xf32> to vector<2x32xf32>
    %301 = arith.mulf %298, %285 : vector<2x32xf32>
    %302 = arith.mulf %297, %299 : vector<2x32xf32>
    %303 = arith.addf %301, %302 : vector<2x32xf32>
    %304 = math.tanh %303 : vector<2x32xf32>
    %305 = arith.mulf %300, %304 : vector<2x32xf32>
    %306 = tpu.concatenate %179, %197, %215, %233, %251, %269, %287, %305 in 0 : vector<2x32xf32>, vector<2x32xf32>, vector<2x32xf32>, vector<2x32xf32>, vector<2x32xf32>, vector<2x32xf32>, vector<2x32xf32>, vector<2x32xf32> -> vector<16x32xf32>
    %c0_50 = arith.constant 0 : index
    %c0_51 = arith.constant 0 : index
    %307 = vector.load %arg7[%c0_50, %c0_51] : memref<32x128xf32, #tpu.memory_space<vmem>>, vector<32x128xf32>
    %c0_52 = arith.constant 0 : index
    %c0_53 = arith.constant 0 : index
    %308 = vector.load %arg8[%c0_52, %c0_53] : memref<32x128xf32, #tpu.memory_space<vmem>>, vector<32x128xf32>
    %c0_54 = arith.constant 0 : index
    %c0_55 = arith.constant 0 : index
    %309 = vector.load %arg9[%c0_54, %c0_55] : memref<1x128xf32, #tpu.memory_space<vmem>>, vector<1x128xf32>
    %cst_56 = arith.constant dense<0.000000e+00> : vector<16x128xf32>
    %310 = tpu.matmul %306, %307, %cst_56 {dimension_numbers = #tpu.dot_dimension_numbers<[1], [0], [0], [1], [0, 0, 1, 1], [], []>} : vector<16x32xf32>, vector<32x128xf32>, vector<16x128xf32> -> vector<16x128xf32>
    %311 = vector.broadcast %309 : vector<1x128xf32> to vector<16x128xf32>
    %312 = arith.addf %310, %311 : vector<16x128xf32>
    %cst_57 = arith.constant 0.000000e+00 : f32
    %313 = vector.broadcast %cst_57 : f32 to vector<2x32xf32>
    %cst_58 = arith.constant 0.000000e+00 : f32
    %314 = vector.broadcast %cst_58 : f32 to vector<2x32xf32>
    %315 = vector.extract_strided_slice %312 {offsets = [0, 0], sizes = [2, 128], strides = [1, 1]} : vector<16x128xf32> to vector<2x128xf32>
    %cst_59 = arith.constant dense<0.000000e+00> : vector<2x128xf32>
    %316 = tpu.matmul %313, %308, %cst_59 {dimension_numbers = #tpu.dot_dimension_numbers<[1], [0], [0], [1], [0, 0, 1, 1], [], []>} : vector<2x32xf32>, vector<32x128xf32>, vector<2x128xf32> -> vector<2x128xf32>
    %317 = arith.addf %315, %316 : vector<2x128xf32>
    %318 = arith.negf %317 : vector<2x128xf32>
    %319 = math.exp %318 : vector<2x128xf32>
    %cst_60 = arith.constant 1.000000e+00 : f32
    %320 = vector.broadcast %cst_60 : f32 to vector<2x128xf32>
    %321 = arith.addf %320, %319 : vector<2x128xf32>
    %322 = arith.divf %320, %321 : vector<2x128xf32>
    %323 = math.tanh %317 : vector<2x128xf32>
    %324 = vector.extract_strided_slice %322 {offsets = [0, 0], sizes = [2, 32], strides = [1, 1]} : vector<2x128xf32> to vector<2x32xf32>
    %325 = vector.extract_strided_slice %322 {offsets = [0, 32], sizes = [2, 32], strides = [1, 1]} : vector<2x128xf32> to vector<2x32xf32>
    %326 = vector.extract_strided_slice %323 {offsets = [0, 64], sizes = [2, 32], strides = [1, 1]} : vector<2x128xf32> to vector<2x32xf32>
    %327 = vector.extract_strided_slice %322 {offsets = [0, 96], sizes = [2, 32], strides = [1, 1]} : vector<2x128xf32> to vector<2x32xf32>
    %328 = arith.mulf %325, %314 : vector<2x32xf32>
    %329 = arith.mulf %324, %326 : vector<2x32xf32>
    %330 = arith.addf %328, %329 : vector<2x32xf32>
    %331 = math.tanh %330 : vector<2x32xf32>
    %332 = arith.mulf %327, %331 : vector<2x32xf32>
    %333 = vector.extract_strided_slice %312 {offsets = [2, 0], sizes = [2, 128], strides = [1, 1]} : vector<16x128xf32> to vector<2x128xf32>
    %cst_61 = arith.constant dense<0.000000e+00> : vector<2x128xf32>
    %334 = tpu.matmul %332, %308, %cst_61 {dimension_numbers = #tpu.dot_dimension_numbers<[1], [0], [0], [1], [0, 0, 1, 1], [], []>} : vector<2x32xf32>, vector<32x128xf32>, vector<2x128xf32> -> vector<2x128xf32>
    %335 = arith.addf %333, %334 : vector<2x128xf32>
    %336 = arith.negf %335 : vector<2x128xf32>
    %337 = math.exp %336 : vector<2x128xf32>
    %cst_62 = arith.constant 1.000000e+00 : f32
    %338 = vector.broadcast %cst_62 : f32 to vector<2x128xf32>
    %339 = arith.addf %338, %337 : vector<2x128xf32>
    %340 = arith.divf %338, %339 : vector<2x128xf32>
    %341 = math.tanh %335 : vector<2x128xf32>
    %342 = vector.extract_strided_slice %340 {offsets = [0, 0], sizes = [2, 32], strides = [1, 1]} : vector<2x128xf32> to vector<2x32xf32>
    %343 = vector.extract_strided_slice %340 {offsets = [0, 32], sizes = [2, 32], strides = [1, 1]} : vector<2x128xf32> to vector<2x32xf32>
    %344 = vector.extract_strided_slice %341 {offsets = [0, 64], sizes = [2, 32], strides = [1, 1]} : vector<2x128xf32> to vector<2x32xf32>
    %345 = vector.extract_strided_slice %340 {offsets = [0, 96], sizes = [2, 32], strides = [1, 1]} : vector<2x128xf32> to vector<2x32xf32>
    %346 = arith.mulf %343, %330 : vector<2x32xf32>
    %347 = arith.mulf %342, %344 : vector<2x32xf32>
    %348 = arith.addf %346, %347 : vector<2x32xf32>
    %349 = math.tanh %348 : vector<2x32xf32>
    %350 = arith.mulf %345, %349 : vector<2x32xf32>
    %351 = vector.extract_strided_slice %312 {offsets = [4, 0], sizes = [2, 128], strides = [1, 1]} : vector<16x128xf32> to vector<2x128xf32>
    %cst_63 = arith.constant dense<0.000000e+00> : vector<2x128xf32>
    %352 = tpu.matmul %350, %308, %cst_63 {dimension_numbers = #tpu.dot_dimension_numbers<[1], [0], [0], [1], [0, 0, 1, 1], [], []>} : vector<2x32xf32>, vector<32x128xf32>, vector<2x128xf32> -> vector<2x128xf32>
    %353 = arith.addf %351, %352 : vector<2x128xf32>
    %354 = arith.negf %353 : vector<2x128xf32>
    %355 = math.exp %354 : vector<2x128xf32>
    %cst_64 = arith.constant 1.000000e+00 : f32
    %356 = vector.broadcast %cst_64 : f32 to vector<2x128xf32>
    %357 = arith.addf %356, %355 : vector<2x128xf32>
    %358 = arith.divf %356, %357 : vector<2x128xf32>
    %359 = math.tanh %353 : vector<2x128xf32>
    %360 = vector.extract_strided_slice %358 {offsets = [0, 0], sizes = [2, 32], strides = [1, 1]} : vector<2x128xf32> to vector<2x32xf32>
    %361 = vector.extract_strided_slice %358 {offsets = [0, 32], sizes = [2, 32], strides = [1, 1]} : vector<2x128xf32> to vector<2x32xf32>
    %362 = vector.extract_strided_slice %359 {offsets = [0, 64], sizes = [2, 32], strides = [1, 1]} : vector<2x128xf32> to vector<2x32xf32>
    %363 = vector.extract_strided_slice %358 {offsets = [0, 96], sizes = [2, 32], strides = [1, 1]} : vector<2x128xf32> to vector<2x32xf32>
    %364 = arith.mulf %361, %348 : vector<2x32xf32>
    %365 = arith.mulf %360, %362 : vector<2x32xf32>
    %366 = arith.addf %364, %365 : vector<2x32xf32>
    %367 = math.tanh %366 : vector<2x32xf32>
    %368 = arith.mulf %363, %367 : vector<2x32xf32>
    %369 = vector.extract_strided_slice %312 {offsets = [6, 0], sizes = [2, 128], strides = [1, 1]} : vector<16x128xf32> to vector<2x128xf32>
    %cst_65 = arith.constant dense<0.000000e+00> : vector<2x128xf32>
    %370 = tpu.matmul %368, %308, %cst_65 {dimension_numbers = #tpu.dot_dimension_numbers<[1], [0], [0], [1], [0, 0, 1, 1], [], []>} : vector<2x32xf32>, vector<32x128xf32>, vector<2x128xf32> -> vector<2x128xf32>
    %371 = arith.addf %369, %370 : vector<2x128xf32>
    %372 = arith.negf %371 : vector<2x128xf32>
    %373 = math.exp %372 : vector<2x128xf32>
    %cst_66 = arith.constant 1.000000e+00 : f32
    %374 = vector.broadcast %cst_66 : f32 to vector<2x128xf32>
    %375 = arith.addf %374, %373 : vector<2x128xf32>
    %376 = arith.divf %374, %375 : vector<2x128xf32>
    %377 = math.tanh %371 : vector<2x128xf32>
    %378 = vector.extract_strided_slice %376 {offsets = [0, 0], sizes = [2, 32], strides = [1, 1]} : vector<2x128xf32> to vector<2x32xf32>
    %379 = vector.extract_strided_slice %376 {offsets = [0, 32], sizes = [2, 32], strides = [1, 1]} : vector<2x128xf32> to vector<2x32xf32>
    %380 = vector.extract_strided_slice %377 {offsets = [0, 64], sizes = [2, 32], strides = [1, 1]} : vector<2x128xf32> to vector<2x32xf32>
    %381 = vector.extract_strided_slice %376 {offsets = [0, 96], sizes = [2, 32], strides = [1, 1]} : vector<2x128xf32> to vector<2x32xf32>
    %382 = arith.mulf %379, %366 : vector<2x32xf32>
    %383 = arith.mulf %378, %380 : vector<2x32xf32>
    %384 = arith.addf %382, %383 : vector<2x32xf32>
    %385 = math.tanh %384 : vector<2x32xf32>
    %386 = arith.mulf %381, %385 : vector<2x32xf32>
    %387 = vector.extract_strided_slice %312 {offsets = [8, 0], sizes = [2, 128], strides = [1, 1]} : vector<16x128xf32> to vector<2x128xf32>
    %cst_67 = arith.constant dense<0.000000e+00> : vector<2x128xf32>
    %388 = tpu.matmul %386, %308, %cst_67 {dimension_numbers = #tpu.dot_dimension_numbers<[1], [0], [0], [1], [0, 0, 1, 1], [], []>} : vector<2x32xf32>, vector<32x128xf32>, vector<2x128xf32> -> vector<2x128xf32>
    %389 = arith.addf %387, %388 : vector<2x128xf32>
    %390 = arith.negf %389 : vector<2x128xf32>
    %391 = math.exp %390 : vector<2x128xf32>
    %cst_68 = arith.constant 1.000000e+00 : f32
    %392 = vector.broadcast %cst_68 : f32 to vector<2x128xf32>
    %393 = arith.addf %392, %391 : vector<2x128xf32>
    %394 = arith.divf %392, %393 : vector<2x128xf32>
    %395 = math.tanh %389 : vector<2x128xf32>
    %396 = vector.extract_strided_slice %394 {offsets = [0, 0], sizes = [2, 32], strides = [1, 1]} : vector<2x128xf32> to vector<2x32xf32>
    %397 = vector.extract_strided_slice %394 {offsets = [0, 32], sizes = [2, 32], strides = [1, 1]} : vector<2x128xf32> to vector<2x32xf32>
    %398 = vector.extract_strided_slice %395 {offsets = [0, 64], sizes = [2, 32], strides = [1, 1]} : vector<2x128xf32> to vector<2x32xf32>
    %399 = vector.extract_strided_slice %394 {offsets = [0, 96], sizes = [2, 32], strides = [1, 1]} : vector<2x128xf32> to vector<2x32xf32>
    %400 = arith.mulf %397, %384 : vector<2x32xf32>
    %401 = arith.mulf %396, %398 : vector<2x32xf32>
    %402 = arith.addf %400, %401 : vector<2x32xf32>
    %403 = math.tanh %402 : vector<2x32xf32>
    %404 = arith.mulf %399, %403 : vector<2x32xf32>
    %405 = vector.extract_strided_slice %312 {offsets = [10, 0], sizes = [2, 128], strides = [1, 1]} : vector<16x128xf32> to vector<2x128xf32>
    %cst_69 = arith.constant dense<0.000000e+00> : vector<2x128xf32>
    %406 = tpu.matmul %404, %308, %cst_69 {dimension_numbers = #tpu.dot_dimension_numbers<[1], [0], [0], [1], [0, 0, 1, 1], [], []>} : vector<2x32xf32>, vector<32x128xf32>, vector<2x128xf32> -> vector<2x128xf32>
    %407 = arith.addf %405, %406 : vector<2x128xf32>
    %408 = arith.negf %407 : vector<2x128xf32>
    %409 = math.exp %408 : vector<2x128xf32>
    %cst_70 = arith.constant 1.000000e+00 : f32
    %410 = vector.broadcast %cst_70 : f32 to vector<2x128xf32>
    %411 = arith.addf %410, %409 : vector<2x128xf32>
    %412 = arith.divf %410, %411 : vector<2x128xf32>
    %413 = math.tanh %407 : vector<2x128xf32>
    %414 = vector.extract_strided_slice %412 {offsets = [0, 0], sizes = [2, 32], strides = [1, 1]} : vector<2x128xf32> to vector<2x32xf32>
    %415 = vector.extract_strided_slice %412 {offsets = [0, 32], sizes = [2, 32], strides = [1, 1]} : vector<2x128xf32> to vector<2x32xf32>
    %416 = vector.extract_strided_slice %413 {offsets = [0, 64], sizes = [2, 32], strides = [1, 1]} : vector<2x128xf32> to vector<2x32xf32>
    %417 = vector.extract_strided_slice %412 {offsets = [0, 96], sizes = [2, 32], strides = [1, 1]} : vector<2x128xf32> to vector<2x32xf32>
    %418 = arith.mulf %415, %402 : vector<2x32xf32>
    %419 = arith.mulf %414, %416 : vector<2x32xf32>
    %420 = arith.addf %418, %419 : vector<2x32xf32>
    %421 = math.tanh %420 : vector<2x32xf32>
    %422 = arith.mulf %417, %421 : vector<2x32xf32>
    %423 = vector.extract_strided_slice %312 {offsets = [12, 0], sizes = [2, 128], strides = [1, 1]} : vector<16x128xf32> to vector<2x128xf32>
    %cst_71 = arith.constant dense<0.000000e+00> : vector<2x128xf32>
    %424 = tpu.matmul %422, %308, %cst_71 {dimension_numbers = #tpu.dot_dimension_numbers<[1], [0], [0], [1], [0, 0, 1, 1], [], []>} : vector<2x32xf32>, vector<32x128xf32>, vector<2x128xf32> -> vector<2x128xf32>
    %425 = arith.addf %423, %424 : vector<2x128xf32>
    %426 = arith.negf %425 : vector<2x128xf32>
    %427 = math.exp %426 : vector<2x128xf32>
    %cst_72 = arith.constant 1.000000e+00 : f32
    %428 = vector.broadcast %cst_72 : f32 to vector<2x128xf32>
    %429 = arith.addf %428, %427 : vector<2x128xf32>
    %430 = arith.divf %428, %429 : vector<2x128xf32>
    %431 = math.tanh %425 : vector<2x128xf32>
    %432 = vector.extract_strided_slice %430 {offsets = [0, 0], sizes = [2, 32], strides = [1, 1]} : vector<2x128xf32> to vector<2x32xf32>
    %433 = vector.extract_strided_slice %430 {offsets = [0, 32], sizes = [2, 32], strides = [1, 1]} : vector<2x128xf32> to vector<2x32xf32>
    %434 = vector.extract_strided_slice %431 {offsets = [0, 64], sizes = [2, 32], strides = [1, 1]} : vector<2x128xf32> to vector<2x32xf32>
    %435 = vector.extract_strided_slice %430 {offsets = [0, 96], sizes = [2, 32], strides = [1, 1]} : vector<2x128xf32> to vector<2x32xf32>
    %436 = arith.mulf %433, %420 : vector<2x32xf32>
    %437 = arith.mulf %432, %434 : vector<2x32xf32>
    %438 = arith.addf %436, %437 : vector<2x32xf32>
    %439 = math.tanh %438 : vector<2x32xf32>
    %440 = arith.mulf %435, %439 : vector<2x32xf32>
    %441 = vector.extract_strided_slice %312 {offsets = [14, 0], sizes = [2, 128], strides = [1, 1]} : vector<16x128xf32> to vector<2x128xf32>
    %cst_73 = arith.constant dense<0.000000e+00> : vector<2x128xf32>
    %442 = tpu.matmul %440, %308, %cst_73 {dimension_numbers = #tpu.dot_dimension_numbers<[1], [0], [0], [1], [0, 0, 1, 1], [], []>} : vector<2x32xf32>, vector<32x128xf32>, vector<2x128xf32> -> vector<2x128xf32>
    %443 = arith.addf %441, %442 : vector<2x128xf32>
    %444 = arith.negf %443 : vector<2x128xf32>
    %445 = math.exp %444 : vector<2x128xf32>
    %cst_74 = arith.constant 1.000000e+00 : f32
    %446 = vector.broadcast %cst_74 : f32 to vector<2x128xf32>
    %447 = arith.addf %446, %445 : vector<2x128xf32>
    %448 = arith.divf %446, %447 : vector<2x128xf32>
    %449 = math.tanh %443 : vector<2x128xf32>
    %450 = vector.extract_strided_slice %448 {offsets = [0, 0], sizes = [2, 32], strides = [1, 1]} : vector<2x128xf32> to vector<2x32xf32>
    %451 = vector.extract_strided_slice %448 {offsets = [0, 32], sizes = [2, 32], strides = [1, 1]} : vector<2x128xf32> to vector<2x32xf32>
    %452 = vector.extract_strided_slice %449 {offsets = [0, 64], sizes = [2, 32], strides = [1, 1]} : vector<2x128xf32> to vector<2x32xf32>
    %453 = vector.extract_strided_slice %448 {offsets = [0, 96], sizes = [2, 32], strides = [1, 1]} : vector<2x128xf32> to vector<2x32xf32>
    %454 = arith.mulf %451, %438 : vector<2x32xf32>
    %455 = arith.mulf %450, %452 : vector<2x32xf32>
    %456 = arith.addf %454, %455 : vector<2x32xf32>
    %457 = math.tanh %456 : vector<2x32xf32>
    %458 = arith.mulf %453, %457 : vector<2x32xf32>
    %459 = vector.shape_cast %152 : vector<2x32xf32> to vector<1x2x32xf32>
    %460 = vector.shape_cast %305 : vector<2x32xf32> to vector<1x2x32xf32>
    %461 = vector.shape_cast %458 : vector<2x32xf32> to vector<1x2x32xf32>
    %462 = vector.shape_cast %150 : vector<2x32xf32> to vector<1x2x32xf32>
    %463 = vector.shape_cast %303 : vector<2x32xf32> to vector<1x2x32xf32>
    %464 = vector.shape_cast %456 : vector<2x32xf32> to vector<1x2x32xf32>
    %465 = tpu.concatenate %459, %460, %461, %462, %463, %464 in 0 : vector<1x2x32xf32>, vector<1x2x32xf32>, vector<1x2x32xf32>, vector<1x2x32xf32>, vector<1x2x32xf32>, vector<1x2x32xf32> -> vector<6x2x32xf32>
    %c0_75 = arith.constant 0 : index
    %c0_76 = arith.constant 0 : index
    %c0_77 = arith.constant 0 : index
    %466 = vector.load %arg10[%c0_75, %c0_76, %c0_77] : memref<6x2x32xf32, #tpu.memory_space<vmem>>, vector<6x2x32xf32>
    tpu.vector_store %arg10[%c0_75, %c0_76, %c0_77], %465 {strides = array<i32>} : memref<6x2x32xf32, #tpu.memory_space<vmem>>, vector<6x2x32xf32>,
    return
  }
}

</mosaic_0001>

<llo_original>
// kernel: encoder_forward.1
$region0: #{encoder_forward.1}
  #allocation0 [shape = 'u32[]', space=smem, size = 0x4, offset = 0x4, fixed_abs, tag = 'smem constant byte address 0x4 - core index']
  #allocation1 [shape = 'u32[144,128]{1,0:T(1,128)}', space=vmem, size = 0x12000, scoped, tag = 'internal scratch']
  %s0 = inlined_call_operand.vmem [shape: f32[16,6], index: 0, kind: input, shape index: {}]
  %s1 = inlined_call_operand.hbm [shape: f32[6,128], index: 1, kind: input, shape index: {}]
  %s2 = inlined_call_operand.vmem [shape: f32[32,128], index: 2, kind: input, shape index: {}]
  %s3 = inlined_call_operand.vmem [shape: f32[1,128], index: 3, kind: input, shape index: {}]
  %s4 = inlined_call_operand.vmem [shape: f32[32,128], index: 4, kind: input, shape index: {}]
  %s5 = inlined_call_operand.vmem [shape: f32[32,128], index: 5, kind: input, shape index: {}]
  %s6 = inlined_call_operand.vmem [shape: f32[1,128], index: 6, kind: input, shape index: {}]
  %s7 = inlined_call_operand.hbm [shape: f32[32,128], index: 7, kind: input, shape index: {}]
  %s8 = inlined_call_operand.hbm [shape: f32[32,128], index: 8, kind: input, shape index: {}]
  %s9 = inlined_call_operand.vmem [shape: f32[1,128], index: 9, kind: input, shape index: {}]
  %s10 = inlined_call_operand.vmem [shape: f32[6,2,32], index: 10, kind: output, shape index: {}]
  %s11 = sld [smem:[#allocation0]]
  $region62: #{encoder_forward.1} parent=0
    _
  %s13 = ssub.s32 1, %s11
  %s14 = scalar_select 0, %s13, %s11
  $region1: #{encoder_forward.1} parent=0
    #allocation2 [shape = 'u8[4096]{0}', space=vmem, size = 0x1000, scoped, tag = 'input window, operand 1, single buffered']
    #allocation3 [shape = 's32[1]{0}', space=sflag, size = 0x4, scoped, tag = 'scoped memory for encoder_forward.1']
    #allocation4 [shape = 'u8[16384]{0}', space=vmem, size = 0x4000, scoped, tag = 'input window, operand 7, single buffered']
    #allocation5 [shape = 's32[1]{0}', space=sflag, size = 0x4, scoped, tag = 'scoped memory for encoder_forward.1']
    #allocation6 [shape = 'u8[16384]{0}', space=vmem, size = 0x4000, scoped, tag = 'input window, operand 8, single buffered']
    %15 = vsyncpa [#allocation3], 0
    %16 = vsyncpa [#allocation5], 0
    // Predicated region
    $region2: #{encoder_forward.1} parent=1 // pred_check
      _
    $region3: #{encoder_forward.1} parent=1 // pred_check_branch
      %18 = sbr.rel (0) target = $region5
    $region4: #{encoder_forward.1} parent=1 // pred_region
      _
    $region5: #{encoder_forward.1} parent=1 // pred_fallthru
      _
    // Predicated region
    $region6: #{encoder_forward.1} parent=1 // pred_check
      _
    $region7: #{encoder_forward.1} parent=1 // pred_check_branch
      %20 = sbr.rel (0) target = $region9
    $region8: #{encoder_forward.1} parent=1 // pred_region
      %s22 = ssub.s32 128, 128
      %23 = vsyncadd [#allocation3], %s22
      %s25 = sshll.u32 [#allocation2], 4
      %s26 = int_to_ptr.vmem [resolvable:$true] %s25
      %28 = dma.hbm_to_vmem [thread:$0]  %s1, 128, %s26, [#allocation3]
    $region9: #{encoder_forward.1} parent=1 // pred_fallthru
      _
    // Predicated region
    $region10: #{encoder_forward.1} parent=1 // pred_check
      _
    $region11: #{encoder_forward.1} parent=1 // pred_check_branch
      %30 = sbr.rel (0) target = $region13
    $region12: #{encoder_forward.1} parent=1 // pred_region
      _
    $region13: #{encoder_forward.1} parent=1 // pred_fallthru
      _
    // Predicated region
    $region14: #{encoder_forward.1} parent=1 // pred_check
      _
    $region15: #{encoder_forward.1} parent=1 // pred_check_branch
      %32 = sbr.rel (0) target = $region17
    $region16: #{encoder_forward.1} parent=1 // pred_region
      _
    $region17: #{encoder_forward.1} parent=1 // pred_fallthru
      _
    // Predicated region
    $region18: #{encoder_forward.1} parent=1 // pred_check
      _
    $region19: #{encoder_forward.1} parent=1 // pred_check_branch
      %34 = sbr.rel (0) target = $region21
    $region20: #{encoder_forward.1} parent=1 // pred_region
      _
    $region21: #{encoder_forward.1} parent=1 // pred_fallthru
      _
    // Predicated region
    $region22: #{encoder_forward.1} parent=1 // pred_check
      _
    $region23: #{encoder_forward.1} parent=1 // pred_check_branch
      %36 = sbr.rel (0) target = $region25
    $region24: #{encoder_forward.1} parent=1 // pred_region
      _
    $region25: #{encoder_forward.1} parent=1 // pred_fallthru
      _
    // Predicated region
    $region26: #{encoder_forward.1} parent=1 // pred_check
      _
    $region27: #{encoder_forward.1} parent=1 // pred_check_branch
      %38 = sbr.rel (0) target = $region29
    $region28: #{encoder_forward.1} parent=1 // pred_region
      _
    $region29: #{encoder_forward.1} parent=1 // pred_fallthru
      _
    // Predicated region
    $region30: #{encoder_forward.1} parent=1 // pred_check
      _
    $region31: #{encoder_forward.1} parent=1 // pred_check_branch
      %40 = sbr.rel (0) target = $region33
    $region32: #{encoder_forward.1} parent=1 // pred_region
      %s42 = ssub.s32 512, 512
      %43 = vsyncadd [#allocation5], %s42
      %s44 = sshll.u32 [#allocation4], 4
      %s45 = int_to_ptr.vmem [resolvable:$true] %s44
      %50 = dma.hbm_to_vmem [thread:$0]  %s7, 512, %s45, [#allocation5], 128, 128, 8
    $region33: #{encoder_forward.1} parent=1 // pred_fallthru
      _
    // Predicated region
    $region34: #{encoder_forward.1} parent=1 // pred_check
      _
    $region35: #{encoder_forward.1} parent=1 // pred_check_branch
      %52 = sbr.rel (0) target = $region37
    $region36: #{encoder_forward.1} parent=1 // pred_region
      %s54 = ssub.s32 512, 512
      %55 = vsyncadd [#allocation5], %s54
      %s56 = sshll.u32 [#allocation6], 4
      %s57 = int_to_ptr.vmem [resolvable:$true] %s56
      %62 = dma.hbm_to_vmem [thread:$0]  %s8, 512, %s57, [#allocation5], 128, 128, 8
    $region37: #{encoder_forward.1} parent=1 // pred_fallthru
      _
    // Predicated region
    $region38: #{encoder_forward.1} parent=1 // pred_check
      _
    $region39: #{encoder_forward.1} parent=1 // pred_check_branch
      %64 = sbr.rel (0) target = $region41
    $region40: #{encoder_forward.1} parent=1 // pred_region
      _
    $region41: #{encoder_forward.1} parent=1 // pred_fallthru
      _
    // Predicated region
    $region42: #{encoder_forward.1} parent=1 // pred_check
      _
    $region43: #{encoder_forward.1} parent=1 // pred_check_branch
      %66 = sbr.rel (0) target = $region45
    $region44: #{encoder_forward.1} parent=1 // pred_region
      %67 = dma.done [#allocation3], 128
    $region45: #{encoder_forward.1} parent=1 // pred_fallthru
      _
    // Predicated region
    $region46: #{encoder_forward.1} parent=1 // pred_check
      _
    $region47: #{encoder_forward.1} parent=1 // pred_check_branch
      %69 = sbr.rel (0) target = $region49
    $region48: #{encoder_forward.1} parent=1 // pred_region
      %70 = dma.done [#allocation5], 512
    $region49: #{encoder_forward.1} parent=1 // pred_fallthru
      _
    // Predicated region
    $region50: #{encoder_forward.1} parent=1 // pred_check
      _
    $region51: #{encoder_forward.1} parent=1 // pred_check_branch
      %72 = sbr.rel (0) target = $region53
    $region52: #{encoder_forward.1} parent=1 // pred_region
      %73 = dma.done [#allocation5], 512
    $region53: #{encoder_forward.1} parent=1 // pred_fallthru
      _
    %v74 = vld [vmem:[%s0] sm:$0xff]
    %v75 = vld [vmem:[%s0 + $0x8] sm:$0xff]
    %v76 = vld [vmem:[#allocation2] sm:$0x3f]
    %v77 = vld [vmem:[%s2] sm:$0xff]
    %v78 = vld [vmem:[%s2 + $0x8] sm:$0xff]
    %v79 = vld [vmem:[%s2 + $0x10] sm:$0xff]
    %v80 = vld [vmem:[%s2 + $0x18] sm:$0xff]
    %v81 = vld [vmem:[%s3] sm:$0x1]
    %v83 = vlaneseq
    %v84 = vshrl.u32 %v83, 7
    %v85 = vsub.s32 0, %v84
    %v86 = vrot.slane %v81, %v85
    %vm88 = vcmask 48128
    %v90 = vsel %vm88, %v74, 0
    %v93 = vsel %vm88, %v75, 0
    %vm95 = vcmask 1045504
    %v97 = vsel %vm95, %v76, 0
    %99 = vmatprep.subr.mxu0 0.0
    %100 = vmatpush1.msra.mxu0 %v97
    %101 = vmatprep.subr.mxu0 0.0
    %102 = vmatpush1.msra.mxu0 0.0
    %103 = vmatprep.subr.mxu0 0.0
    %104 = vmatpush1.msra.mxu0 0.0
    %105 = vmatprep.subr.mxu0 0.0
    %106 = vmatpush1.msra.mxu0 0.0
    %107 = vmatprep.subr.mxu0 0.0
    %108 = vmatpush1.msra.mxu0 0.0
    %109 = vmatprep.subr.mxu0 0.0
    %110 = vmatpush1.msra.mxu0 0.0
    %111 = vmatprep.subr.mxu0 0.0
    %112 = vmatpush1.msra.mxu0 0.0
    %113 = vmatprep.subr.mxu0 0.0
    %114 = vmatpush1.msra.mxu0 0.0
    %115 = vmatprep.subr.mxu0 0.0
    %116 = vmatpush1.msra.mxu0 0.0
    %117 = vmatprep.subr.mxu0 0.0
    %118 = vmatpush1.msra.mxu0 0.0
    %119 = vmatprep.subr.mxu0 0.0
    %120 = vmatpush1.msra.mxu0 0.0
    %121 = vmatprep.subr.mxu0 0.0
    %122 = vmatpush1.msra.mxu0 0.0
    %123 = vmatprep.subr.mxu0 0.0
    %124 = vmatpush1.msra.mxu0 0.0
    %125 = vmatprep.subr.mxu0 0.0
    %126 = vmatpush1.msra.mxu0 0.0
    %127 = vmatprep.subr.mxu0 0.0
    %128 = vmatpush1.msra.mxu0 0.0
    %129 = vmatprep.subr.mxu0 0.0
    %130 = vmatpush1.msra.mxu0 0.0
    %131 = vmatprep.subr.mxu0 0.0
    %132 = vmatpush1.msra.mxu0 0.0
    %133 = vmatprep.subr.mxu0 0.0
    %134 = vmatpush1.msra.mxu0 0.0
    %135 = vmatprep.subr.mxu0 0.0
    %136 = vmatpush1.msra.mxu0 0.0
    %137 = vmatprep.subr.mxu0 0.0
    %138 = vmatpush1.msra.mxu0 0.0
    %139 = vmatprep.subr.mxu0 0.0
    %140 = vmatpush1.msra.mxu0 0.0
    %141 = vmatprep.subr.mxu0 0.0
    %142 = vmatpush1.msra.mxu0 0.0
    %143 = vmatprep.subr.mxu0 0.0
    %144 = vmatpush1.msra.mxu0 0.0
    %145 = vmatprep.subr.mxu0 0.0
    %146 = vmatpush1.msra.mxu0 0.0
    %147 = vmatprep.subr.mxu0 0.0
    %148 = vmatpush1.msra.mxu0 0.0
    %149 = vmatprep.subr.mxu0 0.0
    %150 = vmatpush1.msra.mxu0 0.0
    %151 = vmatprep.subr.mxu0 0.0
    %152 = vmatpush1.msra.mxu0 0.0
    %153 = vmatprep.subr.mxu0 0.0
    %154 = vmatpush1.msra.mxu0 0.0
    %155 = vmatprep.subr.mxu0 0.0
    %156 = vmatpush1.msra.mxu0 0.0
    %157 = vmatprep.subr.mxu0 0.0
    %158 = vmatpush1.msra.mxu0 0.0
    %159 = vmatprep.subr.mxu0 0.0
    %160 = vmatpush1.msra.mxu0 0.0
    %161 = vmatprep.subr.mxu0 0.0
    %162 = vmatpush1.msra.mxu0 0.0
    %163 = vmatprep.mubr.f32.mxu0 0.0
    %164 = vmatmul.mubr.f32.gmra.mrb[0].mxu0 %v90
    %v165 = vpop.f32.mrb[0].mxu0
    %v166 = vadd.f32 %v86, %v165
    %v167 = vpop.f32.mrb[0].mxu0
    %168 = vmatprep.mubr.f32.mxu0 0.0
    %169 = vmatmul.mubr.f32.gmra.mrb[0].mxu0 %v93
    %v170 = vpop.f32.mrb[0].mxu0
    %v171 = vadd.f32 %v86, %v170
    %v172 = vpop.f32.mrb[0].mxu0
    %173 = vdwg.mxu0
    %vm174 = vcmask 261120
    %v176 = vsel %vm174, 0.0, 0
    %178 = vmatprep.subr.mxu0 0.0
    %179 = vmatpush1.msra.mxu0 %v77
    %180 = vmatprep.subr.mxu0 0.0
    %181 = vmatpush1.msra.mxu0 %v78
    %182 = vmatprep.subr.mxu0 0.0
    %183 = vmatpush1.msra.mxu0 %v79
    %184 = vmatprep.subr.mxu0 0.0
    %185 = vmatpush1.msra.mxu0 %v80
    %186 = vmatprep.subr.mxu0 0.0
    %187 = vmatpush1.msra.mxu0 0.0
    %188 = vmatprep.subr.mxu0 0.0
    %189 = vmatpush1.msra.mxu0 0.0
    %190 = vmatprep.subr.mxu0 0.0
    %191 = vmatpush1.msra.mxu0 0.0
    %192 = vmatprep.subr.mxu0 0.0
    %193 = vmatpush1.msra.mxu0 0.0
    %194 = vmatprep.subr.mxu0 0.0
    %195 = vmatpush1.msra.mxu0 0.0
    %196 = vmatprep.subr.mxu0 0.0
    %197 = vmatpush1.msra.mxu0 0.0
    %198 = vmatprep.subr.mxu0 0.0
    %199 = vmatpush1.msra.mxu0 0.0
    %200 = vmatprep.subr.mxu0 0.0
    %201 = vmatpush1.msra.mxu0 0.0
    %202 = vmatprep.subr.mxu0 0.0
    %203 = vmatpush1.msra.mxu0 0.0
    %204 = vmatprep.subr.mxu0 0.0
    %205 = vmatpush1.msra.mxu0 0.0
    %206 = vmatprep.subr.mxu0 0.0
    %207 = vmatpush1.msra.mxu0 0.0
    %208 = vmatprep.subr.mxu0 0.0
    %209 = vmatpush1.msra.mxu0 0.0
    %210 = vmatprep.subr.mxu0 0.0
    %211 = vmatpush1.msra.mxu0 0.0
    %212 = vmatprep.subr.mxu0 0.0
    %213 = vmatpush1.msra.mxu0 0.0
    %214 = vmatprep.subr.mxu0 0.0
    %215 = vmatpush1.msra.mxu0 0.0
    %216 = vmatprep.subr.mxu0 0.0
    %217 = vmatpush1.msra.mxu0 0.0
    %218 = vmatprep.subr.mxu0 0.0
    %219 = vmatpush1.msra.mxu0 0.0
    %220 = vmatprep.subr.mxu0 0.0
    %221 = vmatpush1.msra.mxu0 0.0
    %222 = vmatprep.subr.mxu0 0.0
    %223 = vmatpush1.msra.mxu0 0.0
    %224 = vmatprep.subr.mxu0 0.0
    %225 = vmatpush1.msra.mxu0 0.0
    %226 = vmatprep.subr.mxu0 0.0
    %227 = vmatpush1.msra.mxu0 0.0
    %228 = vmatprep.subr.mxu0 0.0
    %229 = vmatpush1.msra.mxu0 0.0
    %230 = vmatprep.subr.mxu0 0.0
    %231 = vmatpush1.msra.mxu0 0.0
    %232 = vmatprep.subr.mxu0 0.0
    %233 = vmatpush1.msra.mxu0 0.0
    %234 = vmatprep.subr.mxu0 0.0
    %235 = vmatpush1.msra.mxu0 0.0
    %236 = vmatprep.subr.mxu0 0.0
    %237 = vmatpush1.msra.mxu0 0.0
    %238 = vmatprep.subr.mxu0 0.0
    %239 = vmatpush1.msra.mxu0 0.0
    %240 = vmatprep.subr.mxu0 0.0
    %241 = vmatpush1.msra.mxu0 0.0
    %242 = vmatprep.mubr.f32.mxu0 0.0
    %243 = vmatmul.mubr.f32.gmra.mrb[0].mxu0 %v176
    %v244 = vpop.f32.mrb[0].mxu0
    %v245 = vadd.f32 0.0, %v244
    %v246 = vpop.f32.mrb[0].mxu0
    %247 = vdwg.mxu0
    %v248 = vadd.f32 %v166, %v245
    %v249 = vxor.u32 %v248, 2147483648
    %v250 = vmul.f32 %v249, 1.442695
    %v251 = vpow.pop %v250
    %v252 = vadd.f32 %v251, 1.0
    %v253 = vrcp.pop %v252
    %v254 = vmul.f32 1.0, %v253
    %v255 = vtanh.pop %v248
    %v256 = vmul.f32 %v254, 0.0
    %258 = vrot.lane.b32.xlu0 %v255, 64
    %v259 = vpop.permute.xlu0 %258
    %v261 = vmul.f32 %v254, %v259
    %263 = vrot.lane.b32.xlu0 %v261, 32
    %v264 = vpop.permute.xlu0 %263
    %v266 = vadd.f32 %v256, %v264
    %v267 = vtanh.pop %v266
    %269 = vrot.lane.b32.xlu0 %v267, 64
    %v270 = vpop.permute.xlu0 %269
    %v272 = vmul.f32 %v254, %v270
    %274 = vrot.lane.b32.xlu0 %v272, 32
    %v275 = vpop.permute.xlu0 %274
    %v276 = vsel %vm174, %v275, 0
    %278 = vmatprep.subr.mxu0 0.0
    %279 = vmatpush1.msra.mxu0 %v77
    %280 = vmatprep.subr.mxu0 0.0
    %281 = vmatpush1.msra.mxu0 %v78
    %282 = vmatprep.subr.mxu0 0.0
    %283 = vmatpush1.msra.mxu0 %v79
    %284 = vmatprep.subr.mxu0 0.0
    %285 = vmatpush1.msra.mxu0 %v80
    %286 = vmatprep.subr.mxu0 0.0
    %287 = vmatpush1.msra.mxu0 0.0
    %288 = vmatprep.subr.mxu0 0.0
    %289 = vmatpush1.msra.mxu0 0.0
    %290 = vmatprep.subr.mxu0 0.0
    %291 = vmatpush1.msra.mxu0 0.0
    %292 = vmatprep.subr.mxu0 0.0
    %293 = vmatpush1.msra.mxu0 0.0
    %294 = vmatprep.subr.mxu0 0.0
    %295 = vmatpush1.msra.mxu0 0.0
    %296 = vmatprep.subr.mxu0 0.0
    %297 = vmatpush1.msra.mxu0 0.0
    %298 = vmatprep.subr.mxu0 0.0
    %299 = vmatpush1.msra.mxu0 0.0
    %300 = vmatprep.subr.mxu0 0.0
    %301 = vmatpush1.msra.mxu0 0.0
    %302 = vmatprep.subr.mxu0 0.0
    %303 = vmatpush1.msra.mxu0 0.0
    %304 = vmatprep.subr.mxu0 0.0
    %305 = vmatpush1.msra.mxu0 0.0
    %306 = vmatprep.subr.mxu0 0.0
    %307 = vmatpush1.msra.mxu0 0.0
    %308 = vmatprep.subr.mxu0 0.0
    %309 = vmatpush1.msra.mxu0 0.0
    %310 = vmatprep.subr.mxu0 0.0
    %311 = vmatpush1.msra.mxu0 0.0
    %312 = vmatprep.subr.mxu0 0.0
    %313 = vmatpush1.msra.mxu0 0.0
    %314 = vmatprep.subr.mxu0 0.0
    %315 = vmatpush1.msra.mxu0 0.0
    %316 = vmatprep.subr.mxu0 0.0
    %317 = vmatpush1.msra.mxu0 0.0
    %318 = vmatprep.subr.mxu0 0.0
    %319 = vmatpush1.msra.mxu0 0.0
    %320 = vmatprep.subr.mxu0 0.0
    %321 = vmatpush1.msra.mxu0 0.0
    %322 = vmatprep.subr.mxu0 0.0
    %323 = vmatpush1.msra.mxu0 0.0
    %324 = vmatprep.subr.mxu0 0.0
    %325 = vmatpush1.msra.mxu0 0.0
    %326 = vmatprep.subr.mxu0 0.0
    %327 = vmatpush1.msra.mxu0 0.0
    %328 = vmatprep.subr.mxu0 0.0
    %329 = vmatpush1.msra.mxu0 0.0
    %330 = vmatprep.subr.mxu0 0.0
    %331 = vmatpush1.msra.mxu0 0.0
    %332 = vmatprep.subr.mxu0 0.0
    %333 = vmatpush1.msra.mxu0 0.0
    %334 = vmatprep.subr.mxu0 0.0
    %335 = vmatpush1.msra.mxu0 0.0
    %336 = vmatprep.subr.mxu0 0.0
    %337 = vmatpush1.msra.mxu0 0.0
    %338 = vmatprep.subr.mxu0 0.0
    %339 = vmatpush1.msra.mxu0 0.0
    %340 = vmatprep.subr.mxu0 0.0
    %341 = vmatpush1.msra.mxu0 0.0
    %342 = vmatprep.mubr.f32.mxu0 0.0
    %343 = vmatmul.mubr.f32.gmra.mrb[0].mxu0 %v276
    %v344 = vpop.f32.mrb[0].mxu0
    %v345 = vadd.f32 0.0, %v344
    %v346 = vpop.f32.mrb[0].mxu0
    %347 = vdwg.mxu0
    %v349 = vrot.slane %v345, 6
    %v351 = vadd.f32 %v166, %v349
    %v352 = vxor.u32 %v351, 2147483648
    %v353 = vmul.f32 %v352, 1.442695
    %v354 = vpow.pop %v353
    %v355 = vadd.f32 %v354, 1.0
    %v356 = vrcp.pop %v355
    %v357 = vmul.f32 1.0, %v356
    %v358 = vtanh.pop %v351
    %v360 = vrot.slane %v266, 6
    %v362 = vmul.f32 %v357, %v360
    %364 = vrot.lane.b32.xlu0 %v358, 64
    %v365 = vpop.permute.xlu0 %364
    %v367 = vmul.f32 %v357, %v365
    %369 = vrot.lane.b32.xlu0 %v367, 32
    %v370 = vpop.permute.xlu0 %369
    %v372 = vadd.f32 %v362, %v370
    %v373 = vtanh.pop %v372
    %375 = vrot.lane.b32.xlu0 %v373, 64
    %v376 = vpop.permute.xlu0 %375
    %v378 = vmul.f32 %v357, %v376
    %v380 = vrot.slane %v378, 2
    %381 = vrot.lane.b32.xlu0 %v380, 32
    %v382 = vpop.permute.xlu0 %381
    %v383 = vsel %vm174, %v382, 0
    %385 = vmatprep.subr.mxu0 0.0
    %386 = vmatpush1.msra.mxu0 %v77
    %387 = vmatprep.subr.mxu0 0.0
    %388 = vmatpush1.msra.mxu0 %v78
    %389 = vmatprep.subr.mxu0 0.0
    %390 = vmatpush1.msra.mxu0 %v79
    %391 = vmatprep.subr.mxu0 0.0
    %392 = vmatpush1.msra.mxu0 %v80
    %393 = vmatprep.subr.mxu0 0.0
    %394 = vmatpush1.msra.mxu0 0.0
    %395 = vmatprep.subr.mxu0 0.0
    %396 = vmatpush1.msra.mxu0 0.0
    %397 = vmatprep.subr.mxu0 0.0
    %398 = vmatpush1.msra.mxu0 0.0
    %399 = vmatprep.subr.mxu0 0.0
    %400 = vmatpush1.msra.mxu0 0.0
    %401 = vmatprep.subr.mxu0 0.0
    %402 = vmatpush1.msra.mxu0 0.0
    %403 = vmatprep.subr.mxu0 0.0
    %404 = vmatpush1.msra.mxu0 0.0
    %405 = vmatprep.subr.mxu0 0.0
    %406 = vmatpush1.msra.mxu0 0.0
    %407 = vmatprep.subr.mxu0 0.0
    %408 = vmatpush1.msra.mxu0 0.0
    %409 = vmatprep.subr.mxu0 0.0
    %410 = vmatpush1.msra.mxu0 0.0
    %411 = vmatprep.subr.mxu0 0.0
    %412 = vmatpush1.msra.mxu0 0.0
    %413 = vmatprep.subr.mxu0 0.0
    %414 = vmatpush1.msra.mxu0 0.0
    %415 = vmatprep.subr.mxu0 0.0
    %416 = vmatpush1.msra.mxu0 0.0
    %417 = vmatprep.subr.mxu0 0.0
    %418 = vmatpush1.msra.mxu0 0.0
    %419 = vmatprep.subr.mxu0 0.0
    %420 = vmatpush1.msra.mxu0 0.0
    %421 = vmatprep.subr.mxu0 0.0
    %422 = vmatpush1.msra.mxu0 0.0
    %423 = vmatprep.subr.mxu0 0.0
    %424 = vmatpush1.msra.mxu0 0.0
    %425 = vmatprep.subr.mxu0 0.0
    %426 = vmatpush1.msra.mxu0 0.0
    %427 = vmatprep.subr.mxu0 0.0
    %428 = vmatpush1.msra.mxu0 0.0
    %429 = vmatprep.subr.mxu0 0.0
    %430 = vmatpush1.msra.mxu0 0.0
    %431 = vmatprep.subr.mxu0 0.0
    %432 = vmatpush1.msra.mxu0 0.0
    %433 = vmatprep.subr.mxu0 0.0
    %434 = vmatpush1.msra.mxu0 0.0
    %435 = vmatprep.subr.mxu0 0.0
    %436 = vmatpush1.msra.mxu0 0.0
    %437 = vmatprep.subr.mxu0 0.0
    %438 = vmatpush1.msra.mxu0 0.0
    %439 = vmatprep.subr.mxu0 0.0
    %440 = vmatpush1.msra.mxu0 0.0
    %441 = vmatprep.subr.mxu0 0.0
    %442 = vmatpush1.msra.mxu0 0.0
    %443 = vmatprep.subr.mxu0 0.0
    %444 = vmatpush1.msra.mxu0 0.0
    %445 = vmatprep.subr.mxu0 0.0
    %446 = vmatpush1.msra.mxu0 0.0
    %447 = vmatprep.subr.mxu0 0.0
    %448 = vmatpush1.msra.mxu0 0.0
    %449 = vmatprep.mubr.f32.mxu0 0.0
    %450 = vmatmul.mubr.f32.gmra.mrb[0].mxu0 %v383
    %v451 = vpop.f32.mrb[0].mxu0
    %v452 = vadd.f32 0.0, %v451
    %v453 = vpop.f32.mrb[0].mxu0
    %454 = vdwg.mxu0
    %v456 = vrot.slane %v452, 4
    %v458 = vadd.f32 %v166, %v456
    %v459 = vxor.u32 %v458, 2147483648
    %v460 = vmul.f32 %v459, 1.442695
    %v461 = vpow.pop %v460
    %v462 = vadd.f32 %v461, 1.0
    %v463 = vrcp.pop %v462
    %v464 = vmul.f32 1.0, %v463
    %v465 = vtanh.pop %v458
    %v467 = vrot.slane %v372, 6
    %v469 = vmul.f32 %v464, %v467
    %471 = vrot.lane.b32.xlu0 %v465, 64
    %v472 = vpop.permute.xlu0 %471
    %v474 = vmul.f32 %v464, %v472
    %476 = vrot.lane.b32.xlu0 %v474, 32
    %v477 = vpop.permute.xlu0 %476
    %v479 = vadd.f32 %v469, %v477
    %v480 = vtanh.pop %v479
    %482 = vrot.lane.b32.xlu0 %v480, 64
    %v483 = vpop.permute.xlu0 %482
    %v485 = vmul.f32 %v464, %v483
    %v487 = vrot.slane %v485, 4
    %488 = vrot.lane.b32.xlu0 %v487, 32
    %v489 = vpop.permute.xlu0 %488
    %v490 = vsel %vm174, %v489, 0
    %492 = vmatprep.subr.mxu0 0.0
    %493 = vmatpush1.msra.mxu0 %v77
    %494 = vmatprep.subr.mxu0 0.0
    %495 = vmatpush1.msra.mxu0 %v78
    %496 = vmatprep.subr.mxu0 0.0
    %497 = vmatpush1.msra.mxu0 %v79
    %498 = vmatprep.subr.mxu0 0.0
    %499 = vmatpush1.msra.mxu0 %v80
    %500 = vmatprep.subr.mxu0 0.0
    %501 = vmatpush1.msra.mxu0 0.0
    %502 = vmatprep.subr.mxu0 0.0
    %503 = vmatpush1.msra.mxu0 0.0
    %504 = vmatprep.subr.mxu0 0.0
    %505 = vmatpush1.msra.mxu0 0.0
    %506 = vmatprep.subr.mxu0 0.0
    %507 = vmatpush1.msra.mxu0 0.0
    %508 = vmatprep.subr.mxu0 0.0
    %509 = vmatpush1.msra.mxu0 0.0
    %510 = vmatprep.subr.mxu0 0.0
    %511 = vmatpush1.msra.mxu0 0.0
    %512 = vmatprep.subr.mxu0 0.0
    %513 = vmatpush1.msra.mxu0 0.0
    %514 = vmatprep.subr.mxu0 0.0
    %515 = vmatpush1.msra.mxu0 0.0
    %516 = vmatprep.subr.mxu0 0.0
    %517 = vmatpush1.msra.mxu0 0.0
    %518 = vmatprep.subr.mxu0 0.0
    %519 = vmatpush1.msra.mxu0 0.0
    %520 = vmatprep.subr.mxu0 0.0
    %521 = vmatpush1.msra.mxu0 0.0
    %522 = vmatprep.subr.mxu0 0.0
    %523 = vmatpush1.msra.mxu0 0.0
    %524 = vmatprep.subr.mxu0 0.0
    %525 = vmatpush1.msra.mxu0 0.0
    %526 = vmatprep.subr.mxu0 0.0
    %527 = vmatpush1.msra.mxu0 0.0
    %528 = vmatprep.subr.mxu0 0.0
    %529 = vmatpush1.msra.mxu0 0.0
    %530 = vmatprep.subr.mxu0 0.0
    %531 = vmatpush1.msra.mxu0 0.0
    %532 = vmatprep.subr.mxu0 0.0
    %533 = vmatpush1.msra.mxu0 0.0
    %534 = vmatprep.subr.mxu0 0.0
    %535 = vmatpush1.msra.mxu0 0.0
    %536 = vmatprep.subr.mxu0 0.0
    %537 = vmatpush1.msra.mxu0 0.0
    %538 = vmatprep.subr.mxu0 0.0
    %539 = vmatpush1.msra.mxu0 0.0
    %540 = vmatprep.subr.mxu0 0.0
    %541 = vmatpush1.msra.mxu0 0.0
    %542 = vmatprep.subr.mxu0 0.0
    %543 = vmatpush1.msra.mxu0 0.0
    %544 = vmatprep.subr.mxu0 0.0
    %545 = vmatpush1.msra.mxu0 0.0
    %546 = vmatprep.subr.mxu0 0.0
    %547 = vmatpush1.msra.mxu0 0.0
    %548 = vmatprep.subr.mxu0 0.0
    %549 = vmatpush1.msra.mxu0 0.0
    %550 = vmatprep.subr.mxu0 0.0
    %551 = vmatpush1.msra.mxu0 0.0
    %552 = vmatprep.subr.mxu0 0.0
    %553 = vmatpush1.msra.mxu0 0.0
    %554 = vmatprep.subr.mxu0 0.0
    %555 = vmatpush1.msra.mxu0 0.0
    %556 = vmatprep.mubr.f32.mxu0 0.0
    %557 = vmatmul.mubr.f32.gmra.mrb[0].mxu0 %v490
    %v558 = vpop.f32.mrb[0].mxu0
    %v559 = vadd.f32 0.0, %v558
    %v560 = vpop.f32.mrb[0].mxu0
    %561 = vdwg.mxu0
    %v563 = vrot.slane %v559, 2
    %v565 = vadd.f32 %v166, %v563
    %v566 = vxor.u32 %v565, 2147483648
    %v567 = vmul.f32 %v566, 1.442695
    %v568 = vpow.pop %v567
    %v569 = vadd.f32 %v568, 1.0
    %v570 = vrcp.pop %v569
    %v571 = vmul.f32 1.0, %v570
    %v572 = vtanh.pop %v565
    %v574 = vrot.slane %v479, 6
    %v576 = vmul.f32 %v571, %v574
    %578 = vrot.lane.b32.xlu0 %v572, 64
    %v579 = vpop.permute.xlu0 %578
    %v581 = vmul.f32 %v571, %v579
    %583 = vrot.lane.b32.xlu0 %v581, 32
    %v584 = vpop.permute.xlu0 %583
    %v586 = vadd.f32 %v576, %v584
    %v587 = vtanh.pop %v586
    %589 = vrot.lane.b32.xlu0 %v587, 64
    %v590 = vpop.permute.xlu0 %589
    %v592 = vmul.f32 %v571, %v590
    %v594 = vrot.slane %v592, 6
    %595 = vrot.lane.b32.xlu0 %v594, 32
    %v596 = vpop.permute.xlu0 %595
    %v597 = vsel %vm174, %v596, 0
    %599 = vmatprep.subr.mxu0 0.0
    %600 = vmatpush1.msra.mxu0 %v77
    %601 = vmatprep.subr.mxu0 0.0
    %602 = vmatpush1.msra.mxu0 %v78
    %603 = vmatprep.subr.mxu0 0.0
    %604 = vmatpush1.msra.mxu0 %v79
    %605 = vmatprep.subr.mxu0 0.0
    %606 = vmatpush1.msra.mxu0 %v80
    %607 = vmatprep.subr.mxu0 0.0
    %608 = vmatpush1.msra.mxu0 0.0
    %609 = vmatprep.subr.mxu0 0.0
    %610 = vmatpush1.msra.mxu0 0.0
    %611 = vmatprep.subr.mxu0 0.0
    %612 = vmatpush1.msra.mxu0 0.0
    %613 = vmatprep.subr.mxu0 0.0
    %614 = vmatpush1.msra.mxu0 0.0
    %615 = vmatprep.subr.mxu0 0.0
    %616 = vmatpush1.msra.mxu0 0.0
    %617 = vmatprep.subr.mxu0 0.0
    %618 = vmatpush1.msra.mxu0 0.0
    %619 = vmatprep.subr.mxu0 0.0
    %620 = vmatpush1.msra.mxu0 0.0
    %621 = vmatprep.subr.mxu0 0.0
    %622 = vmatpush1.msra.mxu0 0.0
    %623 = vmatprep.subr.mxu0 0.0
    %624 = vmatpush1.msra.mxu0 0.0
    %625 = vmatprep.subr.mxu0 0.0
    %626 = vmatpush1.msra.mxu0 0.0
    %627 = vmatprep.subr.mxu0 0.0
    %628 = vmatpush1.msra.mxu0 0.0
    %629 = vmatprep.subr.mxu0 0.0
    %630 = vmatpush1.msra.mxu0 0.0
    %631 = vmatprep.subr.mxu0 0.0
    %632 = vmatpush1.msra.mxu0 0.0
    %633 = vmatprep.subr.mxu0 0.0
    %634 = vmatpush1.msra.mxu0 0.0
    %635 = vmatprep.subr.mxu0 0.0
    %636 = vmatpush1.msra.mxu0 0.0
    %637 = vmatprep.subr.mxu0 0.0
    %638 = vmatpush1.msra.mxu0 0.0
    %639 = vmatprep.subr.mxu0 0.0
    %640 = vmatpush1.msra.mxu0 0.0
    %641 = vmatprep.subr.mxu0 0.0
    %642 = vmatpush1.msra.mxu0 0.0
    %643 = vmatprep.subr.mxu0 0.0
    %644 = vmatpush1.msra.mxu0 0.0
    %645 = vmatprep.subr.mxu0 0.0
    %646 = vmatpush1.msra.mxu0 0.0
    %647 = vmatprep.subr.mxu0 0.0
    %648 = vmatpush1.msra.mxu0 0.0
    %649 = vmatprep.subr.mxu0 0.0
    %650 = vmatpush1.msra.mxu0 0.0
    %651 = vmatprep.subr.mxu0 0.0
    %652 = vmatpush1.msra.mxu0 0.0
    %653 = vmatprep.subr.mxu0 0.0
    %654 = vmatpush1.msra.mxu0 0.0
    %655 = vmatprep.subr.mxu0 0.0
    %656 = vmatpush1.msra.mxu0 0.0
    %657 = vmatprep.subr.mxu0 0.0
    %658 = vmatpush1.msra.mxu0 0.0
    %659 = vmatprep.subr.mxu0 0.0
    %660 = vmatpush1.msra.mxu0 0.0
    %661 = vmatprep.subr.mxu0 0.0
    %662 = vmatpush1.msra.mxu0 0.0
    %663 = vmatprep.mubr.f32.mxu0 0.0
    %664 = vmatmul.mubr.f32.gmra.mrb[0].mxu0 %v597
    %v665 = vpop.f32.mrb[0].mxu0
    %v666 = vadd.f32 0.0, %v665
    %v667 = vpop.f32.mrb[0].mxu0
    %668 = vdwg.mxu0
    %v669 = vadd.f32 %v171, %v666
    %v670 = vxor.u32 %v669, 2147483648
    %v671 = vmul.f32 %v670, 1.442695
    %v672 = vpow.pop %v671
    %v673 = vadd.f32 %v672, 1.0
    %v674 = vrcp.pop %v673
    %v675 = vmul.f32 1.0, %v674
    %v676 = vtanh.pop %v669
    %v678 = vrot.slane %v586, 6
    %v680 = vmul.f32 %v675, %v678
    %682 = vrot.lane.b32.xlu0 %v676, 64
    %v683 = vpop.permute.xlu0 %682
    %v685 = vmul.f32 %v675, %v683
    %687 = vrot.lane.b32.xlu0 %v685, 32
    %v688 = vpop.permute.xlu0 %687
    %v690 = vadd.f32 %v680, %v688
    %v691 = vtanh.pop %v690
    %693 = vrot.lane.b32.xlu0 %v691, 64
    %v694 = vpop.permute.xlu0 %693
    %v696 = vmul.f32 %v675, %v694
    %698 = vrot.lane.b32.xlu0 %v696, 32
    %v699 = vpop.permute.xlu0 %698
    %v700 = vsel %vm174, %v699, 0
    %702 = vmatprep.subr.mxu0 0.0
    %703 = vmatpush1.msra.mxu0 %v77
    %704 = vmatprep.subr.mxu0 0.0
    %705 = vmatpush1.msra.mxu0 %v78
    %706 = vmatprep.subr.mxu0 0.0
    %707 = vmatpush1.msra.mxu0 %v79
    %708 = vmatprep.subr.mxu0 0.0
    %709 = vmatpush1.msra.mxu0 %v80
    %710 = vmatprep.subr.mxu0 0.0
    %711 = vmatpush1.msra.mxu0 0.0
    %712 = vmatprep.subr.mxu0 0.0
    %713 = vmatpush1.msra.mxu0 0.0
    %714 = vmatprep.subr.mxu0 0.0
    %715 = vmatpush1.msra.mxu0 0.0
    %716 = vmatprep.subr.mxu0 0.0
    %717 = vmatpush1.msra.mxu0 0.0
    %718 = vmatprep.subr.mxu0 0.0
    %719 = vmatpush1.msra.mxu0 0.0
    %720 = vmatprep.subr.mxu0 0.0
    %721 = vmatpush1.msra.mxu0 0.0
    %722 = vmatprep.subr.mxu0 0.0
    %723 = vmatpush1.msra.mxu0 0.0
    %724 = vmatprep.subr.mxu0 0.0
    %725 = vmatpush1.msra.mxu0 0.0
    %726 = vmatprep.subr.mxu0 0.0
    %727 = vmatpush1.msra.mxu0 0.0
    %728 = vmatprep.subr.mxu0 0.0
    %729 = vmatpush1.msra.mxu0 0.0
    %730 = vmatprep.subr.mxu0 0.0
    %731 = vmatpush1.msra.mxu0 0.0
    %732 = vmatprep.subr.mxu0 0.0
    %733 = vmatpush1.msra.mxu0 0.0
    %734 = vmatprep.subr.mxu0 0.0
    %735 = vmatpush1.msra.mxu0 0.0
    %736 = vmatprep.subr.mxu0 0.0
    %737 = vmatpush1.msra.mxu0 0.0
    %738 = vmatprep.subr.mxu0 0.0
    %739 = vmatpush1.msra.mxu0 0.0
    %740 = vmatprep.subr.mxu0 0.0
    %741 = vmatpush1.msra.mxu0 0.0
    %742 = vmatprep.subr.mxu0 0.0
    %743 = vmatpush1.msra.mxu0 0.0
    %744 = vmatprep.subr.mxu0 0.0
    %745 = vmatpush1.msra.mxu0 0.0
    %746 = vmatprep.subr.mxu0 0.0
    %747 = vmatpush1.msra.mxu0 0.0
    %748 = vmatprep.subr.mxu0 0.0
    %749 = vmatpush1.msra.mxu0 0.0
    %750 = vmatprep.subr.mxu0 0.0
    %751 = vmatpush1.msra.mxu0 0.0
    %752 = vmatprep.subr.mxu0 0.0
    %753 = vmatpush1.msra.mxu0 0.0
    %754 = vmatprep.subr.mxu0 0.0
    %755 = vmatpush1.msra.mxu0 0.0
    %756 = vmatprep.subr.mxu0 0.0
    %757 = vmatpush1.msra.mxu0 0.0
    %758 = vmatprep.subr.mxu0 0.0
    %759 = vmatpush1.msra.mxu0 0.0
    %760 = vmatprep.subr.mxu0 0.0
    %761 = vmatpush1.msra.mxu0 0.0
    %762 = vmatprep.subr.mxu0 0.0
    %763 = vmatpush1.msra.mxu0 0.0
    %764 = vmatprep.subr.mxu0 0.0
    %765 = vmatpush1.msra.mxu0 0.0
    %766 = vmatprep.mubr.f32.mxu0 0.0
    %767 = vmatmul.mubr.f32.gmra.mrb[0].mxu0 %v700
    %v768 = vpop.f32.mrb[0].mxu0
    %v769 = vadd.f32 0.0, %v768
    %v770 = vpop.f32.mrb[0].mxu0
    %771 = vdwg.mxu0
    %v773 = vrot.slane %v769, 6
    %v775 = vadd.f32 %v171, %v773
    %v776 = vxor.u32 %v775, 2147483648
    %v777 = vmul.f32 %v776, 1.442695
    %v778 = vpow.pop %v777
    %v779 = vadd.f32 %v778, 1.0
    %v780 = vrcp.pop %v779
    %v781 = vmul.f32 1.0, %v780
    %v782 = vtanh.pop %v775
    %v784 = vrot.slane %v690, 6
    %v786 = vmul.f32 %v781, %v784
    %788 = vrot.lane.b32.xlu0 %v782, 64
    %v789 = vpop.permute.xlu0 %788
    %v791 = vmul.f32 %v781, %v789
    %793 = vrot.lane.b32.xlu0 %v791, 32
    %v794 = vpop.permute.xlu0 %793
    %v796 = vadd.f32 %v786, %v794
    %v797 = vtanh.pop %v796
    %799 = vrot.lane.b32.xlu0 %v797, 64
    %v800 = vpop.permute.xlu0 %799
    %v802 = vmul.f32 %v781, %v800
    %v804 = vrot.slane %v802, 2
    %805 = vrot.lane.b32.xlu0 %v804, 32
    %v806 = vpop.permute.xlu0 %805
    %v807 = vsel %vm174, %v806, 0
    %809 = vmatprep.subr.mxu0 0.0
    %810 = vmatpush1.msra.mxu0 %v77
    %811 = vmatprep.subr.mxu0 0.0
    %812 = vmatpush1.msra.mxu0 %v78
    %813 = vmatprep.subr.mxu0 0.0
    %814 = vmatpush1.msra.mxu0 %v79
    %815 = vmatprep.subr.mxu0 0.0
    %816 = vmatpush1.msra.mxu0 %v80
    %817 = vmatprep.subr.mxu0 0.0
    %818 = vmatpush1.msra.mxu0 0.0
    %819 = vmatprep.subr.mxu0 0.0
    %820 = vmatpush1.msra.mxu0 0.0
    %821 = vmatprep.subr.mxu0 0.0
    %822 = vmatpush1.msra.mxu0 0.0
    %823 = vmatprep.subr.mxu0 0.0
    %824 = vmatpush1.msra.mxu0 0.0
    %825 = vmatprep.subr.mxu0 0.0
    %826 = vmatpush1.msra.mxu0 0.0
    %827 = vmatprep.subr.mxu0 0.0
    %828 = vmatpush1.msra.mxu0 0.0
    %829 = vmatprep.subr.mxu0 0.0
    %830 = vmatpush1.msra.mxu0 0.0
    %831 = vmatprep.subr.mxu0 0.0
    %832 = vmatpush1.msra.mxu0 0.0
    %833 = vmatprep.subr.mxu0 0.0
    %834 = vmatpush1.msra.mxu0 0.0
    %835 = vmatprep.subr.mxu0 0.0
    %836 = vmatpush1.msra.mxu0 0.0
    %837 = vmatprep.subr.mxu0 0.0
    %838 = vmatpush1.msra.mxu0 0.0
    %839 = vmatprep.subr.mxu0 0.0
    %840 = vmatpush1.msra.mxu0 0.0
    %841 = vmatprep.subr.mxu0 0.0
    %842 = vmatpush1.msra.mxu0 0.0
    %843 = vmatprep.subr.mxu0 0.0
    %844 = vmatpush1.msra.mxu0 0.0
    %845 = vmatprep.subr.mxu0 0.0
    %846 = vmatpush1.msra.mxu0 0.0
    %847 = vmatprep.subr.mxu0 0.0
    %848 = vmatpush1.msra.mxu0 0.0
    %849 = vmatprep.subr.mxu0 0.0
    %850 = vmatpush1.msra.mxu0 0.0
    %851 = vmatprep.subr.mxu0 0.0
    %852 = vmatpush1.msra.mxu0 0.0
    %853 = vmatprep.subr.mxu0 0.0
    %854 = vmatpush1.msra.mxu0 0.0
    %855 = vmatprep.subr.mxu0 0.0
    %856 = vmatpush1.msra.mxu0 0.0
    %857 = vmatprep.subr.mxu0 0.0
    %858 = vmatpush1.msra.mxu0 0.0
    %859 = vmatprep.subr.mxu0 0.0
    %860 = vmatpush1.msra.mxu0 0.0
    %861 = vmatprep.subr.mxu0 0.0
    %862 = vmatpush1.msra.mxu0 0.0
    %863 = vmatprep.subr.mxu0 0.0
    %864 = vmatpush1.msra.mxu0 0.0
    %865 = vmatprep.subr.mxu0 0.0
    %866 = vmatpush1.msra.mxu0 0.0
    %867 = vmatprep.subr.mxu0 0.0
    %868 = vmatpush1.msra.mxu0 0.0
    %869 = vmatprep.subr.mxu0 0.0
    %870 = vmatpush1.msra.mxu0 0.0
    %871 = vmatprep.subr.mxu0 0.0
    %872 = vmatpush1.msra.mxu0 0.0
    %873 = vmatprep.mubr.f32.mxu0 0.0
    %874 = vmatmul.mubr.f32.gmra.mrb[0].mxu0 %v807
    %v875 = vpop.f32.mrb[0].mxu0
    %v876 = vadd.f32 0.0, %v875
    %v877 = vpop.f32.mrb[0].mxu0
    %878 = vdwg.mxu0
    %v880 = vrot.slane %v876, 4
    %v882 = vadd.f32 %v171, %v880
    %v883 = vxor.u32 %v882, 2147483648
    %v884 = vmul.f32 %v883, 1.442695
    %v885 = vpow.pop %v884
    %v886 = vadd.f32 %v885, 1.0
    %v887 = vrcp.pop %v886
    %v888 = vmul.f32 1.0, %v887
    %v889 = vtanh.pop %v882
    %v891 = vrot.slane %v796, 6
    %v893 = vmul.f32 %v888, %v891
    %895 = vrot.lane.b32.xlu0 %v889, 64
    %v896 = vpop.permute.xlu0 %895
    %v898 = vmul.f32 %v888, %v896
    %900 = vrot.lane.b32.xlu0 %v898, 32
    %v901 = vpop.permute.xlu0 %900
    %v903 = vadd.f32 %v893, %v901
    %v904 = vtanh.pop %v903
    %906 = vrot.lane.b32.xlu0 %v904, 64
    %v907 = vpop.permute.xlu0 %906
    %v909 = vmul.f32 %v888, %v907
    %v911 = vrot.slane %v909, 4
    %912 = vrot.lane.b32.xlu0 %v911, 32
    %v913 = vpop.permute.xlu0 %912
    %v914 = vsel %vm174, %v913, 0
    %916 = vmatprep.subr.mxu0 0.0
    %917 = vmatpush1.msra.mxu0 %v77
    %918 = vmatprep.subr.mxu0 0.0
    %919 = vmatpush1.msra.mxu0 %v78
    %920 = vmatprep.subr.mxu0 0.0
    %921 = vmatpush1.msra.mxu0 %v79
    %922 = vmatprep.subr.mxu0 0.0
    %923 = vmatpush1.msra.mxu0 %v80
    %924 = vmatprep.subr.mxu0 0.0
    %925 = vmatpush1.msra.mxu0 0.0
    %926 = vmatprep.subr.mxu0 0.0
    %927 = vmatpush1.msra.mxu0 0.0
    %928 = vmatprep.subr.mxu0 0.0
    %929 = vmatpush1.msra.mxu0 0.0
    %930 = vmatprep.subr.mxu0 0.0
    %931 = vmatpush1.msra.mxu0 0.0
    %932 = vmatprep.subr.mxu0 0.0
    %933 = vmatpush1.msra.mxu0 0.0
    %934 = vmatprep.subr.mxu0 0.0
    %935 = vmatpush1.msra.mxu0 0.0
    %936 = vmatprep.subr.mxu0 0.0
    %937 = vmatpush1.msra.mxu0 0.0
    %938 = vmatprep.subr.mxu0 0.0
    %939 = vmatpush1.msra.mxu0 0.0
    %940 = vmatprep.subr.mxu0 0.0
    %941 = vmatpush1.msra.mxu0 0.0
    %942 = vmatprep.subr.mxu0 0.0
    %943 = vmatpush1.msra.mxu0 0.0
    %944 = vmatprep.subr.mxu0 0.0
    %945 = vmatpush1.msra.mxu0 0.0
    %946 = vmatprep.subr.mxu0 0.0
    %947 = vmatpush1.msra.mxu0 0.0
    %948 = vmatprep.subr.mxu0 0.0
    %949 = vmatpush1.msra.mxu0 0.0
    %950 = vmatprep.subr.mxu0 0.0
    %951 = vmatpush1.msra.mxu0 0.0
    %952 = vmatprep.subr.mxu0 0.0
    %953 = vmatpush1.msra.mxu0 0.0
    %954 = vmatprep.subr.mxu0 0.0
    %955 = vmatpush1.msra.mxu0 0.0
    %956 = vmatprep.subr.mxu0 0.0
    %957 = vmatpush1.msra.mxu0 0.0
    %958 = vmatprep.subr.mxu0 0.0
    %959 = vmatpush1.msra.mxu0 0.0
    %960 = vmatprep.subr.mxu0 0.0
    %961 = vmatpush1.msra.mxu0 0.0
    %962 = vmatprep.subr.mxu0 0.0
    %963 = vmatpush1.msra.mxu0 0.0
    %964 = vmatprep.subr.mxu0 0.0
    %965 = vmatpush1.msra.mxu0 0.0
    %966 = vmatprep.subr.mxu0 0.0
    %967 = vmatpush1.msra.mxu0 0.0
    %968 = vmatprep.subr.mxu0 0.0
    %969 = vmatpush1.msra.mxu0 0.0
    %970 = vmatprep.subr.mxu0 0.0
    %971 = vmatpush1.msra.mxu0 0.0
    %972 = vmatprep.subr.mxu0 0.0
    %973 = vmatpush1.msra.mxu0 0.0
    %974 = vmatprep.subr.mxu0 0.0
    %975 = vmatpush1.msra.mxu0 0.0
    %976 = vmatprep.subr.mxu0 0.0
    %977 = vmatpush1.msra.mxu0 0.0
    %978 = vmatprep.subr.mxu0 0.0
    %979 = vmatpush1.msra.mxu0 0.0
    %980 = vmatprep.mubr.f32.mxu0 0.0
    %981 = vmatmul.mubr.f32.gmra.mrb[0].mxu0 %v914
    %v982 = vpop.f32.mrb[0].mxu0
    %v983 = vadd.f32 0.0, %v982
    %v984 = vpop.f32.mrb[0].mxu0
    %985 = vdwg.mxu0
    %v987 = vrot.slane %v983, 2
    %v989 = vadd.f32 %v171, %v987
    %v990 = vxor.u32 %v989, 2147483648
    %v991 = vmul.f32 %v990, 1.442695
    %v992 = vpow.pop %v991
    %v993 = vadd.f32 %v992, 1.0
    %v994 = vrcp.pop %v993
    %v995 = vmul.f32 1.0, %v994
    %v996 = vtanh.pop %v989
    %v998 = vrot.slane %v903, 6
    %v1000 = vmul.f32 %v995, %v998
    %1002 = vrot.lane.b32.xlu0 %v996, 64
    %v1003 = vpop.permute.xlu0 %1002
    %v1005 = vmul.f32 %v995, %v1003
    %1007 = vrot.lane.b32.xlu0 %v1005, 32
    %v1008 = vpop.permute.xlu0 %1007
    %v1010 = vadd.f32 %v1000, %v1008
    %v1011 = vtanh.pop %v1010
    %1013 = vrot.lane.b32.xlu0 %v1011, 64
    %v1014 = vpop.permute.xlu0 %1013
    %v1016 = vmul.f32 %v995, %v1014
    %vm1017 = vcmask 1041408
    %v1018 = vsel %vm1017, %v272, %v378
    %vm1019 = vcmask 1043456
    %v1020 = vsel %vm1019, %v1018, %v485
    %v1021 = vsel %vm95, %v1020, %v592
    %v1022 = vsel %vm1017, %v696, %v802
    %v1023 = vsel %vm1019, %v1022, %v909
    %v1024 = vsel %vm95, %v1023, %v1016
    %v1025 = vld [vmem:[%s4] sm:$0xff]
    %v1026 = vld [vmem:[%s4 + $0x8] sm:$0xff]
    %v1027 = vld [vmem:[%s4 + $0x10] sm:$0xff]
    %v1028 = vld [vmem:[%s4 + $0x18] sm:$0xff]
    %v1029 = vld [vmem:[%s5] sm:$0xff]
    %v1030 = vld [vmem:[%s5 + $0x8] sm:$0xff]
    %v1031 = vld [vmem:[%s5 + $0x10] sm:$0xff]
    %v1032 = vld [vmem:[%s5 + $0x18] sm:$0xff]
    %v1033 = vld [vmem:[%s6] sm:$0x1]
    %v1035 = vlaneseq
    %v1036 = vshrl.u32 %v1035, 7
    %v1037 = vsub.s32 0, %v1036
    %v1038 = vrot.slane %v1033, %v1037
    %1042 = vrot.lane.b32.xlu0 %v1021, 32
    %v1043 = vpop.permute.xlu0 %1042
    %1044 = vrot.lane.b32.xlu0 %v1024, 32
    %v1045 = vpop.permute.xlu0 %1044
    %v1046 = vsel %vm174, %v1043, 0
    %v1048 = vsel %vm174, %v1045, 0
    %1050 = vmatprep.subr.mxu0 0.0
    %1051 = vmatpush1.msra.mxu0 %v1025
    %1052 = vmatprep.subr.mxu0 0.0
    %1053 = vmatpush1.msra.mxu0 %v1026
    %1054 = vmatprep.subr.mxu0 0.0
    %1055 = vmatpush1.msra.mxu0 %v1027
    %1056 = vmatprep.subr.mxu0 0.0
    %1057 = vmatpush1.msra.mxu0 %v1028
    %1058 = vmatprep.subr.mxu0 0.0
    %1059 = vmatpush1.msra.mxu0 0.0
    %1060 = vmatprep.subr.mxu0 0.0
    %1061 = vmatpush1.msra.mxu0 0.0
    %1062 = vmatprep.subr.mxu0 0.0
    %1063 = vmatpush1.msra.mxu0 0.0
    %1064 = vmatprep.subr.mxu0 0.0
    %1065 = vmatpush1.msra.mxu0 0.0
    %1066 = vmatprep.subr.mxu0 0.0
    %1067 = vmatpush1.msra.mxu0 0.0
    %1068 = vmatprep.subr.mxu0 0.0
    %1069 = vmatpush1.msra.mxu0 0.0
    %1070 = vmatprep.subr.mxu0 0.0
    %1071 = vmatpush1.msra.mxu0 0.0
    %1072 = vmatprep.subr.mxu0 0.0
    %1073 = vmatpush1.msra.mxu0 0.0
    %1074 = vmatprep.subr.mxu0 0.0
    %1075 = vmatpush1.msra.mxu0 0.0
    %1076 = vmatprep.subr.mxu0 0.0
    %1077 = vmatpush1.msra.mxu0 0.0
    %1078 = vmatprep.subr.mxu0 0.0
    %1079 = vmatpush1.msra.mxu0 0.0
    %1080 = vmatprep.subr.mxu0 0.0
    %1081 = vmatpush1.msra.mxu0 0.0
    %1082 = vmatprep.subr.mxu0 0.0
    %1083 = vmatpush1.msra.mxu0 0.0
    %1084 = vmatprep.subr.mxu0 0.0
    %1085 = vmatpush1.msra.mxu0 0.0
    %1086 = vmatprep.subr.mxu0 0.0
    %1087 = vmatpush1.msra.mxu0 0.0
    %1088 = vmatprep.subr.mxu0 0.0
    %1089 = vmatpush1.msra.mxu0 0.0
    %1090 = vmatprep.subr.mxu0 0.0
    %1091 = vmatpush1.msra.mxu0 0.0
    %1092 = vmatprep.subr.mxu0 0.0
    %1093 = vmatpush1.msra.mxu0 0.0
    %1094 = vmatprep.subr.mxu0 0.0
    %1095 = vmatpush1.msra.mxu0 0.0
    %1096 = vmatprep.subr.mxu0 0.0
    %1097 = vmatpush1.msra.mxu0 0.0
    %1098 = vmatprep.subr.mxu0 0.0
    %1099 = vmatpush1.msra.mxu0 0.0
    %1100 = vmatprep.subr.mxu0 0.0
    %1101 = vmatpush1.msra.mxu0 0.0
    %1102 = vmatprep.subr.mxu0 0.0
    %1103 = vmatpush1.msra.mxu0 0.0
    %1104 = vmatprep.subr.mxu0 0.0
    %1105 = vmatpush1.msra.mxu0 0.0
    %1106 = vmatprep.subr.mxu0 0.0
    %1107 = vmatpush1.msra.mxu0 0.0
    %1108 = vmatprep.subr.mxu0 0.0
    %1109 = vmatpush1.msra.mxu0 0.0
    %1110 = vmatprep.subr.mxu0 0.0
    %1111 = vmatpush1.msra.mxu0 0.0
    %1112 = vmatprep.subr.mxu0 0.0
    %1113 = vmatpush1.msra.mxu0 0.0
    %1114 = vmatprep.mubr.f32.mxu0 0.0
    %1115 = vmatmul.mubr.f32.gmra.mrb[0].mxu0 %v1046
    %v1116 = vpop.f32.mrb[0].mxu0
    %v1117 = vadd.f32 %v1038, %v1116
    %v1118 = vpop.f32.mrb[0].mxu0
    %1119 = vmatprep.mubr.f32.mxu0 0.0
    %1120 = vmatmul.mubr.f32.gmra.mrb[0].mxu0 %v1048
    %v1121 = vpop.f32.mrb[0].mxu0
    %v1122 = vadd.f32 %v1038, %v1121
    %v1123 = vpop.f32.mrb[0].mxu0
    %1124 = vdwg.mxu0
    %1125 = vmatprep.subr.mxu0 0.0
    %1126 = vmatpush1.msra.mxu0 %v1029
    %1127 = vmatprep.subr.mxu0 0.0
    %1128 = vmatpush1.msra.mxu0 %v1030
    %1129 = vmatprep.subr.mxu0 0.0
    %1130 = vmatpush1.msra.mxu0 %v1031
    %1131 = vmatprep.subr.mxu0 0.0
    %1132 = vmatpush1.msra.mxu0 %v1032
    %1133 = vmatprep.subr.mxu0 0.0
    %1134 = vmatpush1.msra.mxu0 0.0
    %1135 = vmatprep.subr.mxu0 0.0
    %1136 = vmatpush1.msra.mxu0 0.0
    %1137 = vmatprep.subr.mxu0 0.0
    %1138 = vmatpush1.msra.mxu0 0.0
    %1139 = vmatprep.subr.mxu0 0.0
    %1140 = vmatpush1.msra.mxu0 0.0
    %1141 = vmatprep.subr.mxu0 0.0
    %1142 = vmatpush1.msra.mxu0 0.0
    %1143 = vmatprep.subr.mxu0 0.0
    %1144 = vmatpush1.msra.mxu0 0.0
    %1145 = vmatprep.subr.mxu0 0.0
    %1146 = vmatpush1.msra.mxu0 0.0
    %1147 = vmatprep.subr.mxu0 0.0
    %1148 = vmatpush1.msra.mxu0 0.0
    %1149 = vmatprep.subr.mxu0 0.0
    %1150 = vmatpush1.msra.mxu0 0.0
    %1151 = vmatprep.subr.mxu0 0.0
    %1152 = vmatpush1.msra.mxu0 0.0
    %1153 = vmatprep.subr.mxu0 0.0
    %1154 = vmatpush1.msra.mxu0 0.0
    %1155 = vmatprep.subr.mxu0 0.0
    %1156 = vmatpush1.msra.mxu0 0.0
    %1157 = vmatprep.subr.mxu0 0.0
    %1158 = vmatpush1.msra.mxu0 0.0
    %1159 = vmatprep.subr.mxu0 0.0
    %1160 = vmatpush1.msra.mxu0 0.0
    %1161 = vmatprep.subr.mxu0 0.0
    %1162 = vmatpush1.msra.mxu0 0.0
    %1163 = vmatprep.subr.mxu0 0.0
    %1164 = vmatpush1.msra.mxu0 0.0
    %1165 = vmatprep.subr.mxu0 0.0
    %1166 = vmatpush1.msra.mxu0 0.0
    %1167 = vmatprep.subr.mxu0 0.0
    %1168 = vmatpush1.msra.mxu0 0.0
    %1169 = vmatprep.subr.mxu0 0.0
    %1170 = vmatpush1.msra.mxu0 0.0
    %1171 = vmatprep.subr.mxu0 0.0
    %1172 = vmatpush1.msra.mxu0 0.0
    %1173 = vmatprep.subr.mxu0 0.0
    %1174 = vmatpush1.msra.mxu0 0.0
    %1175 = vmatprep.subr.mxu0 0.0
    %1176 = vmatpush1.msra.mxu0 0.0
    %1177 = vmatprep.subr.mxu0 0.0
    %1178 = vmatpush1.msra.mxu0 0.0
    %1179 = vmatprep.subr.mxu0 0.0
    %1180 = vmatpush1.msra.mxu0 0.0
    %1181 = vmatprep.subr.mxu0 0.0
    %1182 = vmatpush1.msra.mxu0 0.0
    %1183 = vmatprep.subr.mxu0 0.0
    %1184 = vmatpush1.msra.mxu0 0.0
    %1185 = vmatprep.subr.mxu0 0.0
    %1186 = vmatpush1.msra.mxu0 0.0
    %1187 = vmatprep.subr.mxu0 0.0
    %1188 = vmatpush1.msra.mxu0 0.0
    %1189 = vmatprep.mubr.f32.mxu0 0.0
    %1190 = vmatmul.mubr.f32.gmra.mrb[0].mxu0 %v176
    %v1191 = vpop.f32.mrb[0].mxu0
    %v1192 = vadd.f32 0.0, %v1191
    %v1193 = vpop.f32.mrb[0].mxu0
    %1194 = vdwg.mxu0
    %v1195 = vadd.f32 %v1117, %v1192
    %v1196 = vxor.u32 %v1195, 2147483648
    %v1197 = vmul.f32 %v1196, 1.442695
    %v1198 = vpow.pop %v1197
    %v1199 = vadd.f32 %v1198, 1.0
    %v1200 = vrcp.pop %v1199
    %v1201 = vmul.f32 1.0, %v1200
    %v1202 = vtanh.pop %v1195
    %v1203 = vmul.f32 %v1201, 0.0
    %1205 = vrot.lane.b32.xlu0 %v1202, 64
    %v1206 = vpop.permute.xlu0 %1205
    %v1208 = vmul.f32 %v1201, %v1206
    %1210 = vrot.lane.b32.xlu0 %v1208, 32
    %v1211 = vpop.permute.xlu0 %1210
    %v1213 = vadd.f32 %v1203, %v1211
    %v1214 = vtanh.pop %v1213
    %1216 = vrot.lane.b32.xlu0 %v1214, 64
    %v1217 = vpop.permute.xlu0 %1216
    %v1219 = vmul.f32 %v1201, %v1217
    %1221 = vrot.lane.b32.xlu0 %v1219, 32
    %v1222 = vpop.permute.xlu0 %1221
    %v1223 = vsel %vm174, %v1222, 0
    %1225 = vmatprep.subr.mxu0 0.0
    %1226 = vmatpush1.msra.mxu0 %v1029
    %1227 = vmatprep.subr.mxu0 0.0
    %1228 = vmatpush1.msra.mxu0 %v1030
    %1229 = vmatprep.subr.mxu0 0.0
    %1230 = vmatpush1.msra.mxu0 %v1031
    %1231 = vmatprep.subr.mxu0 0.0
    %1232 = vmatpush1.msra.mxu0 %v1032
    %1233 = vmatprep.subr.mxu0 0.0
    %1234 = vmatpush1.msra.mxu0 0.0
    %1235 = vmatprep.subr.mxu0 0.0
    %1236 = vmatpush1.msra.mxu0 0.0
    %1237 = vmatprep.subr.mxu0 0.0
    %1238 = vmatpush1.msra.mxu0 0.0
    %1239 = vmatprep.subr.mxu0 0.0
    %1240 = vmatpush1.msra.mxu0 0.0
    %1241 = vmatprep.subr.mxu0 0.0
    %1242 = vmatpush1.msra.mxu0 0.0
    %1243 = vmatprep.subr.mxu0 0.0
    %1244 = vmatpush1.msra.mxu0 0.0
    %1245 = vmatprep.subr.mxu0 0.0
    %1246 = vmatpush1.msra.mxu0 0.0
    %1247 = vmatprep.subr.mxu0 0.0
    %1248 = vmatpush1.msra.mxu0 0.0
    %1249 = vmatprep.subr.mxu0 0.0
    %1250 = vmatpush1.msra.mxu0 0.0
    %1251 = vmatprep.subr.mxu0 0.0
    %1252 = vmatpush1.msra.mxu0 0.0
    %1253 = vmatprep.subr.mxu0 0.0
    %1254 = vmatpush1.msra.mxu0 0.0
    %1255 = vmatprep.subr.mxu0 0.0
    %1256 = vmatpush1.msra.mxu0 0.0
    %1257 = vmatprep.subr.mxu0 0.0
    %1258 = vmatpush1.msra.mxu0 0.0
    %1259 = vmatprep.subr.mxu0 0.0
    %1260 = vmatpush1.msra.mxu0 0.0
    %1261 = vmatprep.subr.mxu0 0.0
    %1262 = vmatpush1.msra.mxu0 0.0
    %1263 = vmatprep.subr.mxu0 0.0
    %1264 = vmatpush1.msra.mxu0 0.0
    %1265 = vmatprep.subr.mxu0 0.0
    %1266 = vmatpush1.msra.mxu0 0.0
    %1267 = vmatprep.subr.mxu0 0.0
    %1268 = vmatpush1.msra.mxu0 0.0
    %1269 = vmatprep.subr.mxu0 0.0
    %1270 = vmatpush1.msra.mxu0 0.0
    %1271 = vmatprep.subr.mxu0 0.0
    %1272 = vmatpush1.msra.mxu0 0.0
    %1273 = vmatprep.subr.mxu0 0.0
    %1274 = vmatpush1.msra.mxu0 0.0
    %1275 = vmatprep.subr.mxu0 0.0
    %1276 = vmatpush1.msra.mxu0 0.0
    %1277 = vmatprep.subr.mxu0 0.0
    %1278 = vmatpush1.msra.mxu0 0.0
    %1279 = vmatprep.subr.mxu0 0.0
    %1280 = vmatpush1.msra.mxu0 0.0
    %1281 = vmatprep.subr.mxu0 0.0
    %1282 = vmatpush1.msra.mxu0 0.0
    %1283 = vmatprep.subr.mxu0 0.0
    %1284 = vmatpush1.msra.mxu0 0.0
    %1285 = vmatprep.subr.mxu0 0.0
    %1286 = vmatpush1.msra.mxu0 0.0
    %1287 = vmatprep.subr.mxu0 0.0
    %1288 = vmatpush1.msra.mxu0 0.0
    %1289 = vmatprep.mubr.f32.mxu0 0.0
    %1290 = vmatmul.mubr.f32.gmra.mrb[0].mxu0 %v1223
    %v1291 = vpop.f32.mrb[0].mxu0
    %v1292 = vadd.f32 0.0, %v1291
    %v1293 = vpop.f32.mrb[0].mxu0
    %1294 = vdwg.mxu0
    %v1296 = vrot.slane %v1292, 6
    %v1298 = vadd.f32 %v1117, %v1296
    %v1299 = vxor.u32 %v1298, 2147483648
    %v1300 = vmul.f32 %v1299, 1.442695
    %v1301 = vpow.pop %v1300
    %v1302 = vadd.f32 %v1301, 1.0
    %v1303 = vrcp.pop %v1302
    %v1304 = vmul.f32 1.0, %v1303
    %v1305 = vtanh.pop %v1298
    %v1307 = vrot.slane %v1213, 6
    %v1309 = vmul.f32 %v1304, %v1307
    %1311 = vrot.lane.b32.xlu0 %v1305, 64
    %v1312 = vpop.permute.xlu0 %1311
    %v1314 = vmul.f32 %v1304, %v1312
    %1316 = vrot.lane.b32.xlu0 %v1314, 32
    %v1317 = vpop.permute.xlu0 %1316
    %v1319 = vadd.f32 %v1309, %v1317
    %v1320 = vtanh.pop %v1319
    %1322 = vrot.lane.b32.xlu0 %v1320, 64
    %v1323 = vpop.permute.xlu0 %1322
    %v1325 = vmul.f32 %v1304, %v1323
    %v1327 = vrot.slane %v1325, 2
    %1328 = vrot.lane.b32.xlu0 %v1327, 32
    %v1329 = vpop.permute.xlu0 %1328
    %v1330 = vsel %vm174, %v1329, 0
    %1332 = vmatprep.subr.mxu0 0.0
    %1333 = vmatpush1.msra.mxu0 %v1029
    %1334 = vmatprep.subr.mxu0 0.0
    %1335 = vmatpush1.msra.mxu0 %v1030
    %1336 = vmatprep.subr.mxu0 0.0
    %1337 = vmatpush1.msra.mxu0 %v1031
    %1338 = vmatprep.subr.mxu0 0.0
    %1339 = vmatpush1.msra.mxu0 %v1032
    %1340 = vmatprep.subr.mxu0 0.0
    %1341 = vmatpush1.msra.mxu0 0.0
    %1342 = vmatprep.subr.mxu0 0.0
    %1343 = vmatpush1.msra.mxu0 0.0
    %1344 = vmatprep.subr.mxu0 0.0
    %1345 = vmatpush1.msra.mxu0 0.0
    %1346 = vmatprep.subr.mxu0 0.0
    %1347 = vmatpush1.msra.mxu0 0.0
    %1348 = vmatprep.subr.mxu0 0.0
    %1349 = vmatpush1.msra.mxu0 0.0
    %1350 = vmatprep.subr.mxu0 0.0
    %1351 = vmatpush1.msra.mxu0 0.0
    %1352 = vmatprep.subr.mxu0 0.0
    %1353 = vmatpush1.msra.mxu0 0.0
    %1354 = vmatprep.subr.mxu0 0.0
    %1355 = vmatpush1.msra.mxu0 0.0
    %1356 = vmatprep.subr.mxu0 0.0
    %1357 = vmatpush1.msra.mxu0 0.0
    %1358 = vmatprep.subr.mxu0 0.0
    %1359 = vmatpush1.msra.mxu0 0.0
    %1360 = vmatprep.subr.mxu0 0.0
    %1361 = vmatpush1.msra.mxu0 0.0
    %1362 = vmatprep.subr.mxu0 0.0
    %1363 = vmatpush1.msra.mxu0 0.0
    %1364 = vmatprep.subr.mxu0 0.0
    %1365 = vmatpush1.msra.mxu0 0.0
    %1366 = vmatprep.subr.mxu0 0.0
    %1367 = vmatpush1.msra.mxu0 0.0
    %1368 = vmatprep.subr.mxu0 0.0
    %1369 = vmatpush1.msra.mxu0 0.0
    %1370 = vmatprep.subr.mxu0 0.0
    %1371 = vmatpush1.msra.mxu0 0.0
    %1372 = vmatprep.subr.mxu0 0.0
    %1373 = vmatpush1.msra.mxu0 0.0
    %1374 = vmatprep.subr.mxu0 0.0
    %1375 = vmatpush1.msra.mxu0 0.0
    %1376 = vmatprep.subr.mxu0 0.0
    %1377 = vmatpush1.msra.mxu0 0.0
    %1378 = vmatprep.subr.mxu0 0.0
    %1379 = vmatpush1.msra.mxu0 0.0
    %1380 = vmatprep.subr.mxu0 0.0
    %1381 = vmatpush1.msra.mxu0 0.0
    %1382 = vmatprep.subr.mxu0 0.0
    %1383 = vmatpush1.msra.mxu0 0.0
    %1384 = vmatprep.subr.mxu0 0.0
    %1385 = vmatpush1.msra.mxu0 0.0
    %1386 = vmatprep.subr.mxu0 0.0
    %1387 = vmatpush1.msra.mxu0 0.0
    %1388 = vmatprep.subr.mxu0 0.0
    %1389 = vmatpush1.msra.mxu0 0.0
    %1390 = vmatprep.subr.mxu0 0.0
    %1391 = vmatpush1.msra.mxu0 0.0
    %1392 = vmatprep.subr.mxu0 0.0
    %1393 = vmatpush1.msra.mxu0 0.0
    %1394 = vmatprep.subr.mxu0 0.0
    %1395 = vmatpush1.msra.mxu0 0.0
    %1396 = vmatprep.mubr.f32.mxu0 0.0
    %1397 = vmatmul.mubr.f32.gmra.mrb[0].mxu0 %v1330
    %v1398 = vpop.f32.mrb[0].mxu0
    %v1399 = vadd.f32 0.0, %v1398
    %v1400 = vpop.f32.mrb[0].mxu0
    %1401 = vdwg.mxu0
    %v1403 = vrot.slane %v1399, 4
    %v1405 = vadd.f32 %v1117, %v1403
    %v1406 = vxor.u32 %v1405, 2147483648
    %v1407 = vmul.f32 %v1406, 1.442695
    %v1408 = vpow.pop %v1407
    %v1409 = vadd.f32 %v1408, 1.0
    %v1410 = vrcp.pop %v1409
    %v1411 = vmul.f32 1.0, %v1410
    %v1412 = vtanh.pop %v1405
    %v1414 = vrot.slane %v1319, 6
    %v1416 = vmul.f32 %v1411, %v1414
    %1418 = vrot.lane.b32.xlu0 %v1412, 64
    %v1419 = vpop.permute.xlu0 %1418
    %v1421 = vmul.f32 %v1411, %v1419
    %1423 = vrot.lane.b32.xlu0 %v1421, 32
    %v1424 = vpop.permute.xlu0 %1423
    %v1426 = vadd.f32 %v1416, %v1424
    %v1427 = vtanh.pop %v1426
    %1429 = vrot.lane.b32.xlu0 %v1427, 64
    %v1430 = vpop.permute.xlu0 %1429
    %v1432 = vmul.f32 %v1411, %v1430
    %v1434 = vrot.slane %v1432, 4
    %1435 = vrot.lane.b32.xlu0 %v1434, 32
    %v1436 = vpop.permute.xlu0 %1435
    %v1437 = vsel %vm174, %v1436, 0
    %1439 = vmatprep.subr.mxu0 0.0
    %1440 = vmatpush1.msra.mxu0 %v1029
    %1441 = vmatprep.subr.mxu0 0.0
    %1442 = vmatpush1.msra.mxu0 %v1030
    %1443 = vmatprep.subr.mxu0 0.0
    %1444 = vmatpush1.msra.mxu0 %v1031
    %1445 = vmatprep.subr.mxu0 0.0
    %1446 = vmatpush1.msra.mxu0 %v1032
    %1447 = vmatprep.subr.mxu0 0.0
    %1448 = vmatpush1.msra.mxu0 0.0
    %1449 = vmatprep.subr.mxu0 0.0
    %1450 = vmatpush1.msra.mxu0 0.0
    %1451 = vmatprep.subr.mxu0 0.0
    %1452 = vmatpush1.msra.mxu0 0.0
    %1453 = vmatprep.subr.mxu0 0.0
    %1454 = vmatpush1.msra.mxu0 0.0
    %1455 = vmatprep.subr.mxu0 0.0
    %1456 = vmatpush1.msra.mxu0 0.0
    %1457 = vmatprep.subr.mxu0 0.0
    %1458 = vmatpush1.msra.mxu0 0.0
    %1459 = vmatprep.subr.mxu0 0.0
    %1460 = vmatpush1.msra.mxu0 0.0
    %1461 = vmatprep.subr.mxu0 0.0
    %1462 = vmatpush1.msra.mxu0 0.0
    %1463 = vmatprep.subr.mxu0 0.0
    %1464 = vmatpush1.msra.mxu0 0.0
    %1465 = vmatprep.subr.mxu0 0.0
    %1466 = vmatpush1.msra.mxu0 0.0
    %1467 = vmatprep.subr.mxu0 0.0
    %1468 = vmatpush1.msra.mxu0 0.0
    %1469 = vmatprep.subr.mxu0 0.0
    %1470 = vmatpush1.msra.mxu0 0.0
    %1471 = vmatprep.subr.mxu0 0.0
    %1472 = vmatpush1.msra.mxu0 0.0
    %1473 = vmatprep.subr.mxu0 0.0
    %1474 = vmatpush1.msra.mxu0 0.0
    %1475 = vmatprep.subr.mxu0 0.0
    %1476 = vmatpush1.msra.mxu0 0.0
    %1477 = vmatprep.subr.mxu0 0.0
    %1478 = vmatpush1.msra.mxu0 0.0
    %1479 = vmatprep.subr.mxu0 0.0
    %1480 = vmatpush1.msra.mxu0 0.0
    %1481 = vmatprep.subr.mxu0 0.0
    %1482 = vmatpush1.msra.mxu0 0.0
    %1483 = vmatprep.subr.mxu0 0.0
    %1484 = vmatpush1.msra.mxu0 0.0
    %1485 = vmatprep.subr.mxu0 0.0
    %1486 = vmatpush1.msra.mxu0 0.0
    %1487 = vmatprep.subr.mxu0 0.0
    %1488 = vmatpush1.msra.mxu0 0.0
    %1489 = vmatprep.subr.mxu0 0.0
    %1490 = vmatpush1.msra.mxu0 0.0
    %1491 = vmatprep.subr.mxu0 0.0
    %1492 = vmatpush1.msra.mxu0 0.0
    %1493 = vmatprep.subr.mxu0 0.0
    %1494 = vmatpush1.msra.mxu0 0.0
    %1495 = vmatprep.subr.mxu0 0.0
    %1496 = vmatpush1.msra.mxu0 0.0
    %1497 = vmatprep.subr.mxu0 0.0
    %1498 = vmatpush1.msra.mxu0 0.0
    %1499 = vmatprep.subr.mxu0 0.0
    %1500 = vmatpush1.msra.mxu0 0.0
    %1501 = vmatprep.subr.mxu0 0.0
    %1502 = vmatpush1.msra.mxu0 0.0
    %1503 = vmatprep.mubr.f32.mxu0 0.0
    %1504 = vmatmul.mubr.f32.gmra.mrb[0].mxu0 %v1437
    %v1505 = vpop.f32.mrb[0].mxu0
    %v1506 = vadd.f32 0.0, %v1505
    %v1507 = vpop.f32.mrb[0].mxu0
    %1508 = vdwg.mxu0
    %v1510 = vrot.slane %v1506, 2
    %v1512 = vadd.f32 %v1117, %v1510
    %v1513 = vxor.u32 %v1512, 2147483648
    %v1514 = vmul.f32 %v1513, 1.442695
    %v1515 = vpow.pop %v1514
    %v1516 = vadd.f32 %v1515, 1.0
    %v1517 = vrcp.pop %v1516
    %v1518 = vmul.f32 1.0, %v1517
    %v1519 = vtanh.pop %v1512
    %v1521 = vrot.slane %v1426, 6
    %v1523 = vmul.f32 %v1518, %v1521
    %1525 = vrot.lane.b32.xlu0 %v1519, 64
    %v1526 = vpop.permute.xlu0 %1525
    %v1528 = vmul.f32 %v1518, %v1526
    %1530 = vrot.lane.b32.xlu0 %v1528, 32
    %v1531 = vpop.permute.xlu0 %1530
    %v1533 = vadd.f32 %v1523, %v1531
    %v1534 = vtanh.pop %v1533
    %1536 = vrot.lane.b32.xlu0 %v1534, 64
    %v1537 = vpop.permute.xlu0 %1536
    %v1539 = vmul.f32 %v1518, %v1537
    %v1541 = vrot.slane %v1539, 6
    %1542 = vrot.lane.b32.xlu0 %v1541, 32
    %v1543 = vpop.permute.xlu0 %1542
    %v1544 = vsel %vm174, %v1543, 0
    %1546 = vmatprep.subr.mxu0 0.0
    %1547 = vmatpush1.msra.mxu0 %v1029
    %1548 = vmatprep.subr.mxu0 0.0
    %1549 = vmatpush1.msra.mxu0 %v1030
    %1550 = vmatprep.subr.mxu0 0.0
    %1551 = vmatpush1.msra.mxu0 %v1031
    %1552 = vmatprep.subr.mxu0 0.0
    %1553 = vmatpush1.msra.mxu0 %v1032
    %1554 = vmatprep.subr.mxu0 0.0
    %1555 = vmatpush1.msra.mxu0 0.0
    %1556 = vmatprep.subr.mxu0 0.0
    %1557 = vmatpush1.msra.mxu0 0.0
    %1558 = vmatprep.subr.mxu0 0.0
    %1559 = vmatpush1.msra.mxu0 0.0
    %1560 = vmatprep.subr.mxu0 0.0
    %1561 = vmatpush1.msra.mxu0 0.0
    %1562 = vmatprep.subr.mxu0 0.0
    %1563 = vmatpush1.msra.mxu0 0.0
    %1564 = vmatprep.subr.mxu0 0.0
    %1565 = vmatpush1.msra.mxu0 0.0
    %1566 = vmatprep.subr.mxu0 0.0
    %1567 = vmatpush1.msra.mxu0 0.0
    %1568 = vmatprep.subr.mxu0 0.0
    %1569 = vmatpush1.msra.mxu0 0.0
    %1570 = vmatprep.subr.mxu0 0.0
    %1571 = vmatpush1.msra.mxu0 0.0
    %1572 = vmatprep.subr.mxu0 0.0
    %1573 = vmatpush1.msra.mxu0 0.0
    %1574 = vmatprep.subr.mxu0 0.0
    %1575 = vmatpush1.msra.mxu0 0.0
    %1576 = vmatprep.subr.mxu0 0.0
    %1577 = vmatpush1.msra.mxu0 0.0
    %1578 = vmatprep.subr.mxu0 0.0
    %1579 = vmatpush1.msra.mxu0 0.0
    %1580 = vmatprep.subr.mxu0 0.0
    %1581 = vmatpush1.msra.mxu0 0.0
    %1582 = vmatprep.subr.mxu0 0.0
    %1583 = vmatpush1.msra.mxu0 0.0
    %1584 = vmatprep.subr.mxu0 0.0
    %1585 = vmatpush1.msra.mxu0 0.0
    %1586 = vmatprep.subr.mxu0 0.0
    %1587 = vmatpush1.msra.mxu0 0.0
    %1588 = vmatprep.subr.mxu0 0.0
    %1589 = vmatpush1.msra.mxu0 0.0
    %1590 = vmatprep.subr.mxu0 0.0
    %1591 = vmatpush1.msra.mxu0 0.0
    %1592 = vmatprep.subr.mxu0 0.0
    %1593 = vmatpush1.msra.mxu0 0.0
    %1594 = vmatprep.subr.mxu0 0.0
    %1595 = vmatpush1.msra.mxu0 0.0
    %1596 = vmatprep.subr.mxu0 0.0
    %1597 = vmatpush1.msra.mxu0 0.0
    %1598 = vmatprep.subr.mxu0 0.0
    %1599 = vmatpush1.msra.mxu0 0.0
    %1600 = vmatprep.subr.mxu0 0.0
    %1601 = vmatpush1.msra.mxu0 0.0
    %1602 = vmatprep.subr.mxu0 0.0
    %1603 = vmatpush1.msra.mxu0 0.0
    %1604 = vmatprep.subr.mxu0 0.0
    %1605 = vmatpush1.msra.mxu0 0.0
    %1606 = vmatprep.subr.mxu0 0.0
    %1607 = vmatpush1.msra.mxu0 0.0
    %1608 = vmatprep.subr.mxu0 0.0
    %1609 = vmatpush1.msra.mxu0 0.0
    %1610 = vmatprep.mubr.f32.mxu0 0.0
    %1611 = vmatmul.mubr.f32.gmra.mrb[0].mxu0 %v1544
    %v1612 = vpop.f32.mrb[0].mxu0
    %v1613 = vadd.f32 0.0, %v1612
    %v1614 = vpop.f32.mrb[0].mxu0
    %1615 = vdwg.mxu0
    %v1616 = vadd.f32 %v1122, %v1613
    %v1617 = vxor.u32 %v1616, 2147483648
    %v1618 = vmul.f32 %v1617, 1.442695
    %v1619 = vpow.pop %v1618
    %v1620 = vadd.f32 %v1619, 1.0
    %v1621 = vrcp.pop %v1620
    %v1622 = vmul.f32 1.0, %v1621
    %v1623 = vtanh.pop %v1616
    %v1625 = vrot.slane %v1533, 6
    %v1627 = vmul.f32 %v1622, %v1625
    %1629 = vrot.lane.b32.xlu0 %v1623, 64
    %v1630 = vpop.permute.xlu0 %1629
    %v1632 = vmul.f32 %v1622, %v1630
    %1634 = vrot.lane.b32.xlu0 %v1632, 32
    %v1635 = vpop.permute.xlu0 %1634
    %v1637 = vadd.f32 %v1627, %v1635
    %v1638 = vtanh.pop %v1637
    %1640 = vrot.lane.b32.xlu0 %v1638, 64
    %v1641 = vpop.permute.xlu0 %1640
    %v1643 = vmul.f32 %v1622, %v1641
    %1645 = vrot.lane.b32.xlu0 %v1643, 32
    %v1646 = vpop.permute.xlu0 %1645
    %v1647 = vsel %vm174, %v1646, 0
    %1649 = vmatprep.subr.mxu0 0.0
    %1650 = vmatpush1.msra.mxu0 %v1029
    %1651 = vmatprep.subr.mxu0 0.0
    %1652 = vmatpush1.msra.mxu0 %v1030
    %1653 = vmatprep.subr.mxu0 0.0
    %1654 = vmatpush1.msra.mxu0 %v1031
    %1655 = vmatprep.subr.mxu0 0.0
    %1656 = vmatpush1.msra.mxu0 %v1032
    %1657 = vmatprep.subr.mxu0 0.0
    %1658 = vmatpush1.msra.mxu0 0.0
    %1659 = vmatprep.subr.mxu0 0.0
    %1660 = vmatpush1.msra.mxu0 0.0
    %1661 = vmatprep.subr.mxu0 0.0
    %1662 = vmatpush1.msra.mxu0 0.0
    %1663 = vmatprep.subr.mxu0 0.0
    %1664 = vmatpush1.msra.mxu0 0.0
    %1665 = vmatprep.subr.mxu0 0.0
    %1666 = vmatpush1.msra.mxu0 0.0
    %1667 = vmatprep.subr.mxu0 0.0
    %1668 = vmatpush1.msra.mxu0 0.0
    %1669 = vmatprep.subr.mxu0 0.0
    %1670 = vmatpush1.msra.mxu0 0.0
    %1671 = vmatprep.subr.mxu0 0.0
    %1672 = vmatpush1.msra.mxu0 0.0
    %1673 = vmatprep.subr.mxu0 0.0
    %1674 = vmatpush1.msra.mxu0 0.0
    %1675 = vmatprep.subr.mxu0 0.0
    %1676 = vmatpush1.msra.mxu0 0.0
    %1677 = vmatprep.subr.mxu0 0.0
    %1678 = vmatpush1.msra.mxu0 0.0
    %1679 = vmatprep.subr.mxu0 0.0
    %1680 = vmatpush1.msra.mxu0 0.0
    %1681 = vmatprep.subr.mxu0 0.0
    %1682 = vmatpush1.msra.mxu0 0.0
    %1683 = vmatprep.subr.mxu0 0.0
    %1684 = vmatpush1.msra.mxu0 0.0
    %1685 = vmatprep.subr.mxu0 0.0
    %1686 = vmatpush1.msra.mxu0 0.0
    %1687 = vmatprep.subr.mxu0 0.0
    %1688 = vmatpush1.msra.mxu0 0.0
    %1689 = vmatprep.subr.mxu0 0.0
    %1690 = vmatpush1.msra.mxu0 0.0
    %1691 = vmatprep.subr.mxu0 0.0
    %1692 = vmatpush1.msra.mxu0 0.0
    %1693 = vmatprep.subr.mxu0 0.0
    %1694 = vmatpush1.msra.mxu0 0.0
    %1695 = vmatprep.subr.mxu0 0.0
    %1696 = vmatpush1.msra.mxu0 0.0
    %1697 = vmatprep.subr.mxu0 0.0
    %1698 = vmatpush1.msra.mxu0 0.0
    %1699 = vmatprep.subr.mxu0 0.0
    %1700 = vmatpush1.msra.mxu0 0.0
    %1701 = vmatprep.subr.mxu0 0.0
    %1702 = vmatpush1.msra.mxu0 0.0
    %1703 = vmatprep.subr.mxu0 0.0
    %1704 = vmatpush1.msra.mxu0 0.0
    %1705 = vmatprep.subr.mxu0 0.0
    %1706 = vmatpush1.msra.mxu0 0.0
    %1707 = vmatprep.subr.mxu0 0.0
    %1708 = vmatpush1.msra.mxu0 0.0
    %1709 = vmatprep.subr.mxu0 0.0
    %1710 = vmatpush1.msra.mxu0 0.0
    %1711 = vmatprep.subr.mxu0 0.0
    %1712 = vmatpush1.msra.mxu0 0.0
    %1713 = vmatprep.mubr.f32.mxu0 0.0
    %1714 = vmatmul.mubr.f32.gmra.mrb[0].mxu0 %v1647
    %v1715 = vpop.f32.mrb[0].mxu0
    %v1716 = vadd.f32 0.0, %v1715
    %v1717 = vpop.f32.mrb[0].mxu0
    %1718 = vdwg.mxu0
    %v1720 = vrot.slane %v1716, 6
    %v1722 = vadd.f32 %v1122, %v1720
    %v1723 = vxor.u32 %v1722, 2147483648
    %v1724 = vmul.f32 %v1723, 1.442695
    %v1725 = vpow.pop %v1724
    %v1726 = vadd.f32 %v1725, 1.0
    %v1727 = vrcp.pop %v1726
    %v1728 = vmul.f32 1.0, %v1727
    %v1729 = vtanh.pop %v1722
    %v1731 = vrot.slane %v1637, 6
    %v1733 = vmul.f32 %v1728, %v1731
    %1735 = vrot.lane.b32.xlu0 %v1729, 64
    %v1736 = vpop.permute.xlu0 %1735
    %v1738 = vmul.f32 %v1728, %v1736
    %1740 = vrot.lane.b32.xlu0 %v1738, 32
    %v1741 = vpop.permute.xlu0 %1740
    %v1743 = vadd.f32 %v1733, %v1741
    %v1744 = vtanh.pop %v1743
    %1746 = vrot.lane.b32.xlu0 %v1744, 64
    %v1747 = vpop.permute.xlu0 %1746
    %v1749 = vmul.f32 %v1728, %v1747
    %v1751 = vrot.slane %v1749, 2
    %1752 = vrot.lane.b32.xlu0 %v1751, 32
    %v1753 = vpop.permute.xlu0 %1752
    %v1754 = vsel %vm174, %v1753, 0
    %1756 = vmatprep.subr.mxu0 0.0
    %1757 = vmatpush1.msra.mxu0 %v1029
    %1758 = vmatprep.subr.mxu0 0.0
    %1759 = vmatpush1.msra.mxu0 %v1030
    %1760 = vmatprep.subr.mxu0 0.0
    %1761 = vmatpush1.msra.mxu0 %v1031
    %1762 = vmatprep.subr.mxu0 0.0
    %1763 = vmatpush1.msra.mxu0 %v1032
    %1764 = vmatprep.subr.mxu0 0.0
    %1765 = vmatpush1.msra.mxu0 0.0
    %1766 = vmatprep.subr.mxu0 0.0
    %1767 = vmatpush1.msra.mxu0 0.0
    %1768 = vmatprep.subr.mxu0 0.0
    %1769 = vmatpush1.msra.mxu0 0.0
    %1770 = vmatprep.subr.mxu0 0.0
    %1771 = vmatpush1.msra.mxu0 0.0
    %1772 = vmatprep.subr.mxu0 0.0
    %1773 = vmatpush1.msra.mxu0 0.0
    %1774 = vmatprep.subr.mxu0 0.0
    %1775 = vmatpush1.msra.mxu0 0.0
    %1776 = vmatprep.subr.mxu0 0.0
    %1777 = vmatpush1.msra.mxu0 0.0
    %1778 = vmatprep.subr.mxu0 0.0
    %1779 = vmatpush1.msra.mxu0 0.0
    %1780 = vmatprep.subr.mxu0 0.0
    %1781 = vmatpush1.msra.mxu0 0.0
    %1782 = vmatprep.subr.mxu0 0.0
    %1783 = vmatpush1.msra.mxu0 0.0
    %1784 = vmatprep.subr.mxu0 0.0
    %1785 = vmatpush1.msra.mxu0 0.0
    %1786 = vmatprep.subr.mxu0 0.0
    %1787 = vmatpush1.msra.mxu0 0.0
    %1788 = vmatprep.subr.mxu0 0.0
    %1789 = vmatpush1.msra.mxu0 0.0
    %1790 = vmatprep.subr.mxu0 0.0
    %1791 = vmatpush1.msra.mxu0 0.0
    %1792 = vmatprep.subr.mxu0 0.0
    %1793 = vmatpush1.msra.mxu0 0.0
    %1794 = vmatprep.subr.mxu0 0.0
    %1795 = vmatpush1.msra.mxu0 0.0
    %1796 = vmatprep.subr.mxu0 0.0
    %1797 = vmatpush1.msra.mxu0 0.0
    %1798 = vmatprep.subr.mxu0 0.0
    %1799 = vmatpush1.msra.mxu0 0.0
    %1800 = vmatprep.subr.mxu0 0.0
    %1801 = vmatpush1.msra.mxu0 0.0
    %1802 = vmatprep.subr.mxu0 0.0
    %1803 = vmatpush1.msra.mxu0 0.0
    %1804 = vmatprep.subr.mxu0 0.0
    %1805 = vmatpush1.msra.mxu0 0.0
    %1806 = vmatprep.subr.mxu0 0.0
    %1807 = vmatpush1.msra.mxu0 0.0
    %1808 = vmatprep.subr.mxu0 0.0
    %1809 = vmatpush1.msra.mxu0 0.0
    %1810 = vmatprep.subr.mxu0 0.0
    %1811 = vmatpush1.msra.mxu0 0.0
    %1812 = vmatprep.subr.mxu0 0.0
    %1813 = vmatpush1.msra.mxu0 0.0
    %1814 = vmatprep.subr.mxu0 0.0
    %1815 = vmatpush1.msra.mxu0 0.0
    %1816 = vmatprep.subr.mxu0 0.0
    %1817 = vmatpush1.msra.mxu0 0.0
    %1818 = vmatprep.subr.mxu0 0.0
    %1819 = vmatpush1.msra.mxu0 0.0
    %1820 = vmatprep.mubr.f32.mxu0 0.0
    %1821 = vmatmul.mubr.f32.gmra.mrb[0].mxu0 %v1754
    %v1822 = vpop.f32.mrb[0].mxu0
    %v1823 = vadd.f32 0.0, %v1822
    %v1824 = vpop.f32.mrb[0].mxu0
    %1825 = vdwg.mxu0
    %v1827 = vrot.slane %v1823, 4
    %v1829 = vadd.f32 %v1122, %v1827
    %v1830 = vxor.u32 %v1829, 2147483648
    %v1831 = vmul.f32 %v1830, 1.442695
    %v1832 = vpow.pop %v1831
    %v1833 = vadd.f32 %v1832, 1.0
    %v1834 = vrcp.pop %v1833
    %v1835 = vmul.f32 1.0, %v1834
    %v1836 = vtanh.pop %v1829
    %v1838 = vrot.slane %v1743, 6
    %v1840 = vmul.f32 %v1835, %v1838
    %1842 = vrot.lane.b32.xlu0 %v1836, 64
    %v1843 = vpop.permute.xlu0 %1842
    %v1845 = vmul.f32 %v1835, %v1843
    %1847 = vrot.lane.b32.xlu0 %v1845, 32
    %v1848 = vpop.permute.xlu0 %1847
    %v1850 = vadd.f32 %v1840, %v1848
    %v1851 = vtanh.pop %v1850
    %1853 = vrot.lane.b32.xlu0 %v1851, 64
    %v1854 = vpop.permute.xlu0 %1853
    %v1856 = vmul.f32 %v1835, %v1854
    %v1858 = vrot.slane %v1856, 4
    %1859 = vrot.lane.b32.xlu0 %v1858, 32
    %v1860 = vpop.permute.xlu0 %1859
    %v1861 = vsel %vm174, %v1860, 0
    %1863 = vmatprep.subr.mxu0 0.0
    %1864 = vmatpush1.msra.mxu0 %v1029
    %1865 = vmatprep.subr.mxu0 0.0
    %1866 = vmatpush1.msra.mxu0 %v1030
    %1867 = vmatprep.subr.mxu0 0.0
    %1868 = vmatpush1.msra.mxu0 %v1031
    %1869 = vmatprep.subr.mxu0 0.0
    %1870 = vmatpush1.msra.mxu0 %v1032
    %1871 = vmatprep.subr.mxu0 0.0
    %1872 = vmatpush1.msra.mxu0 0.0
    %1873 = vmatprep.subr.mxu0 0.0
    %1874 = vmatpush1.msra.mxu0 0.0
    %1875 = vmatprep.subr.mxu0 0.0
    %1876 = vmatpush1.msra.mxu0 0.0
    %1877 = vmatprep.subr.mxu0 0.0
    %1878 = vmatpush1.msra.mxu0 0.0
    %1879 = vmatprep.subr.mxu0 0.0
    %1880 = vmatpush1.msra.mxu0 0.0
    %1881 = vmatprep.subr.mxu0 0.0
    %1882 = vmatpush1.msra.mxu0 0.0
    %1883 = vmatprep.subr.mxu0 0.0
    %1884 = vmatpush1.msra.mxu0 0.0
    %1885 = vmatprep.subr.mxu0 0.0
    %1886 = vmatpush1.msra.mxu0 0.0
    %1887 = vmatprep.subr.mxu0 0.0
    %1888 = vmatpush1.msra.mxu0 0.0
    %1889 = vmatprep.subr.mxu0 0.0
    %1890 = vmatpush1.msra.mxu0 0.0
    %1891 = vmatprep.subr.mxu0 0.0
    %1892 = vmatpush1.msra.mxu0 0.0
    %1893 = vmatprep.subr.mxu0 0.0
    %1894 = vmatpush1.msra.mxu0 0.0
    %1895 = vmatprep.subr.mxu0 0.0
    %1896 = vmatpush1.msra.mxu0 0.0
    %1897 = vmatprep.subr.mxu0 0.0
    %1898 = vmatpush1.msra.mxu0 0.0
    %1899 = vmatprep.subr.mxu0 0.0
    %1900 = vmatpush1.msra.mxu0 0.0
    %1901 = vmatprep.subr.mxu0 0.0
    %1902 = vmatpush1.msra.mxu0 0.0
    %1903 = vmatprep.subr.mxu0 0.0
    %1904 = vmatpush1.msra.mxu0 0.0
    %1905 = vmatprep.subr.mxu0 0.0
    %1906 = vmatpush1.msra.mxu0 0.0
    %1907 = vmatprep.subr.mxu0 0.0
    %1908 = vmatpush1.msra.mxu0 0.0
    %1909 = vmatprep.subr.mxu0 0.0
    %1910 = vmatpush1.msra.mxu0 0.0
    %1911 = vmatprep.subr.mxu0 0.0
    %1912 = vmatpush1.msra.mxu0 0.0
    %1913 = vmatprep.subr.mxu0 0.0
    %1914 = vmatpush1.msra.mxu0 0.0
    %1915 = vmatprep.subr.mxu0 0.0
    %1916 = vmatpush1.msra.mxu0 0.0
    %1917 = vmatprep.subr.mxu0 0.0
    %1918 = vmatpush1.msra.mxu0 0.0
    %1919 = vmatprep.subr.mxu0 0.0
    %1920 = vmatpush1.msra.mxu0 0.0
    %1921 = vmatprep.subr.mxu0 0.0
    %1922 = vmatpush1.msra.mxu0 0.0
    %1923 = vmatprep.subr.mxu0 0.0
    %1924 = vmatpush1.msra.mxu0 0.0
    %1925 = vmatprep.subr.mxu0 0.0
    %1926 = vmatpush1.msra.mxu0 0.0
    %1927 = vmatprep.mubr.f32.mxu0 0.0
    %1928 = vmatmul.mubr.f32.gmra.mrb[0].mxu0 %v1861
    %v1929 = vpop.f32.mrb[0].mxu0
    %v1930 = vadd.f32 0.0, %v1929
    %v1931 = vpop.f32.mrb[0].mxu0
    %1932 = vdwg.mxu0
    %v1934 = vrot.slane %v1930, 2
    %v1936 = vadd.f32 %v1122, %v1934
    %v1937 = vxor.u32 %v1936, 2147483648
    %v1938 = vmul.f32 %v1937, 1.442695
    %v1939 = vpow.pop %v1938
    %v1940 = vadd.f32 %v1939, 1.0
    %v1941 = vrcp.pop %v1940
    %v1942 = vmul.f32 1.0, %v1941
    %v1943 = vtanh.pop %v1936
    %v1945 = vrot.slane %v1850, 6
    %v1947 = vmul.f32 %v1942, %v1945
    %1949 = vrot.lane.b32.xlu0 %v1943, 64
    %v1950 = vpop.permute.xlu0 %1949
    %v1952 = vmul.f32 %v1942, %v1950
    %1954 = vrot.lane.b32.xlu0 %v1952, 32
    %v1955 = vpop.permute.xlu0 %1954
    %v1957 = vadd.f32 %v1947, %v1955
    %v1958 = vtanh.pop %v1957
    %1960 = vrot.lane.b32.xlu0 %v1958, 64
    %v1961 = vpop.permute.xlu0 %1960
    %v1963 = vmul.f32 %v1942, %v1961
    %v1964 = vsel %vm1017, %v1219, %v1325
    %v1965 = vsel %vm1019, %v1964, %v1432
    %v1966 = vsel %vm95, %v1965, %v1539
    %v1967 = vsel %vm1017, %v1643, %v1749
    %v1968 = vsel %vm1019, %v1967, %v1856
    %v1969 = vsel %vm95, %v1968, %v1963
    %v1970 = vld [vmem:[#allocation4] sm:$0xff]
    %v1971 = vld [vmem:[#allocation4 + $0x8] sm:$0xff]
    %v1972 = vld [vmem:[#allocation4 + $0x10] sm:$0xff]
    %v1973 = vld [vmem:[#allocation4 + $0x18] sm:$0xff]
    %v1974 = vld [vmem:[#allocation6] sm:$0xff]
    %v1975 = vld [vmem:[#allocation6 + $0x8] sm:$0xff]
    %v1976 = vld [vmem:[#allocation6 + $0x10] sm:$0xff]
    %v1977 = vld [vmem:[#allocation6 + $0x18] sm:$0xff]
    %v1978 = vld [vmem:[%s9] sm:$0x1]
    %v1980 = vlaneseq
    %v1981 = vshrl.u32 %v1980, 7
    %v1982 = vsub.s32 0, %v1981
    %v1983 = vrot.slane %v1978, %v1982
    %1987 = vrot.lane.b32.xlu0 %v1966, 32
    %v1988 = vpop.permute.xlu0 %1987
    %1989 = vrot.lane.b32.xlu0 %v1969, 32
    %v1990 = vpop.permute.xlu0 %1989
    %v1991 = vsel %vm174, %v1988, 0
    %v1993 = vsel %vm174, %v1990, 0
    %1995 = vmatprep.subr.mxu0 0.0
    %1996 = vmatpush1.msra.mxu0 %v1970
    %1997 = vmatprep.subr.mxu0 0.0
    %1998 = vmatpush1.msra.mxu0 %v1971
    %1999 = vmatprep.subr.mxu0 0.0
    %2000 = vmatpush1.msra.mxu0 %v1972
    %2001 = vmatprep.subr.mxu0 0.0
    %2002 = vmatpush1.msra.mxu0 %v1973
    %2003 = vmatprep.subr.mxu0 0.0
    %2004 = vmatpush1.msra.mxu0 0.0
    %2005 = vmatprep.subr.mxu0 0.0
    %2006 = vmatpush1.msra.mxu0 0.0
    %2007 = vmatprep.subr.mxu0 0.0
    %2008 = vmatpush1.msra.mxu0 0.0
    %2009 = vmatprep.subr.mxu0 0.0
    %2010 = vmatpush1.msra.mxu0 0.0
    %2011 = vmatprep.subr.mxu0 0.0
    %2012 = vmatpush1.msra.mxu0 0.0
    %2013 = vmatprep.subr.mxu0 0.0
    %2014 = vmatpush1.msra.mxu0 0.0
    %2015 = vmatprep.subr.mxu0 0.0
    %2016 = vmatpush1.msra.mxu0 0.0
    %2017 = vmatprep.subr.mxu0 0.0
    %2018 = vmatpush1.msra.mxu0 0.0
    %2019 = vmatprep.subr.mxu0 0.0
    %2020 = vmatpush1.msra.mxu0 0.0
    %2021 = vmatprep.subr.mxu0 0.0
    %2022 = vmatpush1.msra.mxu0 0.0
    %2023 = vmatprep.subr.mxu0 0.0
    %2024 = vmatpush1.msra.mxu0 0.0
    %2025 = vmatprep.subr.mxu0 0.0
    %2026 = vmatpush1.msra.mxu0 0.0
    %2027 = vmatprep.subr.mxu0 0.0
    %2028 = vmatpush1.msra.mxu0 0.0
    %2029 = vmatprep.subr.mxu0 0.0
    %2030 = vmatpush1.msra.mxu0 0.0
    %2031 = vmatprep.subr.mxu0 0.0
    %2032 = vmatpush1.msra.mxu0 0.0
    %2033 = vmatprep.subr.mxu0 0.0
    %2034 = vmatpush1.msra.mxu0 0.0
    %2035 = vmatprep.subr.mxu0 0.0
    %2036 = vmatpush1.msra.mxu0 0.0
    %2037 = vmatprep.subr.mxu0 0.0
    %2038 = vmatpush1.msra.mxu0 0.0
    %2039 = vmatprep.subr.mxu0 0.0
    %2040 = vmatpush1.msra.mxu0 0.0
    %2041 = vmatprep.subr.mxu0 0.0
    %2042 = vmatpush1.msra.mxu0 0.0
    %2043 = vmatprep.subr.mxu0 0.0
    %2044 = vmatpush1.msra.mxu0 0.0
    %2045 = vmatprep.subr.mxu0 0.0
    %2046 = vmatpush1.msra.mxu0 0.0
    %2047 = vmatprep.subr.mxu0 0.0
    %2048 = vmatpush1.msra.mxu0 0.0
    %2049 = vmatprep.subr.mxu0 0.0
    %2050 = vmatpush1.msra.mxu0 0.0
    %2051 = vmatprep.subr.mxu0 0.0
    %2052 = vmatpush1.msra.mxu0 0.0
    %2053 = vmatprep.subr.mxu0 0.0
    %2054 = vmatpush1.msra.mxu0 0.0
    %2055 = vmatprep.subr.mxu0 0.0
    %2056 = vmatpush1.msra.mxu0 0.0
    %2057 = vmatprep.subr.mxu0 0.0
    %2058 = vmatpush1.msra.mxu0 0.0
    %2059 = vmatprep.mubr.f32.mxu0 0.0
    %2060 = vmatmul.mubr.f32.gmra.mrb[0].mxu0 %v1991
    %v2061 = vpop.f32.mrb[0].mxu0
    %v2062 = vadd.f32 %v1983, %v2061
    %v2063 = vpop.f32.mrb[0].mxu0
    %2064 = vmatprep.mubr.f32.mxu0 0.0
    %2065 = vmatmul.mubr.f32.gmra.mrb[0].mxu0 %v1993
    %v2066 = vpop.f32.mrb[0].mxu0
    %v2067 = vadd.f32 %v1983, %v2066
    %v2068 = vpop.f32.mrb[0].mxu0
    %2069 = vdwg.mxu0
    %2070 = vmatprep.subr.mxu0 0.0
    %2071 = vmatpush1.msra.mxu0 %v1974
    %2072 = vmatprep.subr.mxu0 0.0
    %2073 = vmatpush1.msra.mxu0 %v1975
    %2074 = vmatprep.subr.mxu0 0.0
    %2075 = vmatpush1.msra.mxu0 %v1976
    %2076 = vmatprep.subr.mxu0 0.0
    %2077 = vmatpush1.msra.mxu0 %v1977
    %2078 = vmatprep.subr.mxu0 0.0
    %2079 = vmatpush1.msra.mxu0 0.0
    %2080 = vmatprep.subr.mxu0 0.0
    %2081 = vmatpush1.msra.mxu0 0.0
    %2082 = vmatprep.subr.mxu0 0.0
    %2083 = vmatpush1.msra.mxu0 0.0
    %2084 = vmatprep.subr.mxu0 0.0
    %2085 = vmatpush1.msra.mxu0 0.0
    %2086 = vmatprep.subr.mxu0 0.0
    %2087 = vmatpush1.msra.mxu0 0.0
    %2088 = vmatprep.subr.mxu0 0.0
    %2089 = vmatpush1.msra.mxu0 0.0
    %2090 = vmatprep.subr.mxu0 0.0
    %2091 = vmatpush1.msra.mxu0 0.0
    %2092 = vmatprep.subr.mxu0 0.0
    %2093 = vmatpush1.msra.mxu0 0.0
    %2094 = vmatprep.subr.mxu0 0.0
    %2095 = vmatpush1.msra.mxu0 0.0
    %2096 = vmatprep.subr.mxu0 0.0
    %2097 = vmatpush1.msra.mxu0 0.0
    %2098 = vmatprep.subr.mxu0 0.0
    %2099 = vmatpush1.msra.mxu0 0.0
    %2100 = vmatprep.subr.mxu0 0.0
    %2101 = vmatpush1.msra.mxu0 0.0
    %2102 = vmatprep.subr.mxu0 0.0
    %2103 = vmatpush1.msra.mxu0 0.0
    %2104 = vmatprep.subr.mxu0 0.0
    %2105 = vmatpush1.msra.mxu0 0.0
    %2106 = vmatprep.subr.mxu0 0.0
    %2107 = vmatpush1.msra.mxu0 0.0
    %2108 = vmatprep.subr.mxu0 0.0
    %2109 = vmatpush1.msra.mxu0 0.0
    %2110 = vmatprep.subr.mxu0 0.0
    %2111 = vmatpush1.msra.mxu0 0.0
    %2112 = vmatprep.subr.mxu0 0.0
    %2113 = vmatpush1.msra.mxu0 0.0
    %2114 = vmatprep.subr.mxu0 0.0
    %2115 = vmatpush1.msra.mxu0 0.0
    %2116 = vmatprep.subr.mxu0 0.0
    %2117 = vmatpush1.msra.mxu0 0.0
    %2118 = vmatprep.subr.mxu0 0.0
    %2119 = vmatpush1.msra.mxu0 0.0
    %2120 = vmatprep.subr.mxu0 0.0
    %2121 = vmatpush1.msra.mxu0 0.0
    %2122 = vmatprep.subr.mxu0 0.0
    %2123 = vmatpush1.msra.mxu0 0.0
    %2124 = vmatprep.subr.mxu0 0.0
    %2125 = vmatpush1.msra.mxu0 0.0
    %2126 = vmatprep.subr.mxu0 0.0
    %2127 = vmatpush1.msra.mxu0 0.0
    %2128 = vmatprep.subr.mxu0 0.0
    %2129 = vmatpush1.msra.mxu0 0.0
    %2130 = vmatprep.subr.mxu0 0.0
    %2131 = vmatpush1.msra.mxu0 0.0
    %2132 = vmatprep.subr.mxu0 0.0
    %2133 = vmatpush1.msra.mxu0 0.0
    %2134 = vmatprep.mubr.f32.mxu0 0.0
    %2135 = vmatmul.mubr.f32.gmra.mrb[0].mxu0 %v176
    %v2136 = vpop.f32.mrb[0].mxu0
    %v2137 = vadd.f32 0.0, %v2136
    %v2138 = vpop.f32.mrb[0].mxu0
    %2139 = vdwg.mxu0
    %v2140 = vadd.f32 %v2062, %v2137
    %v2141 = vxor.u32 %v2140, 2147483648
    %v2142 = vmul.f32 %v2141, 1.442695
    %v2143 = vpow.pop %v2142
    %v2144 = vadd.f32 %v2143, 1.0
    %v2145 = vrcp.pop %v2144
    %v2146 = vmul.f32 1.0, %v2145
    %v2147 = vtanh.pop %v2140
    %v2148 = vmul.f32 %v2146, 0.0
    %2150 = vrot.lane.b32.xlu0 %v2147, 64
    %v2151 = vpop.permute.xlu0 %2150
    %v2153 = vmul.f32 %v2146, %v2151
    %2155 = vrot.lane.b32.xlu0 %v2153, 32
    %v2156 = vpop.permute.xlu0 %2155
    %v2158 = vadd.f32 %v2148, %v2156
    %v2159 = vtanh.pop %v2158
    %2161 = vrot.lane.b32.xlu0 %v2159, 64
    %v2162 = vpop.permute.xlu0 %2161
    %v2164 = vmul.f32 %v2146, %v2162
    %2166 = vrot.lane.b32.xlu0 %v2164, 32
    %v2167 = vpop.permute.xlu0 %2166
    %v2168 = vsel %vm174, %v2167, 0
    %2170 = vmatprep.subr.mxu0 0.0
    %2171 = vmatpush1.msra.mxu0 %v1974
    %2172 = vmatprep.subr.mxu0 0.0
    %2173 = vmatpush1.msra.mxu0 %v1975
    %2174 = vmatprep.subr.mxu0 0.0
    %2175 = vmatpush1.msra.mxu0 %v1976
    %2176 = vmatprep.subr.mxu0 0.0
    %2177 = vmatpush1.msra.mxu0 %v1977
    %2178 = vmatprep.subr.mxu0 0.0
    %2179 = vmatpush1.msra.mxu0 0.0
    %2180 = vmatprep.subr.mxu0 0.0
    %2181 = vmatpush1.msra.mxu0 0.0
    %2182 = vmatprep.subr.mxu0 0.0
    %2183 = vmatpush1.msra.mxu0 0.0
    %2184 = vmatprep.subr.mxu0 0.0
    %2185 = vmatpush1.msra.mxu0 0.0
    %2186 = vmatprep.subr.mxu0 0.0
    %2187 = vmatpush1.msra.mxu0 0.0
    %2188 = vmatprep.subr.mxu0 0.0
    %2189 = vmatpush1.msra.mxu0 0.0
    %2190 = vmatprep.subr.mxu0 0.0
    %2191 = vmatpush1.msra.mxu0 0.0
    %2192 = vmatprep.subr.mxu0 0.0
    %2193 = vmatpush1.msra.mxu0 0.0
    %2194 = vmatprep.subr.mxu0 0.0
    %2195 = vmatpush1.msra.mxu0 0.0
    %2196 = vmatprep.subr.mxu0 0.0
    %2197 = vmatpush1.msra.mxu0 0.0
    %2198 = vmatprep.subr.mxu0 0.0
    %2199 = vmatpush1.msra.mxu0 0.0
    %2200 = vmatprep.subr.mxu0 0.0
    %2201 = vmatpush1.msra.mxu0 0.0
    %2202 = vmatprep.subr.mxu0 0.0
    %2203 = vmatpush1.msra.mxu0 0.0
    %2204 = vmatprep.subr.mxu0 0.0
    %2205 = vmatpush1.msra.mxu0 0.0
    %2206 = vmatprep.subr.mxu0 0.0
    %2207 = vmatpush1.msra.mxu0 0.0
    %2208 = vmatprep.subr.mxu0 0.0
    %2209 = vmatpush1.msra.mxu0 0.0
    %2210 = vmatprep.subr.mxu0 0.0
    %2211 = vmatpush1.msra.mxu0 0.0
    %2212 = vmatprep.subr.mxu0 0.0
    %2213 = vmatpush1.msra.mxu0 0.0
    %2214 = vmatprep.subr.mxu0 0.0
    %2215 = vmatpush1.msra.mxu0 0.0
    %2216 = vmatprep.subr.mxu0 0.0
    %2217 = vmatpush1.msra.mxu0 0.0
    %2218 = vmatprep.subr.mxu0 0.0
    %2219 = vmatpush1.msra.mxu0 0.0
    %2220 = vmatprep.subr.mxu0 0.0
    %2221 = vmatpush1.msra.mxu0 0.0
    %2222 = vmatprep.subr.mxu0 0.0
    %2223 = vmatpush1.msra.mxu0 0.0
    %2224 = vmatprep.subr.mxu0 0.0
    %2225 = vmatpush1.msra.mxu0 0.0
    %2226 = vmatprep.subr.mxu0 0.0
    %2227 = vmatpush1.msra.mxu0 0.0
    %2228 = vmatprep.subr.mxu0 0.0
    %2229 = vmatpush1.msra.mxu0 0.0
    %2230 = vmatprep.subr.mxu0 0.0
    %2231 = vmatpush1.msra.mxu0 0.0
    %2232 = vmatprep.subr.mxu0 0.0
    %2233 = vmatpush1.msra.mxu0 0.0
    %2234 = vmatprep.mubr.f32.mxu0 0.0
    %2235 = vmatmul.mubr.f32.gmra.mrb[0].mxu0 %v2168
    %v2236 = vpop.f32.mrb[0].mxu0
    %v2237 = vadd.f32 0.0, %v2236
    %v2238 = vpop.f32.mrb[0].mxu0
    %2239 = vdwg.mxu0
    %v2241 = vrot.slane %v2237, 6
    %v2243 = vadd.f32 %v2062, %v2241
    %v2244 = vxor.u32 %v2243, 2147483648
    %v2245 = vmul.f32 %v2244, 1.442695
    %v2246 = vpow.pop %v2245
    %v2247 = vadd.f32 %v2246, 1.0
    %v2248 = vrcp.pop %v2247
    %v2249 = vmul.f32 1.0, %v2248
    %v2250 = vtanh.pop %v2243
    %v2252 = vrot.slane %v2158, 6
    %v2254 = vmul.f32 %v2249, %v2252
    %2256 = vrot.lane.b32.xlu0 %v2250, 64
    %v2257 = vpop.permute.xlu0 %2256
    %v2259 = vmul.f32 %v2249, %v2257
    %2261 = vrot.lane.b32.xlu0 %v2259, 32
    %v2262 = vpop.permute.xlu0 %2261
    %v2264 = vadd.f32 %v2254, %v2262
    %v2265 = vtanh.pop %v2264
    %2267 = vrot.lane.b32.xlu0 %v2265, 64
    %v2268 = vpop.permute.xlu0 %2267
    %v2270 = vmul.f32 %v2249, %v2268
    %v2272 = vrot.slane %v2270, 2
    %2273 = vrot.lane.b32.xlu0 %v2272, 32
    %v2274 = vpop.permute.xlu0 %2273
    %v2275 = vsel %vm174, %v2274, 0
    %2277 = vmatprep.subr.mxu0 0.0
    %2278 = vmatpush1.msra.mxu0 %v1974
    %2279 = vmatprep.subr.mxu0 0.0
    %2280 = vmatpush1.msra.mxu0 %v1975
    %2281 = vmatprep.subr.mxu0 0.0
    %2282 = vmatpush1.msra.mxu0 %v1976
    %2283 = vmatprep.subr.mxu0 0.0
    %2284 = vmatpush1.msra.mxu0 %v1977
    %2285 = vmatprep.subr.mxu0 0.0
    %2286 = vmatpush1.msra.mxu0 0.0
    %2287 = vmatprep.subr.mxu0 0.0
    %2288 = vmatpush1.msra.mxu0 0.0
    %2289 = vmatprep.subr.mxu0 0.0
    %2290 = vmatpush1.msra.mxu0 0.0
    %2291 = vmatprep.subr.mxu0 0.0
    %2292 = vmatpush1.msra.mxu0 0.0
    %2293 = vmatprep.subr.mxu0 0.0
    %2294 = vmatpush1.msra.mxu0 0.0
    %2295 = vmatprep.subr.mxu0 0.0
    %2296 = vmatpush1.msra.mxu0 0.0
    %2297 = vmatprep.subr.mxu0 0.0
    %2298 = vmatpush1.msra.mxu0 0.0
    %2299 = vmatprep.subr.mxu0 0.0
    %2300 = vmatpush1.msra.mxu0 0.0
    %2301 = vmatprep.subr.mxu0 0.0
    %2302 = vmatpush1.msra.mxu0 0.0
    %2303 = vmatprep.subr.mxu0 0.0
    %2304 = vmatpush1.msra.mxu0 0.0
    %2305 = vmatprep.subr.mxu0 0.0
    %2306 = vmatpush1.msra.mxu0 0.0
    %2307 = vmatprep.subr.mxu0 0.0
    %2308 = vmatpush1.msra.mxu0 0.0
    %2309 = vmatprep.subr.mxu0 0.0
    %2310 = vmatpush1.msra.mxu0 0.0
    %2311 = vmatprep.subr.mxu0 0.0
    %2312 = vmatpush1.msra.mxu0 0.0
    %2313 = vmatprep.subr.mxu0 0.0
    %2314 = vmatpush1.msra.mxu0 0.0
    %2315 = vmatprep.subr.mxu0 0.0
    %2316 = vmatpush1.msra.mxu0 0.0
    %2317 = vmatprep.subr.mxu0 0.0
    %2318 = vmatpush1.msra.mxu0 0.0
    %2319 = vmatprep.subr.mxu0 0.0
    %2320 = vmatpush1.msra.mxu0 0.0
    %2321 = vmatprep.subr.mxu0 0.0
    %2322 = vmatpush1.msra.mxu0 0.0
    %2323 = vmatprep.subr.mxu0 0.0
    %2324 = vmatpush1.msra.mxu0 0.0
    %2325 = vmatprep.subr.mxu0 0.0
    %2326 = vmatpush1.msra.mxu0 0.0
    %2327 = vmatprep.subr.mxu0 0.0
    %2328 = vmatpush1.msra.mxu0 0.0
    %2329 = vmatprep.subr.mxu0 0.0
    %2330 = vmatpush1.msra.mxu0 0.0
    %2331 = vmatprep.subr.mxu0 0.0
    %2332 = vmatpush1.msra.mxu0 0.0
    %2333 = vmatprep.subr.mxu0 0.0
    %2334 = vmatpush1.msra.mxu0 0.0
    %2335 = vmatprep.subr.mxu0 0.0
    %2336 = vmatpush1.msra.mxu0 0.0
    %2337 = vmatprep.subr.mxu0 0.0
    %2338 = vmatpush1.msra.mxu0 0.0
    %2339 = vmatprep.subr.mxu0 0.0
    %2340 = vmatpush1.msra.mxu0 0.0
    %2341 = vmatprep.mubr.f32.mxu0 0.0
    %2342 = vmatmul.mubr.f32.gmra.mrb[0].mxu0 %v2275
    %v2343 = vpop.f32.mrb[0].mxu0
    %v2344 = vadd.f32 0.0, %v2343
    %v2345 = vpop.f32.mrb[0].mxu0
    %2346 = vdwg.mxu0
    %v2348 = vrot.slane %v2344, 4
    %v2350 = vadd.f32 %v2062, %v2348
    %v2351 = vxor.u32 %v2350, 2147483648
    %v2352 = vmul.f32 %v2351, 1.442695
    %v2353 = vpow.pop %v2352
    %v2354 = vadd.f32 %v2353, 1.0
    %v2355 = vrcp.pop %v2354
    %v2356 = vmul.f32 1.0, %v2355
    %v2357 = vtanh.pop %v2350
    %v2359 = vrot.slane %v2264, 6
    %v2361 = vmul.f32 %v2356, %v2359
    %2363 = vrot.lane.b32.xlu0 %v2357, 64
    %v2364 = vpop.permute.xlu0 %2363
    %v2366 = vmul.f32 %v2356, %v2364
    %2368 = vrot.lane.b32.xlu0 %v2366, 32
    %v2369 = vpop.permute.xlu0 %2368
    %v2371 = vadd.f32 %v2361, %v2369
    %v2372 = vtanh.pop %v2371
    %2374 = vrot.lane.b32.xlu0 %v2372, 64
    %v2375 = vpop.permute.xlu0 %2374
    %v2377 = vmul.f32 %v2356, %v2375
    %v2379 = vrot.slane %v2377, 4
    %2380 = vrot.lane.b32.xlu0 %v2379, 32
    %v2381 = vpop.permute.xlu0 %2380
    %v2382 = vsel %vm174, %v2381, 0
    %2384 = vmatprep.subr.mxu0 0.0
    %2385 = vmatpush1.msra.mxu0 %v1974
    %2386 = vmatprep.subr.mxu0 0.0
    %2387 = vmatpush1.msra.mxu0 %v1975
    %2388 = vmatprep.subr.mxu0 0.0
    %2389 = vmatpush1.msra.mxu0 %v1976
    %2390 = vmatprep.subr.mxu0 0.0
    %2391 = vmatpush1.msra.mxu0 %v1977
    %2392 = vmatprep.subr.mxu0 0.0
    %2393 = vmatpush1.msra.mxu0 0.0
    %2394 = vmatprep.subr.mxu0 0.0
    %2395 = vmatpush1.msra.mxu0 0.0
    %2396 = vmatprep.subr.mxu0 0.0
    %2397 = vmatpush1.msra.mxu0 0.0
    %2398 = vmatprep.subr.mxu0 0.0
    %2399 = vmatpush1.msra.mxu0 0.0
    %2400 = vmatprep.subr.mxu0 0.0
    %2401 = vmatpush1.msra.mxu0 0.0
    %2402 = vmatprep.subr.mxu0 0.0
    %2403 = vmatpush1.msra.mxu0 0.0
    %2404 = vmatprep.subr.mxu0 0.0
    %2405 = vmatpush1.msra.mxu0 0.0
    %2406 = vmatprep.subr.mxu0 0.0
    %2407 = vmatpush1.msra.mxu0 0.0
    %2408 = vmatprep.subr.mxu0 0.0
    %2409 = vmatpush1.msra.mxu0 0.0
    %2410 = vmatprep.subr.mxu0 0.0
    %2411 = vmatpush1.msra.mxu0 0.0
    %2412 = vmatprep.subr.mxu0 0.0
    %2413 = vmatpush1.msra.mxu0 0.0
    %2414 = vmatprep.subr.mxu0 0.0
    %2415 = vmatpush1.msra.mxu0 0.0
    %2416 = vmatprep.subr.mxu0 0.0
    %2417 = vmatpush1.msra.mxu0 0.0
    %2418 = vmatprep.subr.mxu0 0.0
    %2419 = vmatpush1.msra.mxu0 0.0
    %2420 = vmatprep.subr.mxu0 0.0
    %2421 = vmatpush1.msra.mxu0 0.0
    %2422 = vmatprep.subr.mxu0 0.0
    %2423 = vmatpush1.msra.mxu0 0.0
    %2424 = vmatprep.subr.mxu0 0.0
    %2425 = vmatpush1.msra.mxu0 0.0
    %2426 = vmatprep.subr.mxu0 0.0
    %2427 = vmatpush1.msra.mxu0 0.0
    %2428 = vmatprep.subr.mxu0 0.0
    %2429 = vmatpush1.msra.mxu0 0.0
    %2430 = vmatprep.subr.mxu0 0.0
    %2431 = vmatpush1.msra.mxu0 0.0
    %2432 = vmatprep.subr.mxu0 0.0
    %2433 = vmatpush1.msra.mxu0 0.0
    %2434 = vmatprep.subr.mxu0 0.0
    %2435 = vmatpush1.msra.mxu0 0.0
    %2436 = vmatprep.subr.mxu0 0.0
    %2437 = vmatpush1.msra.mxu0 0.0
    %2438 = vmatprep.subr.mxu0 0.0
    %2439 = vmatpush1.msra.mxu0 0.0
    %2440 = vmatprep.subr.mxu0 0.0
    %2441 = vmatpush1.msra.mxu0 0.0
    %2442 = vmatprep.subr.mxu0 0.0
    %2443 = vmatpush1.msra.mxu0 0.0
    %2444 = vmatprep.subr.mxu0 0.0
    %2445 = vmatpush1.msra.mxu0 0.0
    %2446 = vmatprep.subr.mxu0 0.0
    %2447 = vmatpush1.msra.mxu0 0.0
    %2448 = vmatprep.mubr.f32.mxu0 0.0
    %2449 = vmatmul.mubr.f32.gmra.mrb[0].mxu0 %v2382
    %v2450 = vpop.f32.mrb[0].mxu0
    %v2451 = vadd.f32 0.0, %v2450
    %v2452 = vpop.f32.mrb[0].mxu0
    %2453 = vdwg.mxu0
    %v2455 = vrot.slane %v2451, 2
    %v2457 = vadd.f32 %v2062, %v2455
    %v2458 = vxor.u32 %v2457, 2147483648
    %v2459 = vmul.f32 %v2458, 1.442695
    %v2460 = vpow.pop %v2459
    %v2461 = vadd.f32 %v2460, 1.0
    %v2462 = vrcp.pop %v2461
    %v2463 = vmul.f32 1.0, %v2462
    %v2464 = vtanh.pop %v2457
    %v2466 = vrot.slane %v2371, 6
    %v2468 = vmul.f32 %v2463, %v2466
    %2470 = vrot.lane.b32.xlu0 %v2464, 64
    %v2471 = vpop.permute.xlu0 %2470
    %v2473 = vmul.f32 %v2463, %v2471
    %2475 = vrot.lane.b32.xlu0 %v2473, 32
    %v2476 = vpop.permute.xlu0 %2475
    %v2478 = vadd.f32 %v2468, %v2476
    %v2479 = vtanh.pop %v2478
    %2481 = vrot.lane.b32.xlu0 %v2479, 64
    %v2482 = vpop.permute.xlu0 %2481
    %v2484 = vmul.f32 %v2463, %v2482
    %v2486 = vrot.slane %v2484, 6
    %2487 = vrot.lane.b32.xlu0 %v2486, 32
    %v2488 = vpop.permute.xlu0 %2487
    %v2489 = vsel %vm174, %v2488, 0
    %2491 = vmatprep.subr.mxu0 0.0
    %2492 = vmatpush1.msra.mxu0 %v1974
    %2493 = vmatprep.subr.mxu0 0.0
    %2494 = vmatpush1.msra.mxu0 %v1975
    %2495 = vmatprep.subr.mxu0 0.0
    %2496 = vmatpush1.msra.mxu0 %v1976
    %2497 = vmatprep.subr.mxu0 0.0
    %2498 = vmatpush1.msra.mxu0 %v1977
    %2499 = vmatprep.subr.mxu0 0.0
    %2500 = vmatpush1.msra.mxu0 0.0
    %2501 = vmatprep.subr.mxu0 0.0
    %2502 = vmatpush1.msra.mxu0 0.0
    %2503 = vmatprep.subr.mxu0 0.0
    %2504 = vmatpush1.msra.mxu0 0.0
    %2505 = vmatprep.subr.mxu0 0.0
    %2506 = vmatpush1.msra.mxu0 0.0
    %2507 = vmatprep.subr.mxu0 0.0
    %2508 = vmatpush1.msra.mxu0 0.0
    %2509 = vmatprep.subr.mxu0 0.0
    %2510 = vmatpush1.msra.mxu0 0.0
    %2511 = vmatprep.subr.mxu0 0.0
    %2512 = vmatpush1.msra.mxu0 0.0
    %2513 = vmatprep.subr.mxu0 0.0
    %2514 = vmatpush1.msra.mxu0 0.0
    %2515 = vmatprep.subr.mxu0 0.0
    %2516 = vmatpush1.msra.mxu0 0.0
    %2517 = vmatprep.subr.mxu0 0.0
    %2518 = vmatpush1.msra.mxu0 0.0
    %2519 = vmatprep.subr.mxu0 0.0
    %2520 = vmatpush1.msra.mxu0 0.0
    %2521 = vmatprep.subr.mxu0 0.0
    %2522 = vmatpush1.msra.mxu0 0.0
    %2523 = vmatprep.subr.mxu0 0.0
    %2524 = vmatpush1.msra.mxu0 0.0
    %2525 = vmatprep.subr.mxu0 0.0
    %2526 = vmatpush1.msra.mxu0 0.0
    %2527 = vmatprep.subr.mxu0 0.0
    %2528 = vmatpush1.msra.mxu0 0.0
    %2529 = vmatprep.subr.mxu0 0.0
    %2530 = vmatpush1.msra.mxu0 0.0
    %2531 = vmatprep.subr.mxu0 0.0
    %2532 = vmatpush1.msra.mxu0 0.0
    %2533 = vmatprep.subr.mxu0 0.0
    %2534 = vmatpush1.msra.mxu0 0.0
    %2535 = vmatprep.subr.mxu0 0.0
    %2536 = vmatpush1.msra.mxu0 0.0
    %2537 = vmatprep.subr.mxu0 0.0
    %2538 = vmatpush1.msra.mxu0 0.0
    %2539 = vmatprep.subr.mxu0 0.0
    %2540 = vmatpush1.msra.mxu0 0.0
    %2541 = vmatprep.subr.mxu0 0.0
    %2542 = vmatpush1.msra.mxu0 0.0
    %2543 = vmatprep.subr.mxu0 0.0
    %2544 = vmatpush1.msra.mxu0 0.0
    %2545 = vmatprep.subr.mxu0 0.0
    %2546 = vmatpush1.msra.mxu0 0.0
    %2547 = vmatprep.subr.mxu0 0.0
    %2548 = vmatpush1.msra.mxu0 0.0
    %2549 = vmatprep.subr.mxu0 0.0
    %2550 = vmatpush1.msra.mxu0 0.0
    %2551 = vmatprep.subr.mxu0 0.0
    %2552 = vmatpush1.msra.mxu0 0.0
    %2553 = vmatprep.subr.mxu0 0.0
    %2554 = vmatpush1.msra.mxu0 0.0
    %2555 = vmatprep.mubr.f32.mxu0 0.0
    %2556 = vmatmul.mubr.f32.gmra.mrb[0].mxu0 %v2489
    %v2557 = vpop.f32.mrb[0].mxu0
    %v2558 = vadd.f32 0.0, %v2557
    %v2559 = vpop.f32.mrb[0].mxu0
    %2560 = vdwg.mxu0
    %v2561 = vadd.f32 %v2067, %v2558
    %v2562 = vxor.u32 %v2561, 2147483648
    %v2563 = vmul.f32 %v2562, 1.442695
    %v2564 = vpow.pop %v2563
    %v2565 = vadd.f32 %v2564, 1.0
    %v2566 = vrcp.pop %v2565
    %v2567 = vmul.f32 1.0, %v2566
    %v2568 = vtanh.pop %v2561
    %v2570 = vrot.slane %v2478, 6
    %v2572 = vmul.f32 %v2567, %v2570
    %2574 = vrot.lane.b32.xlu0 %v2568, 64
    %v2575 = vpop.permute.xlu0 %2574
    %v2577 = vmul.f32 %v2567, %v2575
    %2579 = vrot.lane.b32.xlu0 %v2577, 32
    %v2580 = vpop.permute.xlu0 %2579
    %v2582 = vadd.f32 %v2572, %v2580
    %v2583 = vtanh.pop %v2582
    %2585 = vrot.lane.b32.xlu0 %v2583, 64
    %v2586 = vpop.permute.xlu0 %2585
    %v2588 = vmul.f32 %v2567, %v2586
    %2590 = vrot.lane.b32.xlu0 %v2588, 32
    %v2591 = vpop.permute.xlu0 %2590
    %v2592 = vsel %vm174, %v2591, 0
    %2594 = vmatprep.subr.mxu0 0.0
    %2595 = vmatpush1.msra.mxu0 %v1974
    %2596 = vmatprep.subr.mxu0 0.0
    %2597 = vmatpush1.msra.mxu0 %v1975
    %2598 = vmatprep.subr.mxu0 0.0
    %2599 = vmatpush1.msra.mxu0 %v1976
    %2600 = vmatprep.subr.mxu0 0.0
    %2601 = vmatpush1.msra.mxu0 %v1977
    %2602 = vmatprep.subr.mxu0 0.0
    %2603 = vmatpush1.msra.mxu0 0.0
    %2604 = vmatprep.subr.mxu0 0.0
    %2605 = vmatpush1.msra.mxu0 0.0
    %2606 = vmatprep.subr.mxu0 0.0
    %2607 = vmatpush1.msra.mxu0 0.0
    %2608 = vmatprep.subr.mxu0 0.0
    %2609 = vmatpush1.msra.mxu0 0.0
    %2610 = vmatprep.subr.mxu0 0.0
    %2611 = vmatpush1.msra.mxu0 0.0
    %2612 = vmatprep.subr.mxu0 0.0
    %2613 = vmatpush1.msra.mxu0 0.0
    %2614 = vmatprep.subr.mxu0 0.0
    %2615 = vmatpush1.msra.mxu0 0.0
    %2616 = vmatprep.subr.mxu0 0.0
    %2617 = vmatpush1.msra.mxu0 0.0
    %2618 = vmatprep.subr.mxu0 0.0
    %2619 = vmatpush1.msra.mxu0 0.0
    %2620 = vmatprep.subr.mxu0 0.0
    %2621 = vmatpush1.msra.mxu0 0.0
    %2622 = vmatprep.subr.mxu0 0.0
    %2623 = vmatpush1.msra.mxu0 0.0
    %2624 = vmatprep.subr.mxu0 0.0
    %2625 = vmatpush1.msra.mxu0 0.0
    %2626 = vmatprep.subr.mxu0 0.0
    %2627 = vmatpush1.msra.mxu0 0.0
    %2628 = vmatprep.subr.mxu0 0.0
    %2629 = vmatpush1.msra.mxu0 0.0
    %2630 = vmatprep.subr.mxu0 0.0
    %2631 = vmatpush1.msra.mxu0 0.0
    %2632 = vmatprep.subr.mxu0 0.0
    %2633 = vmatpush1.msra.mxu0 0.0
    %2634 = vmatprep.subr.mxu0 0.0
    %2635 = vmatpush1.msra.mxu0 0.0
    %2636 = vmatprep.subr.mxu0 0.0
    %2637 = vmatpush1.msra.mxu0 0.0
    %2638 = vmatprep.subr.mxu0 0.0
    %2639 = vmatpush1.msra.mxu0 0.0
    %2640 = vmatprep.subr.mxu0 0.0
    %2641 = vmatpush1.msra.mxu0 0.0
    %2642 = vmatprep.subr.mxu0 0.0
    %2643 = vmatpush1.msra.mxu0 0.0
    %2644 = vmatprep.subr.mxu0 0.0
    %2645 = vmatpush1.msra.mxu0 0.0
    %2646 = vmatprep.subr.mxu0 0.0
    %2647 = vmatpush1.msra.mxu0 0.0
    %2648 = vmatprep.subr.mxu0 0.0
    %2649 = vmatpush1.msra.mxu0 0.0
    %2650 = vmatprep.subr.mxu0 0.0
    %2651 = vmatpush1.msra.mxu0 0.0
    %2652 = vmatprep.subr.mxu0 0.0
    %2653 = vmatpush1.msra.mxu0 0.0
    %2654 = vmatprep.subr.mxu0 0.0
    %2655 = vmatpush1.msra.mxu0 0.0
    %2656 = vmatprep.subr.mxu0 0.0
    %2657 = vmatpush1.msra.mxu0 0.0
    %2658 = vmatprep.mubr.f32.mxu0 0.0
    %2659 = vmatmul.mubr.f32.gmra.mrb[0].mxu0 %v2592
    %v2660 = vpop.f32.mrb[0].mxu0
    %v2661 = vadd.f32 0.0, %v2660
    %v2662 = vpop.f32.mrb[0].mxu0
    %2663 = vdwg.mxu0
    %v2665 = vrot.slane %v2661, 6
    %v2667 = vadd.f32 %v2067, %v2665
    %v2668 = vxor.u32 %v2667, 2147483648
    %v2669 = vmul.f32 %v2668, 1.442695
    %v2670 = vpow.pop %v2669
    %v2671 = vadd.f32 %v2670, 1.0
    %v2672 = vrcp.pop %v2671
    %v2673 = vmul.f32 1.0, %v2672
    %v2674 = vtanh.pop %v2667
    %v2676 = vrot.slane %v2582, 6
    %v2678 = vmul.f32 %v2673, %v2676
    %2680 = vrot.lane.b32.xlu0 %v2674, 64
    %v2681 = vpop.permute.xlu0 %2680
    %v2683 = vmul.f32 %v2673, %v2681
    %2685 = vrot.lane.b32.xlu0 %v2683, 32
    %v2686 = vpop.permute.xlu0 %2685
    %v2688 = vadd.f32 %v2678, %v2686
    %v2689 = vtanh.pop %v2688
    %2691 = vrot.lane.b32.xlu0 %v2689, 64
    %v2692 = vpop.permute.xlu0 %2691
    %v2694 = vmul.f32 %v2673, %v2692
    %v2696 = vrot.slane %v2694, 2
    %2697 = vrot.lane.b32.xlu0 %v2696, 32
    %v2698 = vpop.permute.xlu0 %2697
    %v2699 = vsel %vm174, %v2698, 0
    %2701 = vmatprep.subr.mxu0 0.0
    %2702 = vmatpush1.msra.mxu0 %v1974
    %2703 = vmatprep.subr.mxu0 0.0
    %2704 = vmatpush1.msra.mxu0 %v1975
    %2705 = vmatprep.subr.mxu0 0.0
    %2706 = vmatpush1.msra.mxu0 %v1976
    %2707 = vmatprep.subr.mxu0 0.0
    %2708 = vmatpush1.msra.mxu0 %v1977
    %2709 = vmatprep.subr.mxu0 0.0
    %2710 = vmatpush1.msra.mxu0 0.0
    %2711 = vmatprep.subr.mxu0 0.0
    %2712 = vmatpush1.msra.mxu0 0.0
    %2713 = vmatprep.subr.mxu0 0.0
    %2714 = vmatpush1.msra.mxu0 0.0
    %2715 = vmatprep.subr.mxu0 0.0
    %2716 = vmatpush1.msra.mxu0 0.0
    %2717 = vmatprep.subr.mxu0 0.0
    %2718 = vmatpush1.msra.mxu0 0.0
    %2719 = vmatprep.subr.mxu0 0.0
    %2720 = vmatpush1.msra.mxu0 0.0
    %2721 = vmatprep.subr.mxu0 0.0
    %2722 = vmatpush1.msra.mxu0 0.0
    %2723 = vmatprep.subr.mxu0 0.0
    %2724 = vmatpush1.msra.mxu0 0.0
    %2725 = vmatprep.subr.mxu0 0.0
    %2726 = vmatpush1.msra.mxu0 0.0
    %2727 = vmatprep.subr.mxu0 0.0
    %2728 = vmatpush1.msra.mxu0 0.0
    %2729 = vmatprep.subr.mxu0 0.0
    %2730 = vmatpush1.msra.mxu0 0.0
    %2731 = vmatprep.subr.mxu0 0.0
    %2732 = vmatpush1.msra.mxu0 0.0
    %2733 = vmatprep.subr.mxu0 0.0
    %2734 = vmatpush1.msra.mxu0 0.0
    %2735 = vmatprep.subr.mxu0 0.0
    %2736 = vmatpush1.msra.mxu0 0.0
    %2737 = vmatprep.subr.mxu0 0.0
    %2738 = vmatpush1.msra.mxu0 0.0
    %2739 = vmatprep.subr.mxu0 0.0
    %2740 = vmatpush1.msra.mxu0 0.0
    %2741 = vmatprep.subr.mxu0 0.0
    %2742 = vmatpush1.msra.mxu0 0.0
    %2743 = vmatprep.subr.mxu0 0.0
    %2744 = vmatpush1.msra.mxu0 0.0
    %2745 = vmatprep.subr.mxu0 0.0
    %2746 = vmatpush1.msra.mxu0 0.0
    %2747 = vmatprep.subr.mxu0 0.0
    %2748 = vmatpush1.msra.mxu0 0.0
    %2749 = vmatprep.subr.mxu0 0.0
    %2750 = vmatpush1.msra.mxu0 0.0
    %2751 = vmatprep.subr.mxu0 0.0
    %2752 = vmatpush1.msra.mxu0 0.0
    %2753 = vmatprep.subr.mxu0 0.0
    %2754 = vmatpush1.msra.mxu0 0.0
    %2755 = vmatprep.subr.mxu0 0.0
    %2756 = vmatpush1.msra.mxu0 0.0
    %2757 = vmatprep.subr.mxu0 0.0
    %2758 = vmatpush1.msra.mxu0 0.0
    %2759 = vmatprep.subr.mxu0 0.0
    %2760 = vmatpush1.msra.mxu0 0.0
    %2761 = vmatprep.subr.mxu0 0.0
    %2762 = vmatpush1.msra.mxu0 0.0
    %2763 = vmatprep.subr.mxu0 0.0
    %2764 = vmatpush1.msra.mxu0 0.0
    %2765 = vmatprep.mubr.f32.mxu0 0.0
    %2766 = vmatmul.mubr.f32.gmra.mrb[0].mxu0 %v2699
    %v2767 = vpop.f32.mrb[0].mxu0
    %v2768 = vadd.f32 0.0, %v2767
    %v2769 = vpop.f32.mrb[0].mxu0
    %2770 = vdwg.mxu0
    %v2772 = vrot.slane %v2768, 4
    %v2774 = vadd.f32 %v2067, %v2772
    %v2775 = vxor.u32 %v2774, 2147483648
    %v2776 = vmul.f32 %v2775, 1.442695
    %v2777 = vpow.pop %v2776
    %v2778 = vadd.f32 %v2777, 1.0
    %v2779 = vrcp.pop %v2778
    %v2780 = vmul.f32 1.0, %v2779
    %v2781 = vtanh.pop %v2774
    %v2783 = vrot.slane %v2688, 6
    %v2785 = vmul.f32 %v2780, %v2783
    %2787 = vrot.lane.b32.xlu0 %v2781, 64
    %v2788 = vpop.permute.xlu0 %2787
    %v2790 = vmul.f32 %v2780, %v2788
    %2792 = vrot.lane.b32.xlu0 %v2790, 32
    %v2793 = vpop.permute.xlu0 %2792
    %v2795 = vadd.f32 %v2785, %v2793
    %v2796 = vtanh.pop %v2795
    %2798 = vrot.lane.b32.xlu0 %v2796, 64
    %v2799 = vpop.permute.xlu0 %2798
    %v2801 = vmul.f32 %v2780, %v2799
    %v2803 = vrot.slane %v2801, 4
    %2804 = vrot.lane.b32.xlu0 %v2803, 32
    %v2805 = vpop.permute.xlu0 %2804
    %v2806 = vsel %vm174, %v2805, 0
    %2808 = vmatprep.subr.mxu0 0.0
    %2809 = vmatpush1.msra.mxu0 %v1974
    %2810 = vmatprep.subr.mxu0 0.0
    %2811 = vmatpush1.msra.mxu0 %v1975
    %2812 = vmatprep.subr.mxu0 0.0
    %2813 = vmatpush1.msra.mxu0 %v1976
    %2814 = vmatprep.subr.mxu0 0.0
    %2815 = vmatpush1.msra.mxu0 %v1977
    %2816 = vmatprep.subr.mxu0 0.0
    %2817 = vmatpush1.msra.mxu0 0.0
    %2818 = vmatprep.subr.mxu0 0.0
    %2819 = vmatpush1.msra.mxu0 0.0
    %2820 = vmatprep.subr.mxu0 0.0
    %2821 = vmatpush1.msra.mxu0 0.0
    %2822 = vmatprep.subr.mxu0 0.0
    %2823 = vmatpush1.msra.mxu0 0.0
    %2824 = vmatprep.subr.mxu0 0.0
    %2825 = vmatpush1.msra.mxu0 0.0
    %2826 = vmatprep.subr.mxu0 0.0
    %2827 = vmatpush1.msra.mxu0 0.0
    %2828 = vmatprep.subr.mxu0 0.0
    %2829 = vmatpush1.msra.mxu0 0.0
    %2830 = vmatprep.subr.mxu0 0.0
    %2831 = vmatpush1.msra.mxu0 0.0
    %2832 = vmatprep.subr.mxu0 0.0
    %2833 = vmatpush1.msra.mxu0 0.0
    %2834 = vmatprep.subr.mxu0 0.0
    %2835 = vmatpush1.msra.mxu0 0.0
    %2836 = vmatprep.subr.mxu0 0.0
    %2837 = vmatpush1.msra.mxu0 0.0
    %2838 = vmatprep.subr.mxu0 0.0
    %2839 = vmatpush1.msra.mxu0 0.0
    %2840 = vmatprep.subr.mxu0 0.0
    %2841 = vmatpush1.msra.mxu0 0.0
    %2842 = vmatprep.subr.mxu0 0.0
    %2843 = vmatpush1.msra.mxu0 0.0
    %2844 = vmatprep.subr.mxu0 0.0
    %2845 = vmatpush1.msra.mxu0 0.0
    %2846 = vmatprep.subr.mxu0 0.0
    %2847 = vmatpush1.msra.mxu0 0.0
    %2848 = vmatprep.subr.mxu0 0.0
    %2849 = vmatpush1.msra.mxu0 0.0
    %2850 = vmatprep.subr.mxu0 0.0
    %2851 = vmatpush1.msra.mxu0 0.0
    %2852 = vmatprep.subr.mxu0 0.0
    %2853 = vmatpush1.msra.mxu0 0.0
    %2854 = vmatprep.subr.mxu0 0.0
    %2855 = vmatpush1.msra.mxu0 0.0
    %2856 = vmatprep.subr.mxu0 0.0
    %2857 = vmatpush1.msra.mxu0 0.0
    %2858 = vmatprep.subr.mxu0 0.0
    %2859 = vmatpush1.msra.mxu0 0.0
    %2860 = vmatprep.subr.mxu0 0.0
    %2861 = vmatpush1.msra.mxu0 0.0
    %2862 = vmatprep.subr.mxu0 0.0
    %2863 = vmatpush1.msra.mxu0 0.0
    %2864 = vmatprep.subr.mxu0 0.0
    %2865 = vmatpush1.msra.mxu0 0.0
    %2866 = vmatprep.subr.mxu0 0.0
    %2867 = vmatpush1.msra.mxu0 0.0
    %2868 = vmatprep.subr.mxu0 0.0
    %2869 = vmatpush1.msra.mxu0 0.0
    %2870 = vmatprep.subr.mxu0 0.0
    %2871 = vmatpush1.msra.mxu0 0.0
    %2872 = vmatprep.mubr.f32.mxu0 0.0
    %2873 = vmatmul.mubr.f32.gmra.mrb[0].mxu0 %v2806
    %v2874 = vpop.f32.mrb[0].mxu0
    %v2875 = vadd.f32 0.0, %v2874
    %v2876 = vpop.f32.mrb[0].mxu0
    %2877 = vdwg.mxu0
    %v2879 = vrot.slane %v2875, 2
    %v2881 = vadd.f32 %v2067, %v2879
    %v2882 = vxor.u32 %v2881, 2147483648
    %v2883 = vmul.f32 %v2882, 1.442695
    %v2884 = vpow.pop %v2883
    %v2885 = vadd.f32 %v2884, 1.0
    %v2886 = vrcp.pop %v2885
    %v2887 = vmul.f32 1.0, %v2886
    %v2888 = vtanh.pop %v2881
    %v2890 = vrot.slane %v2795, 6
    %v2892 = vmul.f32 %v2887, %v2890
    %2894 = vrot.lane.b32.xlu0 %v2888, 64
    %v2895 = vpop.permute.xlu0 %2894
    %v2897 = vmul.f32 %v2887, %v2895
    %2899 = vrot.lane.b32.xlu0 %v2897, 32
    %v2900 = vpop.permute.xlu0 %2899
    %v2902 = vadd.f32 %v2892, %v2900
    %v2903 = vtanh.pop %v2902
    %2905 = vrot.lane.b32.xlu0 %v2903, 64
    %v2906 = vpop.permute.xlu0 %2905
    %v2908 = vmul.f32 %v2887, %v2906
    %2910 = vrot.lane.b32.xlu0 %v1010, 64
    %v2911 = vpop.permute.xlu0 %2910
    %2913 = vrot.lane.b32.xlu0 %v1957, 64
    %v2914 = vpop.permute.xlu0 %2913
    %2916 = vrot.lane.b32.xlu0 %v2902, 64
    %v2917 = vpop.permute.xlu0 %2916
    %2921 = vrot.lane.b32.xlu0 %v1016, 32
    %v2922 = vpop.permute.xlu0 %2921
    %2923 = vrot.lane.b32.xlu0 %v1963, 32
    %v2924 = vpop.permute.xlu0 %2923
    %2925 = vrot.lane.b32.xlu0 %v2908, 32
    %v2926 = vpop.permute.xlu0 %2925
    %2927 = vrot.lane.b32.xlu0 %v2911, 32
    %v2928 = vpop.permute.xlu0 %2927
    %2929 = vrot.lane.b32.xlu0 %v2914, 32
    %v2930 = vpop.permute.xlu0 %2929
    %2931 = vrot.lane.b32.xlu0 %v2917, 32
    %v2932 = vpop.permute.xlu0 %2931
    %vm2939 = vcmask 261126
    %2940 = vst.msk [vmem:[%s10 - $0x6] sm:$0xc0] %vm2939, %v2922
    %2941 = vst.msk [vmem:[%s10 - $0x4] sm:$0xc0] %vm2939, %v2924
    %2942 = vst.msk [vmem:[%s10 - $0x2] sm:$0xc0] %vm2939, %v2926
    %2943 = vst.msk [vmem:[%s10] sm:$0xc0] %vm2939, %v2928
    %2944 = vst.msk [vmem:[%s10 + $0x2] sm:$0xc0] %vm2939, %v2930
    %2945 = vst.msk [vmem:[%s10 + $0x4] sm:$0xc0] %vm2939, %v2932
    // Predicated region
    $region54: #{encoder_forward.1} parent=1 // pred_check
      _
    $region55: #{encoder_forward.1} parent=1 // pred_check_branch
      %2947 = sbr.rel (0) target = $region57
    $region56: #{encoder_forward.1} parent=1 // pred_region
      _
    $region57: #{encoder_forward.1} parent=1 // pred_fallthru
      _
    // Predicated region
    $region58: #{encoder_forward.1} parent=1 // pred_check
      _
    $region59: #{encoder_forward.1} parent=1 // pred_check_branch
      %2949 = sbr.rel (0) target = $region61
    $region60: #{encoder_forward.1} parent=1 // pred_region
      _
    $region61: #{encoder_forward.1} parent=1 // pred_fallthru
      _
    %2950 = vsyncpa [#allocation3], 1
    %2951 = vsyncpa [#allocation5], 1

</llo_original>
